<compile_context>
chip_gen: v6e
topology: v6e:2x2x1
jax: 0.10.0
libtpu: 0.0.40
codegen_flags: <defaults>
</compile_context>

<pallas_src>
import math

import jax
import jax.numpy as jnp
from jax.experimental import pallas as pl
from jax.experimental.pallas import tpu as pltpu

_BN_EPS = 1e-5


def _bn_train(x, gamma, beta):
    """BatchNorm2d (train mode) over the rows of a (rows, C) activation.

    Two-pass centered variance (biased, like PyTorch's normalization in train mode).
    """
    inv = 1.0 / x.shape[0]
    mean = jnp.sum(x, axis=0, keepdims=True) * inv
    xc = x - mean
    var = jnp.sum(xc * xc, axis=0, keepdims=True) * inv
    return xc * jax.lax.rsqrt(var + _BN_EPS) * gamma + beta


def make_fused_kernel(N, H, W, classes):
    # conv1: 7x7 s2 p3 ; maxpool: 3x3 s2 p1 ; layer2 convs: 3x3 s2/s1 p1, 1x1 s2
    H1, W1 = (H + 6 - 7) // 2 + 1, (W + 6 - 7) // 2 + 1
    HP, WP = (H1 + 2 - 3) // 2 + 1, (W1 + 2 - 3) // 2 + 1
    H2, W2 = (HP + 2 - 3) // 2 + 1, (WP + 2 - 3) // 2 + 1
    C1, C2 = 64, 16
    # stride-2 tap extraction below assumes even post-conv1 / post-pool sizes
    assert H1 % 2 == 0 and W1 % 2 == 0 and HP % 2 == 0 and WP % 2 == 0
    assert HP == H1 // 2 and WP == W1 // 2 and H2 == HP // 2 and W2 == WP // 2
    rows2 = N * H2 * W2

    def kernel(p1_ref, w1_ref, g1_ref, b1_ref,
               w21_ref, g21_ref, b21_ref,
               wsc_ref, gsc_ref, bsc_ref,
               w22_ref, g22_ref, b22_ref,
               wfc_ref, bfc_ref,
               feat_ref, resid_ref,
               mp_pad, c1_pad, c2_pad):
        f32 = jnp.float32

        # ---- layer1: conv 7x7 / stride 2 as ONE deep im2col matmul, then BN + ReLU
        a1 = jnp.dot(p1_ref[...], w1_ref[...], preferred_element_type=f32)   # (N*H1*W1, 64)
        y1 = jnp.maximum(_bn_train(a1, g1_ref[...], b1_ref[...]), 0.0)

        # ---- layer1: maxpool 3x3 / stride 2 / pad 1.  Zero padding == -inf padding because
        #      y1 >= 0.  Only the top row / left col of the halo are ever read (taps reach
        #      padded index 0..H1), so only those are filled.  Outer F.relu is the identity.
        mp_pad[:, 0:1, :, :] = jnp.zeros((N, 1, W1 + 1, C1), f32)
        mp_pad[:, 1:H1 + 1, 0:1, :] = jnp.zeros((N, H1, 1, C1), f32)
        mp_pad[:, 1:H1 + 1, 1:W1 + 1, :] = y1.reshape(N, H1, W1, C1)
        pool = None
        for dh in range(3):
            for dw in range(3):
                tap = mp_pad[:, pl.ds(dh, HP, 2), pl.ds(dw, WP, 2), :]   # (N,HP,WP,C1)
                pool = tap if pool is None else jnp.maximum(pool, tap)
        # lane-dense residual slab (minor dim WP*C1 >= 128 -> unmasked vst)
        resid_ref[...] = pool.reshape(N * HP, WP * C1)                    # resudial1

        # ---- layer2 conv1: 3x3 stride 2 pad 1 (64->16) + BN + ReLU.
        #      The 1x1 stride-2 shortcut input is exactly the center (dh=dw=1) tap.
        c1_pad[:, 0:1, :, :] = jnp.zeros((N, 1, WP + 1, C1), f32)
        c1_pad[:, 1:HP + 1, 0:1, :] = jnp.zeros((N, HP, 1, C1), f32)
        c1_pad[:, 1:HP + 1, 1:WP + 1, :] = pool
        acc21 = jnp.zeros((rows2, C2), f32)
        sc_in = None
        for dh in range(3):
            for dw in range(3):
                tap = c1_pad[:, pl.ds(dh, H2, 2), pl.ds(dw, W2, 2), :]    # (N,H2,W2,C1)
                tap2d = tap.reshape(rows2, C1)
                if dh == 1 and dw == 1:
                    sc_in = tap2d
                t = dh * 3 + dw
                acc21 = acc21 + jnp.dot(tap2d, w21_ref[t * C1:(t + 1) * C1, :],
                                        preferred_element_type=f32)
        b1a = jnp.maximum(_bn_train(acc21, g21_ref[...], b21_ref[...]), 0.0)

        # ---- layer2 shortcut: 1x1 conv stride 2 + BN (conv bias cancels in batch-stat BN)
        sc = _bn_train(jnp.dot(sc_in, wsc_ref[...], preferred_element_type=f32),
                       gsc_ref[...], bsc_ref[...])                        # (rows2, 16)

        # ---- layer2 conv2: 3x3 stride 1 pad 1 (16->16) + BN, + shortcut, ReLU
        c2_pad[:, 0:1, :, :] = jnp.zeros((N, 1, W2 + 2, C2), f32)
        c2_pad[:, H2 + 1:H2 + 2, :, :] = jnp.zeros((N, 1, W2 + 2, C2), f32)
        c2_pad[:, 1:H2 + 1, 0:1, :] = jnp.zeros((N, H2, 1, C2), f32)
        c2_pad[:, 1:H2 + 1, W2 + 1:W2 + 2, :] = jnp.zeros((N, H2, 1, C2), f32)
        c2_pad[:, 1:H2 + 1, 1:W2 + 1, :] = b1a.reshape(N, H2, W2, C2)
        acc22 = jnp.zeros((rows2, C2), f32)
        for dh in range(3):
            for dw in range(3):
                tap = c2_pad[:, dh:dh + H2, dw:dw + W2, :]                # (N,H2,W2,C2)
                t = dh * 3 + dw
                acc22 = acc22 + jnp.dot(tap.reshape(rows2, C2),
                                        w22_ref[t * C2:(t + 1) * C2, :],
                                        preferred_element_type=f32)
        b2 = jnp.maximum(_bn_train(acc22, g22_ref[...], b22_ref[...]) + sc, 0.0)

        # ---- head: AdaptiveAvgPool2d((1,1)) -> flatten -> Linear
        pooled = jnp.mean(b2.reshape(N, H2 * W2, C2), axis=1)            # (N, 16)
        feat_ref[...] = (jnp.dot(pooled, wfc_ref[...], preferred_element_type=f32)
                         + bfc_ref[...])

    scratch = [pltpu.VMEM((N, H1 + 1, W1 + 1, C1), jnp.float32),
               pltpu.VMEM((N, HP + 1, WP + 1, C1), jnp.float32),
               pltpu.VMEM((N, H2 + 2, W2 + 2, C2), jnp.float32)]
    out_shapes = (jax.ShapeDtypeStruct((N, classes), jnp.float32),
                  jax.ShapeDtypeStruct((N * HP, WP * C1), jnp.float32))
    return kernel, scratch, out_shapes, (HP, WP, C1)


def _vmem_spec():
    # whole-array block, resident in VMEM; no grid -> no double buffering
    return pl.BlockSpec(memory_space=pltpu.MemorySpace.VMEM)


def _im2col(x_nhwc, K, s, pad):
    """Lane-dense im2col pre-layout of the raw input; columns ordered (kh, kw, cin)."""
    N, H, W, C = x_nhwc.shape
    Ho = (H + 2 * pad - K) // s + 1
    Wo = (W + 2 * pad - K) // s + 1
    xp = jnp.pad(x_nhwc, ((0, 0), (pad, pad), (pad, pad), (0, 0)))
    cols = [xp[:, kh:kh + s * (Ho - 1) + 1:s, kw:kw + s * (Wo - 1) + 1:s, :]
            for kh in range(K) for kw in range(K)]
    return jnp.concatenate(cols, axis=-1).reshape(N * Ho * Wo, K * K * C)


def resnet18_client_forward(x_nchw, params):
    N, _, H, W = x_nchw.shape
    classes = params["fc_w"].shape[-1]

    # Boundary layout change only (module I/O matches PyTorch's NCHW).
    x = jnp.transpose(x_nchw, (0, 2, 3, 1))
    # TODO(synk): move this im2col in-kernel (pl.ANY input + DMA) for large batches.
    p1 = _im2col(x, K=7, s=2, pad=3)                         # (N*H1*W1, 147)

    kernel, scratch, out_shapes, (HP, WP, C1) = make_fused_kernel(N, H, W, classes)
    args = [p1,
            params["conv1_w"], params["bn1_g"], params["bn1_b"],
            params["l2c1_w"], params["l2bn1_g"], params["l2bn1_b"],
            params["sc_w"], params["scbn_g"], params["scbn_b"],
            params["l2c2_w"], params["l2bn2_g"], params["l2bn2_b"],
            params["fc_w"], params["fc_b"]]

    feats, resid_flat = pl.pallas_call(
        kernel,
        out_shape=out_shapes,
        in_specs=[_vmem_spec() for _ in args],
        out_specs=tuple(_vmem_spec() for _ in out_shapes),
        scratch_shapes=scratch,
        compiler_params=pltpu.CompilerParams(vmem_limit_bytes=64 * 1024 * 1024),
    )(*args)

    # free reshape (same row-major order), then boundary NHWC->NCHW transpose
    resid1_nchw = jnp.transpose(resid_flat.reshape(N, HP, WP, C1), (0, 3, 1, 2))
    return feats, resid1_nchw


# ----------------------------------------------------------------------------
# Deterministic parameter init (mirrors the module's __init__).
# Conv weights are stored in im2col layout: (K*K*Cin, Cout), rows ordered (kh, kw, cin).
# When importing PyTorch checkpoints, permute (Cout, Cin, Kh, Kw) -> (Kh, Kw, Cin) x Cout.
# ----------------------------------------------------------------------------
def init_params(key, classes=10):
    ks = jax.random.split(key, 6)

    def conv_w(k, K, cin, cout):
        std = math.sqrt(2.0 / (K * K * cout))   # normal(0, sqrt(2 / (k*k*out_channels)))
        return jax.random.normal(k, (K * K * cin, cout), jnp.float32) * std

    def bn(c):
        return jnp.ones((1, c), jnp.float32), jnp.zeros((1, c), jnp.float32)

    p = {}
    p["conv1_w"] = conv_w(ks[0], 7, 3, 64)
    p["bn1_g"], p["bn1_b"] = bn(64)
    p["l2c1_w"] = conv_w(ks[1], 3, 64, 16)
    p["l2bn1_g"], p["l2bn1_b"] = bn(16)
    p["l2c2_w"] = conv_w(ks[2], 3, 16, 16)
    p["l2bn2_g"], p["l2bn2_b"] = bn(16)
    p["sc_w"] = conv_w(ks[3], 1, 64, 16)
    p["scbn_g"], p["scbn_b"] = bn(16)
    bound = 1.0 / math.sqrt(16.0)               # PyTorch Linear default init (not re-init'd)
    p["fc_w"] = jax.random.uniform(ks[4], (16, classes), jnp.float32, -bound, bound)
    p["fc_b"] = jax.random.uniform(ks[5], (1, classes), jnp.float32, -bound, bound)
    return p


if __name__ == "__main__":
    key = jax.random.PRNGKey(0)
    kx, kp = jax.random.split(key)
    x = jax.random.normal(kx, (2, 3, 16, 16), jnp.float32)   # NCHW, like PyTorch
    params = init_params(kp, classes=10)

    fwd = jax.jit(resnet18_client_forward)
    feats, resid1 = fwd(x, params)
    jax.block_until_ready((feats, resid1))

    assert feats.shape == (2, 10), feats.shape
    assert resid1.shape == (2, 64, 4, 4), resid1.shape
    assert bool(jnp.all(jnp.isfinite(feats))) and bool(jnp.all(jnp.isfinite(resid1)))
    print("KERNEL_OK")
</pallas_src>

<mosaic_0001>
module attributes {stable_mosaic.version = 11 : i64} {
  func.func @kernel(%arg0: memref<128x147xf32, #tpu.memory_space<vmem>>, %arg1: memref<147x64xf32, #tpu.memory_space<vmem>>, %arg2: memref<1x64xf32, #tpu.memory_space<vmem>>, %arg3: memref<1x64xf32, #tpu.memory_space<vmem>>, %arg4: memref<576x16xf32, #tpu.memory_space<vmem>>, %arg5: memref<1x16xf32, #tpu.memory_space<vmem>>, %arg6: memref<1x16xf32, #tpu.memory_space<vmem>>, %arg7: memref<64x16xf32, #tpu.memory_space<vmem>>, %arg8: memref<1x16xf32, #tpu.memory_space<vmem>>, %arg9: memref<1x16xf32, #tpu.memory_space<vmem>>, %arg10: memref<144x16xf32, #tpu.memory_space<vmem>>, %arg11: memref<1x16xf32, #tpu.memory_space<vmem>>, %arg12: memref<1x16xf32, #tpu.memory_space<vmem>>, %arg13: memref<16x10xf32, #tpu.memory_space<vmem>>, %arg14: memref<1x10xf32, #tpu.memory_space<vmem>>, %arg15: memref<2x10xf32, #tpu.memory_space<vmem>>, %arg16: memref<8x256xf32, #tpu.memory_space<vmem>>, %arg17: memref<2x9x9x64xf32, #tpu.memory_space<vmem>>, %arg18: memref<2x5x5x64xf32, #tpu.memory_space<vmem>>, %arg19: memref<2x4x4x16xf32, #tpu.memory_space<vmem>>) attributes {dimension_semantics = [], scalar_prefetch = 0 : i64, scratch_operands = 3 : i64, tpu.core_type = #tpu.core_type<tc>} {
    %c0 = arith.constant 0 : index
    %c0_0 = arith.constant 0 : index
    %0 = vector.load %arg0[%c0, %c0_0] : memref<128x147xf32, #tpu.memory_space<vmem>>, vector<128x147xf32>
    %c0_1 = arith.constant 0 : index
    %c0_2 = arith.constant 0 : index
    %1 = vector.load %arg1[%c0_1, %c0_2] : memref<147x64xf32, #tpu.memory_space<vmem>>, vector<147x64xf32>
    %cst = arith.constant dense<0.000000e+00> : vector<128x64xf32>
    %2 = tpu.matmul %0, %1, %cst {dimension_numbers = #tpu.dot_dimension_numbers<[1], [0], [0], [1], [0, 0, 1, 1], [], []>} : vector<128x147xf32>, vector<147x64xf32>, vector<128x64xf32> -> vector<128x64xf32>
    %c0_3 = arith.constant 0 : index
    %c0_4 = arith.constant 0 : index
    %3 = vector.load %arg2[%c0_3, %c0_4] : memref<1x64xf32, #tpu.memory_space<vmem>>, vector<1x64xf32>
    %c0_5 = arith.constant 0 : index
    %c0_6 = arith.constant 0 : index
    %4 = vector.load %arg3[%c0_5, %c0_6] : memref<1x64xf32, #tpu.memory_space<vmem>>, vector<1x64xf32>
    %cst_7 = arith.constant dense<0.000000e+00> : vector<64xf32>
    %5 = vector.multi_reduction <add>, %2, %cst_7 [0] : vector<128x64xf32> to vector<64xf32>
    %6 = vector.shape_cast %5 : vector<64xf32> to vector<1x64xf32>
    %cst_8 = arith.constant 7.812500e-03 : f32
    %7 = vector.broadcast %cst_8 : f32 to vector<1x64xf32>
    %8 = arith.mulf %6, %7 : vector<1x64xf32>
    %9 = vector.broadcast %8 : vector<1x64xf32> to vector<128x64xf32>
    %10 = arith.subf %2, %9 : vector<128x64xf32>
    %11 = arith.mulf %10, %10 : vector<128x64xf32>
    %cst_9 = arith.constant dense<0.000000e+00> : vector<64xf32>
    %12 = vector.multi_reduction <add>, %11, %cst_9 [0] : vector<128x64xf32> to vector<64xf32>
    %13 = vector.shape_cast %12 : vector<64xf32> to vector<1x64xf32>
    %cst_10 = arith.constant 7.812500e-03 : f32
    %14 = vector.broadcast %cst_10 : f32 to vector<1x64xf32>
    %15 = arith.mulf %13, %14 : vector<1x64xf32>
    %cst_11 = arith.constant 9.99999974E-6 : f32
    %16 = vector.broadcast %cst_11 : f32 to vector<1x64xf32>
    %17 = arith.addf %15, %16 : vector<1x64xf32>
    %18 = math.rsqrt %17 : vector<1x64xf32>
    %19 = vector.broadcast %18 : vector<1x64xf32> to vector<128x64xf32>
    %20 = arith.mulf %10, %19 : vector<128x64xf32>
    %21 = vector.broadcast %3 : vector<1x64xf32> to vector<128x64xf32>
    %22 = arith.mulf %20, %21 : vector<128x64xf32>
    %23 = vector.broadcast %4 : vector<1x64xf32> to vector<128x64xf32>
    %24 = arith.addf %22, %23 : vector<128x64xf32>
    %cst_12 = arith.constant 0.000000e+00 : f32
    %25 = vector.broadcast %cst_12 : f32 to vector<128x64xf32>
    %26 = arith.maximumf %24, %25 : vector<128x64xf32>
    %cst_13 = arith.constant 0.000000e+00 : f32
    %27 = vector.broadcast %cst_13 : f32 to vector<2x1x9x64xf32>
    %c0_14 = arith.constant 0 : index
    %c0_15 = arith.constant 0 : index
    %c0_16 = arith.constant 0 : index
    %c0_17 = arith.constant 0 : index
    %28 = vector.load %arg17[%c0_14, %c0_15, %c0_16, %c0_17] : memref<2x9x9x64xf32, #tpu.memory_space<vmem>>, vector<2x1x9x64xf32>
    tpu.vector_store %arg17[%c0_14, %c0_15, %c0_16, %c0_17], %27 {strides = array<i32>} : memref<2x9x9x64xf32, #tpu.memory_space<vmem>>, vector<2x1x9x64xf32>,
    %cst_18 = arith.constant 0.000000e+00 : f32
    %29 = vector.broadcast %cst_18 : f32 to vector<2x8x1x64xf32>
    %c0_19 = arith.constant 0 : index
    %c1 = arith.constant 1 : index
    %c0_20 = arith.constant 0 : index
    %c0_21 = arith.constant 0 : index
    %30 = vector.load %arg17[%c0_19, %c1, %c0_20, %c0_21] : memref<2x9x9x64xf32, #tpu.memory_space<vmem>>, vector<2x8x1x64xf32>
    tpu.vector_store %arg17[%c0_19, %c1, %c0_20, %c0_21], %29 {strides = array<i32>} : memref<2x9x9x64xf32, #tpu.memory_space<vmem>>, vector<2x8x1x64xf32>,
    %31 = vector.shape_cast %26 : vector<128x64xf32> to vector<2x8x8x64xf32>
    %c0_22 = arith.constant 0 : index
    %c1_23 = arith.constant 1 : index
    %c1_24 = arith.constant 1 : index
    %c0_25 = arith.constant 0 : index
    %32 = vector.load %arg17[%c0_22, %c1_23, %c1_24, %c0_25] : memref<2x9x9x64xf32, #tpu.memory_space<vmem>>, vector<2x8x8x64xf32>
    tpu.vector_store %arg17[%c0_22, %c1_23, %c1_24, %c0_25], %31 {strides = array<i32>} : memref<2x9x9x64xf32, #tpu.memory_space<vmem>>, vector<2x8x8x64xf32>,
    %c0_26 = arith.constant 0 : index
    %c0_27 = arith.constant 0 : index
    %c0_28 = arith.constant 0 : index
    %c0_29 = arith.constant 0 : index
    %33 = tpu.strided_load %arg17[%c0_26, %c0_27, %c0_28, %c0_29] {strides = array<i32: 1, 2, 2, 1>} : memref<2x9x9x64xf32, #tpu.memory_space<vmem>>, vector<2x4x4x64xf32>
    %c0_30 = arith.constant 0 : index
    %c0_31 = arith.constant 0 : index
    %c1_32 = arith.constant 1 : index
    %c0_33 = arith.constant 0 : index
    %34 = tpu.strided_load %arg17[%c0_30, %c0_31, %c1_32, %c0_33] {strides = array<i32: 1, 2, 2, 1>} : memref<2x9x9x64xf32, #tpu.memory_space<vmem>>, vector<2x4x4x64xf32>
    %35 = arith.maximumf %33, %34 : vector<2x4x4x64xf32>
    %c0_34 = arith.constant 0 : index
    %c0_35 = arith.constant 0 : index
    %c2 = arith.constant 2 : index
    %c0_36 = arith.constant 0 : index
    %36 = tpu.strided_load %arg17[%c0_34, %c0_35, %c2, %c0_36] {strides = array<i32: 1, 2, 2, 1>} : memref<2x9x9x64xf32, #tpu.memory_space<vmem>>, vector<2x4x4x64xf32>
    %37 = arith.maximumf %35, %36 : vector<2x4x4x64xf32>
    %c0_37 = arith.constant 0 : index
    %c1_38 = arith.constant 1 : index
    %c0_39 = arith.constant 0 : index
    %c0_40 = arith.constant 0 : index
    %38 = tpu.strided_load %arg17[%c0_37, %c1_38, %c0_39, %c0_40] {strides = array<i32: 1, 2, 2, 1>} : memref<2x9x9x64xf32, #tpu.memory_space<vmem>>, vector<2x4x4x64xf32>
    %39 = arith.maximumf %37, %38 : vector<2x4x4x64xf32>
    %c0_41 = arith.constant 0 : index
    %c1_42 = arith.constant 1 : index
    %c1_43 = arith.constant 1 : index
    %c0_44 = arith.constant 0 : index
    %40 = tpu.strided_load %arg17[%c0_41, %c1_42, %c1_43, %c0_44] {strides = array<i32: 1, 2, 2, 1>} : memref<2x9x9x64xf32, #tpu.memory_space<vmem>>, vector<2x4x4x64xf32>
    %41 = arith.maximumf %39, %40 : vector<2x4x4x64xf32>
    %c0_45 = arith.constant 0 : index
    %c1_46 = arith.constant 1 : index
    %c2_47 = arith.constant 2 : index
    %c0_48 = arith.constant 0 : index
    %42 = tpu.strided_load %arg17[%c0_45, %c1_46, %c2_47, %c0_48] {strides = array<i32: 1, 2, 2, 1>} : memref<2x9x9x64xf32, #tpu.memory_space<vmem>>, vector<2x4x4x64xf32>
    %43 = arith.maximumf %41, %42 : vector<2x4x4x64xf32>
    %c0_49 = arith.constant 0 : index
    %c2_50 = arith.constant 2 : index
    %c0_51 = arith.constant 0 : index
    %c0_52 = arith.constant 0 : index
    %44 = tpu.strided_load %arg17[%c0_49, %c2_50, %c0_51, %c0_52] {strides = array<i32: 1, 2, 2, 1>} : memref<2x9x9x64xf32, #tpu.memory_space<vmem>>, vector<2x4x4x64xf32>
    %45 = arith.maximumf %43, %44 : vector<2x4x4x64xf32>
    %c0_53 = arith.constant 0 : index
    %c2_54 = arith.constant 2 : index
    %c1_55 = arith.constant 1 : index
    %c0_56 = arith.constant 0 : index
    %46 = tpu.strided_load %arg17[%c0_53, %c2_54, %c1_55, %c0_56] {strides = array<i32: 1, 2, 2, 1>} : memref<2x9x9x64xf32, #tpu.memory_space<vmem>>, vector<2x4x4x64xf32>
    %47 = arith.maximumf %45, %46 : vector<2x4x4x64xf32>
    %c0_57 = arith.constant 0 : index
    %c2_58 = arith.constant 2 : index
    %c2_59 = arith.constant 2 : index
    %c0_60 = arith.constant 0 : index
    %48 = tpu.strided_load %arg17[%c0_57, %c2_58, %c2_59, %c0_60] {strides = array<i32: 1, 2, 2, 1>} : memref<2x9x9x64xf32, #tpu.memory_space<vmem>>, vector<2x4x4x64xf32>
    %49 = arith.maximumf %47, %48 : vector<2x4x4x64xf32>
    %50 = vector.shape_cast %49 : vector<2x4x4x64xf32> to vector<8x256xf32>
    %c0_61 = arith.constant 0 : index
    %c0_62 = arith.constant 0 : index
    %51 = vector.load %arg16[%c0_61, %c0_62] : memref<8x256xf32, #tpu.memory_space<vmem>>, vector<8x256xf32>
    tpu.vector_store %arg16[%c0_61, %c0_62], %50 {strides = array<i32>} : memref<8x256xf32, #tpu.memory_space<vmem>>, vector<8x256xf32>,
    %cst_63 = arith.constant 0.000000e+00 : f32
    %52 = vector.broadcast %cst_63 : f32 to vector<2x1x5x64xf32>
    %c0_64 = arith.constant 0 : index
    %c0_65 = arith.constant 0 : index
    %c0_66 = arith.constant 0 : index
    %c0_67 = arith.constant 0 : index
    %53 = vector.load %arg18[%c0_64, %c0_65, %c0_66, %c0_67] : memref<2x5x5x64xf32, #tpu.memory_space<vmem>>, vector<2x1x5x64xf32>
    tpu.vector_store %arg18[%c0_64, %c0_65, %c0_66, %c0_67], %52 {strides = array<i32>} : memref<2x5x5x64xf32, #tpu.memory_space<vmem>>, vector<2x1x5x64xf32>,
    %cst_68 = arith.constant 0.000000e+00 : f32
    %54 = vector.broadcast %cst_68 : f32 to vector<2x4x1x64xf32>
    %c0_69 = arith.constant 0 : index
    %c1_70 = arith.constant 1 : index
    %c0_71 = arith.constant 0 : index
    %c0_72 = arith.constant 0 : index
    %55 = vector.load %arg18[%c0_69, %c1_70, %c0_71, %c0_72] : memref<2x5x5x64xf32, #tpu.memory_space<vmem>>, vector<2x4x1x64xf32>
    tpu.vector_store %arg18[%c0_69, %c1_70, %c0_71, %c0_72], %54 {strides = array<i32>} : memref<2x5x5x64xf32, #tpu.memory_space<vmem>>, vector<2x4x1x64xf32>,
    %c0_73 = arith.constant 0 : index
    %c1_74 = arith.constant 1 : index
    %c1_75 = arith.constant 1 : index
    %c0_76 = arith.constant 0 : index
    %56 = vector.load %arg18[%c0_73, %c1_74, %c1_75, %c0_76] : memref<2x5x5x64xf32, #tpu.memory_space<vmem>>, vector<2x4x4x64xf32>
    tpu.vector_store %arg18[%c0_73, %c1_74, %c1_75, %c0_76], %49 {strides = array<i32>} : memref<2x5x5x64xf32, #tpu.memory_space<vmem>>, vector<2x4x4x64xf32>,
    %cst_77 = arith.constant 0.000000e+00 : f32
    %57 = vector.broadcast %cst_77 : f32 to vector<8x16xf32>
    %c0_78 = arith.constant 0 : index
    %c0_79 = arith.constant 0 : index
    %c0_80 = arith.constant 0 : index
    %c0_81 = arith.constant 0 : index
    %58 = tpu.strided_load %arg18[%c0_78, %c0_79, %c0_80, %c0_81] {strides = array<i32: 1, 2, 2, 1>} : memref<2x5x5x64xf32, #tpu.memory_space<vmem>>, vector<2x2x2x64xf32>
    %59 = vector.shape_cast %58 : vector<2x2x2x64xf32> to vector<8x64xf32>
    %c0_82 = arith.constant 0 : index
    %c0_83 = arith.constant 0 : index
    %60 = vector.load %arg4[%c0_82, %c0_83] : memref<576x16xf32, #tpu.memory_space<vmem>>, vector<64x16xf32>
    %cst_84 = arith.constant dense<0.000000e+00> : vector<8x16xf32>
    %61 = tpu.matmul %59, %60, %cst_84 {dimension_numbers = #tpu.dot_dimension_numbers<[1], [0], [0], [1], [0, 0, 1, 1], [], []>} : vector<8x64xf32>, vector<64x16xf32>, vector<8x16xf32> -> vector<8x16xf32>
    %62 = arith.addf %57, %61 : vector<8x16xf32>
    %c0_85 = arith.constant 0 : index
    %c0_86 = arith.constant 0 : index
    %c1_87 = arith.constant 1 : index
    %c0_88 = arith.constant 0 : index
    %63 = tpu.strided_load %arg18[%c0_85, %c0_86, %c1_87, %c0_88] {strides = array<i32: 1, 2, 2, 1>} : memref<2x5x5x64xf32, #tpu.memory_space<vmem>>, vector<2x2x2x64xf32>
    %64 = vector.shape_cast %63 : vector<2x2x2x64xf32> to vector<8x64xf32>
    %c64 = arith.constant 64 : index
    %c0_89 = arith.constant 0 : index
    %65 = vector.load %arg4[%c64, %c0_89] : memref<576x16xf32, #tpu.memory_space<vmem>>, vector<64x16xf32>
    %cst_90 = arith.constant dense<0.000000e+00> : vector<8x16xf32>
    %66 = tpu.matmul %64, %65, %cst_90 {dimension_numbers = #tpu.dot_dimension_numbers<[1], [0], [0], [1], [0, 0, 1, 1], [], []>} : vector<8x64xf32>, vector<64x16xf32>, vector<8x16xf32> -> vector<8x16xf32>
    %67 = arith.addf %62, %66 : vector<8x16xf32>
    %c0_91 = arith.constant 0 : index
    %c0_92 = arith.constant 0 : index
    %c2_93 = arith.constant 2 : index
    %c0_94 = arith.constant 0 : index
    %68 = tpu.strided_load %arg18[%c0_91, %c0_92, %c2_93, %c0_94] {strides = array<i32: 1, 2, 2, 1>} : memref<2x5x5x64xf32, #tpu.memory_space<vmem>>, vector<2x2x2x64xf32>
    %69 = vector.shape_cast %68 : vector<2x2x2x64xf32> to vector<8x64xf32>
    %c128 = arith.constant 128 : index
    %c0_95 = arith.constant 0 : index
    %70 = vector.load %arg4[%c128, %c0_95] : memref<576x16xf32, #tpu.memory_space<vmem>>, vector<64x16xf32>
    %cst_96 = arith.constant dense<0.000000e+00> : vector<8x16xf32>
    %71 = tpu.matmul %69, %70, %cst_96 {dimension_numbers = #tpu.dot_dimension_numbers<[1], [0], [0], [1], [0, 0, 1, 1], [], []>} : vector<8x64xf32>, vector<64x16xf32>, vector<8x16xf32> -> vector<8x16xf32>
    %72 = arith.addf %67, %71 : vector<8x16xf32>
    %c0_97 = arith.constant 0 : index
    %c1_98 = arith.constant 1 : index
    %c0_99 = arith.constant 0 : index
    %c0_100 = arith.constant 0 : index
    %73 = tpu.strided_load %arg18[%c0_97, %c1_98, %c0_99, %c0_100] {strides = array<i32: 1, 2, 2, 1>} : memref<2x5x5x64xf32, #tpu.memory_space<vmem>>, vector<2x2x2x64xf32>
    %74 = vector.shape_cast %73 : vector<2x2x2x64xf32> to vector<8x64xf32>
    %c192 = arith.constant 192 : index
    %c0_101 = arith.constant 0 : index
    %75 = vector.load %arg4[%c192, %c0_101] : memref<576x16xf32, #tpu.memory_space<vmem>>, vector<64x16xf32>
    %cst_102 = arith.constant dense<0.000000e+00> : vector<8x16xf32>
    %76 = tpu.matmul %74, %75, %cst_102 {dimension_numbers = #tpu.dot_dimension_numbers<[1], [0], [0], [1], [0, 0, 1, 1], [], []>} : vector<8x64xf32>, vector<64x16xf32>, vector<8x16xf32> -> vector<8x16xf32>
    %77 = arith.addf %72, %76 : vector<8x16xf32>
    %c0_103 = arith.constant 0 : index
    %c1_104 = arith.constant 1 : index
    %c1_105 = arith.constant 1 : index
    %c0_106 = arith.constant 0 : index
    %78 = tpu.strided_load %arg18[%c0_103, %c1_104, %c1_105, %c0_106] {strides = array<i32: 1, 2, 2, 1>} : memref<2x5x5x64xf32, #tpu.memory_space<vmem>>, vector<2x2x2x64xf32>
    %79 = vector.shape_cast %78 : vector<2x2x2x64xf32> to vector<8x64xf32>
    %c256 = arith.constant 256 : index
    %c0_107 = arith.constant 0 : index
    %80 = vector.load %arg4[%c256, %c0_107] : memref<576x16xf32, #tpu.memory_space<vmem>>, vector<64x16xf32>
    %cst_108 = arith.constant dense<0.000000e+00> : vector<8x16xf32>
    %81 = tpu.matmul %79, %80, %cst_108 {dimension_numbers = #tpu.dot_dimension_numbers<[1], [0], [0], [1], [0, 0, 1, 1], [], []>} : vector<8x64xf32>, vector<64x16xf32>, vector<8x16xf32> -> vector<8x16xf32>
    %82 = arith.addf %77, %81 : vector<8x16xf32>
    %c0_109 = arith.constant 0 : index
    %c1_110 = arith.constant 1 : index
    %c2_111 = arith.constant 2 : index
    %c0_112 = arith.constant 0 : index
    %83 = tpu.strided_load %arg18[%c0_109, %c1_110, %c2_111, %c0_112] {strides = array<i32: 1, 2, 2, 1>} : memref<2x5x5x64xf32, #tpu.memory_space<vmem>>, vector<2x2x2x64xf32>
    %84 = vector.shape_cast %83 : vector<2x2x2x64xf32> to vector<8x64xf32>
    %c320 = arith.constant 320 : index
    %c0_113 = arith.constant 0 : index
    %85 = vector.load %arg4[%c320, %c0_113] : memref<576x16xf32, #tpu.memory_space<vmem>>, vector<64x16xf32>
    %cst_114 = arith.constant dense<0.000000e+00> : vector<8x16xf32>
    %86 = tpu.matmul %84, %85, %cst_114 {dimension_numbers = #tpu.dot_dimension_numbers<[1], [0], [0], [1], [0, 0, 1, 1], [], []>} : vector<8x64xf32>, vector<64x16xf32>, vector<8x16xf32> -> vector<8x16xf32>
    %87 = arith.addf %82, %86 : vector<8x16xf32>
    %c0_115 = arith.constant 0 : index
    %c2_116 = arith.constant 2 : index
    %c0_117 = arith.constant 0 : index
    %c0_118 = arith.constant 0 : index
    %88 = tpu.strided_load %arg18[%c0_115, %c2_116, %c0_117, %c0_118] {strides = array<i32: 1, 2, 2, 1>} : memref<2x5x5x64xf32, #tpu.memory_space<vmem>>, vector<2x2x2x64xf32>
    %89 = vector.shape_cast %88 : vector<2x2x2x64xf32> to vector<8x64xf32>
    %c384 = arith.constant 384 : index
    %c0_119 = arith.constant 0 : index
    %90 = vector.load %arg4[%c384, %c0_119] : memref<576x16xf32, #tpu.memory_space<vmem>>, vector<64x16xf32>
    %cst_120 = arith.constant dense<0.000000e+00> : vector<8x16xf32>
    %91 = tpu.matmul %89, %90, %cst_120 {dimension_numbers = #tpu.dot_dimension_numbers<[1], [0], [0], [1], [0, 0, 1, 1], [], []>} : vector<8x64xf32>, vector<64x16xf32>, vector<8x16xf32> -> vector<8x16xf32>
    %92 = arith.addf %87, %91 : vector<8x16xf32>
    %c0_121 = arith.constant 0 : index
    %c2_122 = arith.constant 2 : index
    %c1_123 = arith.constant 1 : index
    %c0_124 = arith.constant 0 : index
    %93 = tpu.strided_load %arg18[%c0_121, %c2_122, %c1_123, %c0_124] {strides = array<i32: 1, 2, 2, 1>} : memref<2x5x5x64xf32, #tpu.memory_space<vmem>>, vector<2x2x2x64xf32>
    %94 = vector.shape_cast %93 : vector<2x2x2x64xf32> to vector<8x64xf32>
    %c448 = arith.constant 448 : index
    %c0_125 = arith.constant 0 : index
    %95 = vector.load %arg4[%c448, %c0_125] : memref<576x16xf32, #tpu.memory_space<vmem>>, vector<64x16xf32>
    %cst_126 = arith.constant dense<0.000000e+00> : vector<8x16xf32>
    %96 = tpu.matmul %94, %95, %cst_126 {dimension_numbers = #tpu.dot_dimension_numbers<[1], [0], [0], [1], [0, 0, 1, 1], [], []>} : vector<8x64xf32>, vector<64x16xf32>, vector<8x16xf32> -> vector<8x16xf32>
    %97 = arith.addf %92, %96 : vector<8x16xf32>
    %c0_127 = arith.constant 0 : index
    %c2_128 = arith.constant 2 : index
    %c2_129 = arith.constant 2 : index
    %c0_130 = arith.constant 0 : index
    %98 = tpu.strided_load %arg18[%c0_127, %c2_128, %c2_129, %c0_130] {strides = array<i32: 1, 2, 2, 1>} : memref<2x5x5x64xf32, #tpu.memory_space<vmem>>, vector<2x2x2x64xf32>
    %99 = vector.shape_cast %98 : vector<2x2x2x64xf32> to vector<8x64xf32>
    %c512 = arith.constant 512 : index
    %c0_131 = arith.constant 0 : index
    %100 = vector.load %arg4[%c512, %c0_131] : memref<576x16xf32, #tpu.memory_space<vmem>>, vector<64x16xf32>
    %cst_132 = arith.constant dense<0.000000e+00> : vector<8x16xf32>
    %101 = tpu.matmul %99, %100, %cst_132 {dimension_numbers = #tpu.dot_dimension_numbers<[1], [0], [0], [1], [0, 0, 1, 1], [], []>} : vector<8x64xf32>, vector<64x16xf32>, vector<8x16xf32> -> vector<8x16xf32>
    %102 = arith.addf %97, %101 : vector<8x16xf32>
    %c0_133 = arith.constant 0 : index
    %c0_134 = arith.constant 0 : index
    %103 = vector.load %arg5[%c0_133, %c0_134] : memref<1x16xf32, #tpu.memory_space<vmem>>, vector<1x16xf32>
    %c0_135 = arith.constant 0 : index
    %c0_136 = arith.constant 0 : index
    %104 = vector.load %arg6[%c0_135, %c0_136] : memref<1x16xf32, #tpu.memory_space<vmem>>, vector<1x16xf32>
    %cst_137 = arith.constant dense<0.000000e+00> : vector<16xf32>
    %105 = vector.multi_reduction <add>, %102, %cst_137 [0] : vector<8x16xf32> to vector<16xf32>
    %106 = vector.shape_cast %105 : vector<16xf32> to vector<1x16xf32>
    %cst_138 = arith.constant 1.250000e-01 : f32
    %107 = vector.broadcast %cst_138 : f32 to vector<1x16xf32>
    %108 = arith.mulf %106, %107 : vector<1x16xf32>
    %109 = vector.broadcast %108 : vector<1x16xf32> to vector<8x16xf32>
    %110 = arith.subf %102, %109 : vector<8x16xf32>
    %111 = arith.mulf %110, %110 : vector<8x16xf32>
    %cst_139 = arith.constant dense<0.000000e+00> : vector<16xf32>
    %112 = vector.multi_reduction <add>, %111, %cst_139 [0] : vector<8x16xf32> to vector<16xf32>
    %113 = vector.shape_cast %112 : vector<16xf32> to vector<1x16xf32>
    %cst_140 = arith.constant 1.250000e-01 : f32
    %114 = vector.broadcast %cst_140 : f32 to vector<1x16xf32>
    %115 = arith.mulf %113, %114 : vector<1x16xf32>
    %cst_141 = arith.constant 9.99999974E-6 : f32
    %116 = vector.broadcast %cst_141 : f32 to vector<1x16xf32>
    %117 = arith.addf %115, %116 : vector<1x16xf32>
    %118 = math.rsqrt %117 : vector<1x16xf32>
    %119 = vector.broadcast %118 : vector<1x16xf32> to vector<8x16xf32>
    %120 = arith.mulf %110, %119 : vector<8x16xf32>
    %121 = vector.broadcast %103 : vector<1x16xf32> to vector<8x16xf32>
    %122 = arith.mulf %120, %121 : vector<8x16xf32>
    %123 = vector.broadcast %104 : vector<1x16xf32> to vector<8x16xf32>
    %124 = arith.addf %122, %123 : vector<8x16xf32>
    %cst_142 = arith.constant 0.000000e+00 : f32
    %125 = vector.broadcast %cst_142 : f32 to vector<8x16xf32>
    %126 = arith.maximumf %124, %125 : vector<8x16xf32>
    %c0_143 = arith.constant 0 : index
    %c0_144 = arith.constant 0 : index
    %127 = vector.load %arg7[%c0_143, %c0_144] : memref<64x16xf32, #tpu.memory_space<vmem>>, vector<64x16xf32>
    %cst_145 = arith.constant dense<0.000000e+00> : vector<8x16xf32>
    %128 = tpu.matmul %79, %127, %cst_145 {dimension_numbers = #tpu.dot_dimension_numbers<[1], [0], [0], [1], [0, 0, 1, 1], [], []>} : vector<8x64xf32>, vector<64x16xf32>, vector<8x16xf32> -> vector<8x16xf32>
    %c0_146 = arith.constant 0 : index
    %c0_147 = arith.constant 0 : index
    %129 = vector.load %arg8[%c0_146, %c0_147] : memref<1x16xf32, #tpu.memory_space<vmem>>, vector<1x16xf32>
    %c0_148 = arith.constant 0 : index
    %c0_149 = arith.constant 0 : index
    %130 = vector.load %arg9[%c0_148, %c0_149] : memref<1x16xf32, #tpu.memory_space<vmem>>, vector<1x16xf32>
    %cst_150 = arith.constant dense<0.000000e+00> : vector<16xf32>
    %131 = vector.multi_reduction <add>, %128, %cst_150 [0] : vector<8x16xf32> to vector<16xf32>
    %132 = vector.shape_cast %131 : vector<16xf32> to vector<1x16xf32>
    %cst_151 = arith.constant 1.250000e-01 : f32
    %133 = vector.broadcast %cst_151 : f32 to vector<1x16xf32>
    %134 = arith.mulf %132, %133 : vector<1x16xf32>
    %135 = vector.broadcast %134 : vector<1x16xf32> to vector<8x16xf32>
    %136 = arith.subf %128, %135 : vector<8x16xf32>
    %137 = arith.mulf %136, %136 : vector<8x16xf32>
    %cst_152 = arith.constant dense<0.000000e+00> : vector<16xf32>
    %138 = vector.multi_reduction <add>, %137, %cst_152 [0] : vector<8x16xf32> to vector<16xf32>
    %139 = vector.shape_cast %138 : vector<16xf32> to vector<1x16xf32>
    %cst_153 = arith.constant 1.250000e-01 : f32
    %140 = vector.broadcast %cst_153 : f32 to vector<1x16xf32>
    %141 = arith.mulf %139, %140 : vector<1x16xf32>
    %cst_154 = arith.constant 9.99999974E-6 : f32
    %142 = vector.broadcast %cst_154 : f32 to vector<1x16xf32>
    %143 = arith.addf %141, %142 : vector<1x16xf32>
    %144 = math.rsqrt %143 : vector<1x16xf32>
    %145 = vector.broadcast %144 : vector<1x16xf32> to vector<8x16xf32>
    %146 = arith.mulf %136, %145 : vector<8x16xf32>
    %147 = vector.broadcast %129 : vector<1x16xf32> to vector<8x16xf32>
    %148 = arith.mulf %146, %147 : vector<8x16xf32>
    %149 = vector.broadcast %130 : vector<1x16xf32> to vector<8x16xf32>
    %150 = arith.addf %148, %149 : vector<8x16xf32>
    %cst_155 = arith.constant 0.000000e+00 : f32
    %151 = vector.broadcast %cst_155 : f32 to vector<2x1x4x16xf32>
    %c0_156 = arith.constant 0 : index
    %c0_157 = arith.constant 0 : index
    %c0_158 = arith.constant 0 : index
    %c0_159 = arith.constant 0 : index
    %152 = vector.load %arg19[%c0_156, %c0_157, %c0_158, %c0_159] : memref<2x4x4x16xf32, #tpu.memory_space<vmem>>, vector<2x1x4x16xf32>
    tpu.vector_store %arg19[%c0_156, %c0_157, %c0_158, %c0_159], %151 {strides = array<i32>} : memref<2x4x4x16xf32, #tpu.memory_space<vmem>>, vector<2x1x4x16xf32>,
    %cst_160 = arith.constant 0.000000e+00 : f32
    %153 = vector.broadcast %cst_160 : f32 to vector<2x1x4x16xf32>
    %c0_161 = arith.constant 0 : index
    %c3 = arith.constant 3 : index
    %c0_162 = arith.constant 0 : index
    %c0_163 = arith.constant 0 : index
    %154 = vector.load %arg19[%c0_161, %c3, %c0_162, %c0_163] : memref<2x4x4x16xf32, #tpu.memory_space<vmem>>, vector<2x1x4x16xf32>
    tpu.vector_store %arg19[%c0_161, %c3, %c0_162, %c0_163], %153 {strides = array<i32>} : memref<2x4x4x16xf32, #tpu.memory_space<vmem>>, vector<2x1x4x16xf32>,
    %cst_164 = arith.constant 0.000000e+00 : f32
    %155 = vector.broadcast %cst_164 : f32 to vector<2x2x1x16xf32>
    %c0_165 = arith.constant 0 : index
    %c1_166 = arith.constant 1 : index
    %c0_167 = arith.constant 0 : index
    %c0_168 = arith.constant 0 : index
    %156 = vector.load %arg19[%c0_165, %c1_166, %c0_167, %c0_168] : memref<2x4x4x16xf32, #tpu.memory_space<vmem>>, vector<2x2x1x16xf32>
    tpu.vector_store %arg19[%c0_165, %c1_166, %c0_167, %c0_168], %155 {strides = array<i32>} : memref<2x4x4x16xf32, #tpu.memory_space<vmem>>, vector<2x2x1x16xf32>,
    %cst_169 = arith.constant 0.000000e+00 : f32
    %157 = vector.broadcast %cst_169 : f32 to vector<2x2x1x16xf32>
    %c0_170 = arith.constant 0 : index
    %c1_171 = arith.constant 1 : index
    %c3_172 = arith.constant 3 : index
    %c0_173 = arith.constant 0 : index
    %158 = vector.load %arg19[%c0_170, %c1_171, %c3_172, %c0_173] : memref<2x4x4x16xf32, #tpu.memory_space<vmem>>, vector<2x2x1x16xf32>
    tpu.vector_store %arg19[%c0_170, %c1_171, %c3_172, %c0_173], %157 {strides = array<i32>} : memref<2x4x4x16xf32, #tpu.memory_space<vmem>>, vector<2x2x1x16xf32>,
    %159 = vector.shape_cast %126 : vector<8x16xf32> to vector<2x2x2x16xf32>
    %c0_174 = arith.constant 0 : index
    %c1_175 = arith.constant 1 : index
    %c1_176 = arith.constant 1 : index
    %c0_177 = arith.constant 0 : index
    %160 = vector.load %arg19[%c0_174, %c1_175, %c1_176, %c0_177] : memref<2x4x4x16xf32, #tpu.memory_space<vmem>>, vector<2x2x2x16xf32>
    tpu.vector_store %arg19[%c0_174, %c1_175, %c1_176, %c0_177], %159 {strides = array<i32>} : memref<2x4x4x16xf32, #tpu.memory_space<vmem>>, vector<2x2x2x16xf32>,
    %cst_178 = arith.constant 0.000000e+00 : f32
    %161 = vector.broadcast %cst_178 : f32 to vector<8x16xf32>
    %c0_179 = arith.constant 0 : index
    %c0_180 = arith.constant 0 : index
    %c0_181 = arith.constant 0 : index
    %c0_182 = arith.constant 0 : index
    %162 = vector.load %arg19[%c0_179, %c0_180, %c0_181, %c0_182] : memref<2x4x4x16xf32, #tpu.memory_space<vmem>>, vector<2x2x2x16xf32>
    %163 = vector.shape_cast %162 : vector<2x2x2x16xf32> to vector<8x16xf32>
    %c0_183 = arith.constant 0 : index
    %c0_184 = arith.constant 0 : index
    %164 = vector.load %arg10[%c0_183, %c0_184] : memref<144x16xf32, #tpu.memory_space<vmem>>, vector<16x16xf32>
    %cst_185 = arith.constant dense<0.000000e+00> : vector<8x16xf32>
    %165 = tpu.matmul %163, %164, %cst_185 {dimension_numbers = #tpu.dot_dimension_numbers<[1], [0], [0], [1], [0, 0, 1, 1], [], []>} : vector<8x16xf32>, vector<16x16xf32>, vector<8x16xf32> -> vector<8x16xf32>
    %166 = arith.addf %161, %165 : vector<8x16xf32>
    %c0_186 = arith.constant 0 : index
    %c0_187 = arith.constant 0 : index
    %c1_188 = arith.constant 1 : index
    %c0_189 = arith.constant 0 : index
    %167 = vector.load %arg19[%c0_186, %c0_187, %c1_188, %c0_189] : memref<2x4x4x16xf32, #tpu.memory_space<vmem>>, vector<2x2x2x16xf32>
    %168 = vector.shape_cast %167 : vector<2x2x2x16xf32> to vector<8x16xf32>
    %c16 = arith.constant 16 : index
    %c0_190 = arith.constant 0 : index
    %169 = vector.load %arg10[%c16, %c0_190] : memref<144x16xf32, #tpu.memory_space<vmem>>, vector<16x16xf32>
    %cst_191 = arith.constant dense<0.000000e+00> : vector<8x16xf32>
    %170 = tpu.matmul %168, %169, %cst_191 {dimension_numbers = #tpu.dot_dimension_numbers<[1], [0], [0], [1], [0, 0, 1, 1], [], []>} : vector<8x16xf32>, vector<16x16xf32>, vector<8x16xf32> -> vector<8x16xf32>
    %171 = arith.addf %166, %170 : vector<8x16xf32>
    %c0_192 = arith.constant 0 : index
    %c0_193 = arith.constant 0 : index
    %c2_194 = arith.constant 2 : index
    %c0_195 = arith.constant 0 : index
    %172 = vector.load %arg19[%c0_192, %c0_193, %c2_194, %c0_195] : memref<2x4x4x16xf32, #tpu.memory_space<vmem>>, vector<2x2x2x16xf32>
    %173 = vector.shape_cast %172 : vector<2x2x2x16xf32> to vector<8x16xf32>
    %c32 = arith.constant 32 : index
    %c0_196 = arith.constant 0 : index
    %174 = vector.load %arg10[%c32, %c0_196] : memref<144x16xf32, #tpu.memory_space<vmem>>, vector<16x16xf32>
    %cst_197 = arith.constant dense<0.000000e+00> : vector<8x16xf32>
    %175 = tpu.matmul %173, %174, %cst_197 {dimension_numbers = #tpu.dot_dimension_numbers<[1], [0], [0], [1], [0, 0, 1, 1], [], []>} : vector<8x16xf32>, vector<16x16xf32>, vector<8x16xf32> -> vector<8x16xf32>
    %176 = arith.addf %171, %175 : vector<8x16xf32>
    %c0_198 = arith.constant 0 : index
    %c1_199 = arith.constant 1 : index
    %c0_200 = arith.constant 0 : index
    %c0_201 = arith.constant 0 : index
    %177 = vector.load %arg19[%c0_198, %c1_199, %c0_200, %c0_201] : memref<2x4x4x16xf32, #tpu.memory_space<vmem>>, vector<2x2x2x16xf32>
    %178 = vector.shape_cast %177 : vector<2x2x2x16xf32> to vector<8x16xf32>
    %c48 = arith.constant 48 : index
    %c0_202 = arith.constant 0 : index
    %179 = vector.load %arg10[%c48, %c0_202] : memref<144x16xf32, #tpu.memory_space<vmem>>, vector<16x16xf32>
    %cst_203 = arith.constant dense<0.000000e+00> : vector<8x16xf32>
    %180 = tpu.matmul %178, %179, %cst_203 {dimension_numbers = #tpu.dot_dimension_numbers<[1], [0], [0], [1], [0, 0, 1, 1], [], []>} : vector<8x16xf32>, vector<16x16xf32>, vector<8x16xf32> -> vector<8x16xf32>
    %181 = arith.addf %176, %180 : vector<8x16xf32>
    %c0_204 = arith.constant 0 : index
    %c1_205 = arith.constant 1 : index
    %c1_206 = arith.constant 1 : index
    %c0_207 = arith.constant 0 : index
    %182 = vector.load %arg19[%c0_204, %c1_205, %c1_206, %c0_207] : memref<2x4x4x16xf32, #tpu.memory_space<vmem>>, vector<2x2x2x16xf32>
    %183 = vector.shape_cast %182 : vector<2x2x2x16xf32> to vector<8x16xf32>
    %c64_208 = arith.constant 64 : index
    %c0_209 = arith.constant 0 : index
    %184 = vector.load %arg10[%c64_208, %c0_209] : memref<144x16xf32, #tpu.memory_space<vmem>>, vector<16x16xf32>
    %cst_210 = arith.constant dense<0.000000e+00> : vector<8x16xf32>
    %185 = tpu.matmul %183, %184, %cst_210 {dimension_numbers = #tpu.dot_dimension_numbers<[1], [0], [0], [1], [0, 0, 1, 1], [], []>} : vector<8x16xf32>, vector<16x16xf32>, vector<8x16xf32> -> vector<8x16xf32>
    %186 = arith.addf %181, %185 : vector<8x16xf32>
    %c0_211 = arith.constant 0 : index
    %c1_212 = arith.constant 1 : index
    %c2_213 = arith.constant 2 : index
    %c0_214 = arith.constant 0 : index
    %187 = vector.load %arg19[%c0_211, %c1_212, %c2_213, %c0_214] : memref<2x4x4x16xf32, #tpu.memory_space<vmem>>, vector<2x2x2x16xf32>
    %188 = vector.shape_cast %187 : vector<2x2x2x16xf32> to vector<8x16xf32>
    %c80 = arith.constant 80 : index
    %c0_215 = arith.constant 0 : index
    %189 = vector.load %arg10[%c80, %c0_215] : memref<144x16xf32, #tpu.memory_space<vmem>>, vector<16x16xf32>
    %cst_216 = arith.constant dense<0.000000e+00> : vector<8x16xf32>
    %190 = tpu.matmul %188, %189, %cst_216 {dimension_numbers = #tpu.dot_dimension_numbers<[1], [0], [0], [1], [0, 0, 1, 1], [], []>} : vector<8x16xf32>, vector<16x16xf32>, vector<8x16xf32> -> vector<8x16xf32>
    %191 = arith.addf %186, %190 : vector<8x16xf32>
    %c0_217 = arith.constant 0 : index
    %c2_218 = arith.constant 2 : index
    %c0_219 = arith.constant 0 : index
    %c0_220 = arith.constant 0 : index
    %192 = vector.load %arg19[%c0_217, %c2_218, %c0_219, %c0_220] : memref<2x4x4x16xf32, #tpu.memory_space<vmem>>, vector<2x2x2x16xf32>
    %193 = vector.shape_cast %192 : vector<2x2x2x16xf32> to vector<8x16xf32>
    %c96 = arith.constant 96 : index
    %c0_221 = arith.constant 0 : index
    %194 = vector.load %arg10[%c96, %c0_221] : memref<144x16xf32, #tpu.memory_space<vmem>>, vector<16x16xf32>
    %cst_222 = arith.constant dense<0.000000e+00> : vector<8x16xf32>
    %195 = tpu.matmul %193, %194, %cst_222 {dimension_numbers = #tpu.dot_dimension_numbers<[1], [0], [0], [1], [0, 0, 1, 1], [], []>} : vector<8x16xf32>, vector<16x16xf32>, vector<8x16xf32> -> vector<8x16xf32>
    %196 = arith.addf %191, %195 : vector<8x16xf32>
    %c0_223 = arith.constant 0 : index
    %c2_224 = arith.constant 2 : index
    %c1_225 = arith.constant 1 : index
    %c0_226 = arith.constant 0 : index
    %197 = vector.load %arg19[%c0_223, %c2_224, %c1_225, %c0_226] : memref<2x4x4x16xf32, #tpu.memory_space<vmem>>, vector<2x2x2x16xf32>
    %198 = vector.shape_cast %197 : vector<2x2x2x16xf32> to vector<8x16xf32>
    %c112 = arith.constant 112 : index
    %c0_227 = arith.constant 0 : index
    %199 = vector.load %arg10[%c112, %c0_227] : memref<144x16xf32, #tpu.memory_space<vmem>>, vector<16x16xf32>
    %cst_228 = arith.constant dense<0.000000e+00> : vector<8x16xf32>
    %200 = tpu.matmul %198, %199, %cst_228 {dimension_numbers = #tpu.dot_dimension_numbers<[1], [0], [0], [1], [0, 0, 1, 1], [], []>} : vector<8x16xf32>, vector<16x16xf32>, vector<8x16xf32> -> vector<8x16xf32>
    %201 = arith.addf %196, %200 : vector<8x16xf32>
    %c0_229 = arith.constant 0 : index
    %c2_230 = arith.constant 2 : index
    %c2_231 = arith.constant 2 : index
    %c0_232 = arith.constant 0 : index
    %202 = vector.load %arg19[%c0_229, %c2_230, %c2_231, %c0_232] : memref<2x4x4x16xf32, #tpu.memory_space<vmem>>, vector<2x2x2x16xf32>
    %203 = vector.shape_cast %202 : vector<2x2x2x16xf32> to vector<8x16xf32>
    %c128_233 = arith.constant 128 : index
    %c0_234 = arith.constant 0 : index
    %204 = vector.load %arg10[%c128_233, %c0_234] : memref<144x16xf32, #tpu.memory_space<vmem>>, vector<16x16xf32>
    %cst_235 = arith.constant dense<0.000000e+00> : vector<8x16xf32>
    %205 = tpu.matmul %203, %204, %cst_235 {dimension_numbers = #tpu.dot_dimension_numbers<[1], [0], [0], [1], [0, 0, 1, 1], [], []>} : vector<8x16xf32>, vector<16x16xf32>, vector<8x16xf32> -> vector<8x16xf32>
    %206 = arith.addf %201, %205 : vector<8x16xf32>
    %c0_236 = arith.constant 0 : index
    %c0_237 = arith.constant 0 : index
    %207 = vector.load %arg11[%c0_236, %c0_237] : memref<1x16xf32, #tpu.memory_space<vmem>>, vector<1x16xf32>
    %c0_238 = arith.constant 0 : index
    %c0_239 = arith.constant 0 : index
    %208 = vector.load %arg12[%c0_238, %c0_239] : memref<1x16xf32, #tpu.memory_space<vmem>>, vector<1x16xf32>
    %cst_240 = arith.constant dense<0.000000e+00> : vector<16xf32>
    %209 = vector.multi_reduction <add>, %206, %cst_240 [0] : vector<8x16xf32> to vector<16xf32>
    %210 = vector.shape_cast %209 : vector<16xf32> to vector<1x16xf32>
    %cst_241 = arith.constant 1.250000e-01 : f32
    %211 = vector.broadcast %cst_241 : f32 to vector<1x16xf32>
    %212 = arith.mulf %210, %211 : vector<1x16xf32>
    %213 = vector.broadcast %212 : vector<1x16xf32> to vector<8x16xf32>
    %214 = arith.subf %206, %213 : vector<8x16xf32>
    %215 = arith.mulf %214, %214 : vector<8x16xf32>
    %cst_242 = arith.constant dense<0.000000e+00> : vector<16xf32>
    %216 = vector.multi_reduction <add>, %215, %cst_242 [0] : vector<8x16xf32> to vector<16xf32>
    %217 = vector.shape_cast %216 : vector<16xf32> to vector<1x16xf32>
    %cst_243 = arith.constant 1.250000e-01 : f32
    %218 = vector.broadcast %cst_243 : f32 to vector<1x16xf32>
    %219 = arith.mulf %217, %218 : vector<1x16xf32>
    %cst_244 = arith.constant 9.99999974E-6 : f32
    %220 = vector.broadcast %cst_244 : f32 to vector<1x16xf32>
    %221 = arith.addf %219, %220 : vector<1x16xf32>
    %222 = math.rsqrt %221 : vector<1x16xf32>
    %223 = vector.broadcast %222 : vector<1x16xf32> to vector<8x16xf32>
    %224 = arith.mulf %214, %223 : vector<8x16xf32>
    %225 = vector.broadcast %207 : vector<1x16xf32> to vector<8x16xf32>
    %226 = arith.mulf %224, %225 : vector<8x16xf32>
    %227 = vector.broadcast %208 : vector<1x16xf32> to vector<8x16xf32>
    %228 = arith.addf %226, %227 : vector<8x16xf32>
    %229 = arith.addf %228, %150 : vector<8x16xf32>
    %cst_245 = arith.constant 0.000000e+00 : f32
    %230 = vector.broadcast %cst_245 : f32 to vector<8x16xf32>
    %231 = arith.maximumf %229, %230 : vector<8x16xf32>
    %232 = vector.shape_cast %231 : vector<8x16xf32> to vector<2x4x16xf32>
    %cst_246 = arith.constant dense<0.000000e+00> : vector<2x16xf32>
    %233 = vector.multi_reduction <add>, %232, %cst_246 [1] : vector<2x4x16xf32> to vector<2x16xf32>
    %cst_247 = arith.constant 4.000000e+00 : f32
    %234 = vector.broadcast %cst_247 : f32 to vector<2x16xf32>
    %235 = arith.divf %233, %234 : vector<2x16xf32>
    %c0_248 = arith.constant 0 : index
    %c0_249 = arith.constant 0 : index
    %236 = vector.load %arg13[%c0_248, %c0_249] : memref<16x10xf32, #tpu.memory_space<vmem>>, vector<16x10xf32>
    %cst_250 = arith.constant dense<0.000000e+00> : vector<2x10xf32>
    %237 = tpu.matmul %235, %236, %cst_250 {dimension_numbers = #tpu.dot_dimension_numbers<[1], [0], [0], [1], [0, 0, 1, 1], [], []>} : vector<2x16xf32>, vector<16x10xf32>, vector<2x10xf32> -> vector<2x10xf32>
    %c0_251 = arith.constant 0 : index
    %c0_252 = arith.constant 0 : index
    %238 = vector.load %arg14[%c0_251, %c0_252] : memref<1x10xf32, #tpu.memory_space<vmem>>, vector<1x10xf32>
    %239 = vector.broadcast %238 : vector<1x10xf32> to vector<2x10xf32>
    %240 = arith.addf %237, %239 : vector<2x10xf32>
    %c0_253 = arith.constant 0 : index
    %c0_254 = arith.constant 0 : index
    %241 = vector.load %arg15[%c0_253, %c0_254] : memref<2x10xf32, #tpu.memory_space<vmem>>, vector<2x10xf32>
    tpu.vector_store %arg15[%c0_253, %c0_254], %240 {strides = array<i32>} : memref<2x10xf32, #tpu.memory_space<vmem>>, vector<2x10xf32>,
    return
  }
}

</mosaic_0001>

<llo_original>
// kernel: resnet18_client_forward.1
$region0: #{resnet18_client_forward.1}
  #allocation0 [shape = 'u32[]', space=smem, size = 0x4, offset = 0x4, fixed_abs, tag = 'smem constant byte address 0x4 - core index']
  #allocation1 [shape = 'u32[144,128]{1,0:T(1,128)}', space=vmem, size = 0x12000, scoped, tag = 'internal scratch']
  #allocation2 [shape = 'f32[2,9,9,64]{3,2,1,0:T(8,128)}', space=vmem, size = 0x24000, scoped, tag = 'scratch operand']
  #allocation3 [shape = 'f32[2,5,5,64]{3,2,1,0:T(8,128)}', space=vmem, size = 0xa000, scoped, tag = 'scratch operand']
  #allocation4 [shape = 'f32[2,4,4,16]{3,2,1,0:T(4,128)}', space=vmem, size = 0x4000, scoped, tag = 'scratch operand']
  %s0 = inlined_call_operand.vmem [shape: f32[128,147], index: 0, kind: input, shape index: {}]
  %s1 = inlined_call_operand.vmem [shape: f32[147,64], index: 1, kind: input, shape index: {}]
  %s2 = inlined_call_operand.vmem [shape: f32[1,64], index: 2, kind: input, shape index: {}]
  %s3 = inlined_call_operand.vmem [shape: f32[1,64], index: 3, kind: input, shape index: {}]
  %s4 = inlined_call_operand.vmem [shape: f32[576,16], index: 4, kind: input, shape index: {}]
  %s5 = inlined_call_operand.vmem [shape: f32[1,16], index: 5, kind: input, shape index: {}]
  %s6 = inlined_call_operand.vmem [shape: f32[1,16], index: 6, kind: input, shape index: {}]
  %s7 = inlined_call_operand.vmem [shape: f32[64,16], index: 7, kind: input, shape index: {}]
  %s8 = inlined_call_operand.vmem [shape: f32[1,16], index: 8, kind: input, shape index: {}]
  %s9 = inlined_call_operand.vmem [shape: f32[1,16], index: 9, kind: input, shape index: {}]
  %s10 = inlined_call_operand.vmem [shape: f32[144,16], index: 10, kind: input, shape index: {}]
  %s11 = inlined_call_operand.vmem [shape: f32[1,16], index: 11, kind: input, shape index: {}]
  %s12 = inlined_call_operand.vmem [shape: f32[1,16], index: 12, kind: input, shape index: {}]
  %s13 = inlined_call_operand.vmem [shape: f32[16,10], index: 13, kind: input, shape index: {}]
  %s14 = inlined_call_operand.vmem [shape: f32[1,10], index: 14, kind: input, shape index: {}]
  %s15 = inlined_call_operand.hbm [shape: f32[2,10], index: 15, kind: output, shape index: {0}]
  %s16 = inlined_call_operand.vmem [shape: f32[8,256], index: 16, kind: output, shape index: {1}]
  %17 = xla_tuple %s15, %s16
  %s18 = sld [smem:[#allocation0]]
  $region78: #{resnet18_client_forward.1} parent=0
    _
  %s20 = ssub.s32 1, %s18
  %s21 = scalar_select 0, %s20, %s18
  $region1: #{resnet18_client_forward.1} parent=0
    #allocation5 [shape = 'u8[1024]{0}', space=vmem, size = 0x400, scoped, tag = 'output window, operand 0, single buffered']
    #allocation6 [shape = 's32[1]{0}', space=sflag, size = 0x4, scoped, tag = 'scoped memory for resnet18_client_forward.1']
    %22 = vsyncpa [#allocation6], 0
    // Predicated region
    $region2: #{resnet18_client_forward.1} parent=1 // pred_check
      _
    $region3: #{resnet18_client_forward.1} parent=1 // pred_check_branch
      %24 = sbr.rel (0) target = $region5
    $region4: #{resnet18_client_forward.1} parent=1 // pred_region
      _
    $region5: #{resnet18_client_forward.1} parent=1 // pred_fallthru
      _
    // Predicated region
    $region6: #{resnet18_client_forward.1} parent=1 // pred_check
      _
    $region7: #{resnet18_client_forward.1} parent=1 // pred_check_branch
      %26 = sbr.rel (0) target = $region9
    $region8: #{resnet18_client_forward.1} parent=1 // pred_region
      _
    $region9: #{resnet18_client_forward.1} parent=1 // pred_fallthru
      _
    // Predicated region
    $region10: #{resnet18_client_forward.1} parent=1 // pred_check
      _
    $region11: #{resnet18_client_forward.1} parent=1 // pred_check_branch
      %28 = sbr.rel (0) target = $region13
    $region12: #{resnet18_client_forward.1} parent=1 // pred_region
      _
    $region13: #{resnet18_client_forward.1} parent=1 // pred_fallthru
      _
    // Predicated region
    $region14: #{resnet18_client_forward.1} parent=1 // pred_check
      _
    $region15: #{resnet18_client_forward.1} parent=1 // pred_check_branch
      %30 = sbr.rel (0) target = $region17
    $region16: #{resnet18_client_forward.1} parent=1 // pred_region
      _
    $region17: #{resnet18_client_forward.1} parent=1 // pred_fallthru
      _
    // Predicated region
    $region18: #{resnet18_client_forward.1} parent=1 // pred_check
      _
    $region19: #{resnet18_client_forward.1} parent=1 // pred_check_branch
      %32 = sbr.rel (0) target = $region21
    $region20: #{resnet18_client_forward.1} parent=1 // pred_region
      _
    $region21: #{resnet18_client_forward.1} parent=1 // pred_fallthru
      _
    // Predicated region
    $region22: #{resnet18_client_forward.1} parent=1 // pred_check
      _
    $region23: #{resnet18_client_forward.1} parent=1 // pred_check_branch
      %34 = sbr.rel (0) target = $region25
    $region24: #{resnet18_client_forward.1} parent=1 // pred_region
      _
    $region25: #{resnet18_client_forward.1} parent=1 // pred_fallthru
      _
    // Predicated region
    $region26: #{resnet18_client_forward.1} parent=1 // pred_check
      _
    $region27: #{resnet18_client_forward.1} parent=1 // pred_check_branch
      %36 = sbr.rel (0) target = $region29
    $region28: #{resnet18_client_forward.1} parent=1 // pred_region
      _
    $region29: #{resnet18_client_forward.1} parent=1 // pred_fallthru
      _
    // Predicated region
    $region30: #{resnet18_client_forward.1} parent=1 // pred_check
      _
    $region31: #{resnet18_client_forward.1} parent=1 // pred_check_branch
      %38 = sbr.rel (0) target = $region33
    $region32: #{resnet18_client_forward.1} parent=1 // pred_region
      _
    $region33: #{resnet18_client_forward.1} parent=1 // pred_fallthru
      _
    // Predicated region
    $region34: #{resnet18_client_forward.1} parent=1 // pred_check
      _
    $region35: #{resnet18_client_forward.1} parent=1 // pred_check_branch
      %40 = sbr.rel (0) target = $region37
    $region36: #{resnet18_client_forward.1} parent=1 // pred_region
      _
    $region37: #{resnet18_client_forward.1} parent=1 // pred_fallthru
      _
    // Predicated region
    $region38: #{resnet18_client_forward.1} parent=1 // pred_check
      _
    $region39: #{resnet18_client_forward.1} parent=1 // pred_check_branch
      %42 = sbr.rel (0) target = $region41
    $region40: #{resnet18_client_forward.1} parent=1 // pred_region
      _
    $region41: #{resnet18_client_forward.1} parent=1 // pred_fallthru
      _
    // Predicated region
    $region42: #{resnet18_client_forward.1} parent=1 // pred_check
      _
    $region43: #{resnet18_client_forward.1} parent=1 // pred_check_branch
      %44 = sbr.rel (0) target = $region45
    $region44: #{resnet18_client_forward.1} parent=1 // pred_region
      _
    $region45: #{resnet18_client_forward.1} parent=1 // pred_fallthru
      _
    // Predicated region
    $region46: #{resnet18_client_forward.1} parent=1 // pred_check
      _
    $region47: #{resnet18_client_forward.1} parent=1 // pred_check_branch
      %46 = sbr.rel (0) target = $region49
    $region48: #{resnet18_client_forward.1} parent=1 // pred_region
      _
    $region49: #{resnet18_client_forward.1} parent=1 // pred_fallthru
      _
    // Predicated region
    $region50: #{resnet18_client_forward.1} parent=1 // pred_check
      _
    $region51: #{resnet18_client_forward.1} parent=1 // pred_check_branch
      %48 = sbr.rel (0) target = $region53
    $region52: #{resnet18_client_forward.1} parent=1 // pred_region
      _
    $region53: #{resnet18_client_forward.1} parent=1 // pred_fallthru
      _
    // Predicated region
    $region54: #{resnet18_client_forward.1} parent=1 // pred_check
      _
    $region55: #{resnet18_client_forward.1} parent=1 // pred_check_branch
      %50 = sbr.rel (0) target = $region57
    $region56: #{resnet18_client_forward.1} parent=1 // pred_region
      _
    $region57: #{resnet18_client_forward.1} parent=1 // pred_fallthru
      _
    // Predicated region
    $region58: #{resnet18_client_forward.1} parent=1 // pred_check
      _
    $region59: #{resnet18_client_forward.1} parent=1 // pred_check_branch
      %52 = sbr.rel (0) target = $region61
    $region60: #{resnet18_client_forward.1} parent=1 // pred_region
      _
    $region61: #{resnet18_client_forward.1} parent=1 // pred_fallthru
      _
    %v53 = vld [vmem:[%s0] sm:$0xff]
    %v54 = vld [vmem:[%s0 + $0x8] sm:$0xff]
    %v55 = vld [vmem:[%s0 + $0x10] sm:$0xff]
    %v56 = vld [vmem:[%s0 + $0x18] sm:$0xff]
    %v57 = vld [vmem:[%s0 + $0x20] sm:$0xff]
    %v58 = vld [vmem:[%s0 + $0x28] sm:$0xff]
    %v59 = vld [vmem:[%s0 + $0x30] sm:$0xff]
    %v60 = vld [vmem:[%s0 + $0x38] sm:$0xff]
    %v61 = vld [vmem:[%s0 + $0x40] sm:$0xff]
    %v62 = vld [vmem:[%s0 + $0x48] sm:$0xff]
    %v63 = vld [vmem:[%s0 + $0x50] sm:$0xff]
    %v64 = vld [vmem:[%s0 + $0x58] sm:$0xff]
    %v65 = vld [vmem:[%s0 + $0x60] sm:$0xff]
    %v66 = vld [vmem:[%s0 + $0x68] sm:$0xff]
    %v67 = vld [vmem:[%s0 + $0x70] sm:$0xff]
    %v68 = vld [vmem:[%s0 + $0x78] sm:$0xff]
    %v69 = vld [vmem:[%s0 + $0x80] sm:$0xff]
    %v70 = vld [vmem:[%s0 + $0x88] sm:$0xff]
    %v71 = vld [vmem:[%s0 + $0x90] sm:$0xff]
    %v72 = vld [vmem:[%s0 + $0x98] sm:$0xff]
    %v73 = vld [vmem:[%s0 + $0xa0] sm:$0xff]
    %v74 = vld [vmem:[%s0 + $0xa8] sm:$0xff]
    %v75 = vld [vmem:[%s0 + $0xb0] sm:$0xff]
    %v76 = vld [vmem:[%s0 + $0xb8] sm:$0xff]
    %v77 = vld [vmem:[%s0 + $0xc0] sm:$0xff]
    %v78 = vld [vmem:[%s0 + $0xc8] sm:$0xff]
    %v79 = vld [vmem:[%s0 + $0xd0] sm:$0xff]
    %v80 = vld [vmem:[%s0 + $0xd8] sm:$0xff]
    %v81 = vld [vmem:[%s0 + $0xe0] sm:$0xff]
    %v82 = vld [vmem:[%s0 + $0xe8] sm:$0xff]
    %v83 = vld [vmem:[%s0 + $0xf0] sm:$0xff]
    %v84 = vld [vmem:[%s0 + $0xf8] sm:$0xff]
    %v85 = vld [vmem:[%s1] sm:$0xff]
    %v86 = vld [vmem:[%s1 + $0x8] sm:$0xff]
    %v87 = vld [vmem:[%s1 + $0x10] sm:$0xff]
    %v88 = vld [vmem:[%s1 + $0x18] sm:$0xff]
    %v89 = vld [vmem:[%s1 + $0x20] sm:$0xff]
    %v90 = vld [vmem:[%s1 + $0x28] sm:$0xff]
    %v91 = vld [vmem:[%s1 + $0x30] sm:$0xff]
    %v92 = vld [vmem:[%s1 + $0x38] sm:$0xff]
    %v93 = vld [vmem:[%s1 + $0x40] sm:$0xff]
    %v94 = vld [vmem:[%s1 + $0x48] sm:$0xff]
    %v95 = vld [vmem:[%s1 + $0x50] sm:$0xff]
    %v96 = vld [vmem:[%s1 + $0x58] sm:$0xff]
    %v97 = vld [vmem:[%s1 + $0x60] sm:$0xff]
    %v98 = vld [vmem:[%s1 + $0x68] sm:$0xff]
    %v99 = vld [vmem:[%s1 + $0x70] sm:$0xff]
    %v100 = vld [vmem:[%s1 + $0x78] sm:$0xff]
    %v101 = vld [vmem:[%s1 + $0x80] sm:$0xff]
    %v102 = vld [vmem:[%s1 + $0x88] sm:$0xff]
    %v103 = vld [vmem:[%s1 + $0x90] sm:$0x7]
    %vm104 = vcmask 154624
    %v106 = vsel %vm104, %v54, 0
    %v109 = vsel %vm104, %v56, 0
    %v112 = vsel %vm104, %v58, 0
    %v115 = vsel %vm104, %v60, 0
    %v118 = vsel %vm104, %v62, 0
    %v121 = vsel %vm104, %v64, 0
    %v124 = vsel %vm104, %v66, 0
    %v127 = vsel %vm104, %v68, 0
    %v130 = vsel %vm104, %v70, 0
    %v133 = vsel %vm104, %v72, 0
    %v136 = vsel %vm104, %v74, 0
    %v139 = vsel %vm104, %v76, 0
    %v142 = vsel %vm104, %v78, 0
    %v145 = vsel %vm104, %v80, 0
    %v148 = vsel %vm104, %v82, 0
    %v151 = vsel %vm104, %v84, 0
    %vm153 = vcmask 1042432
    %v155 = vsel %vm153, %v103, 0
    %157 = vmatprep.subr.mxu0 0.0
    %158 = vmatpush1.msra.mxu0 %v100
    %159 = vmatprep.subr.mxu0 0.0
    %160 = vmatpush1.msra.mxu0 %v99
    %161 = vmatprep.subr.mxu0 0.0
    %162 = vmatpush1.msra.mxu0 %v98
    %163 = vmatprep.subr.mxu0 0.0
    %164 = vmatpush1.msra.mxu0 %v97
    %165 = vmatprep.subr.mxu0 0.0
    %166 = vmatpush1.msra.mxu0 %v96
    %167 = vmatprep.subr.mxu0 0.0
    %168 = vmatpush1.msra.mxu0 %v95
    %169 = vmatprep.subr.mxu0 0.0
    %170 = vmatpush1.msra.mxu0 %v94
    %171 = vmatprep.subr.mxu0 0.0
    %172 = vmatpush1.msra.mxu0 %v93
    %173 = vmatprep.subr.mxu0 0.0
    %174 = vmatpush1.msra.mxu0 %v92
    %175 = vmatprep.subr.mxu0 0.0
    %176 = vmatpush1.msra.mxu0 %v91
    %177 = vmatprep.subr.mxu0 0.0
    %178 = vmatpush1.msra.mxu0 %v90
    %179 = vmatprep.subr.mxu0 0.0
    %180 = vmatpush1.msra.mxu0 %v89
    %181 = vmatprep.subr.mxu0 0.0
    %182 = vmatpush1.msra.mxu0 %v88
    %183 = vmatprep.subr.mxu0 0.0
    %184 = vmatpush1.msra.mxu0 %v87
    %185 = vmatprep.subr.mxu0 0.0
    %186 = vmatpush1.msra.mxu0 %v86
    %187 = vmatprep.subr.mxu0 0.0
    %188 = vmatpush1.msra.mxu0 %v85
    %189 = vmatprep.subr.mxu0 0.0
    %190 = vmatpush2.msra.mxu0 0.0
    %191 = vmatprep.subr.mxu0 0.0
    %192 = vmatpush2.msra.mxu0 0.0
    %193 = vmatprep.subr.mxu0 0.0
    %194 = vmatpush2.msra.mxu0 0.0
    %195 = vmatprep.subr.mxu0 0.0
    %196 = vmatpush2.msra.mxu0 0.0
    %197 = vmatprep.subr.mxu0 0.0
    %198 = vmatpush2.msra.mxu0 0.0
    %199 = vmatprep.subr.mxu0 0.0
    %200 = vmatpush2.msra.mxu0 0.0
    %201 = vmatprep.subr.mxu0 0.0
    %202 = vmatpush2.msra.mxu0 0.0
    %203 = vmatprep.subr.mxu0 0.0
    %204 = vmatpush2.msra.mxu0 0.0
    %205 = vmatprep.subr.mxu0 0.0
    %206 = vmatpush2.msra.mxu0 0.0
    %207 = vmatprep.subr.mxu0 0.0
    %208 = vmatpush2.msra.mxu0 0.0
    %209 = vmatprep.subr.mxu0 0.0
    %210 = vmatpush2.msra.mxu0 0.0
    %211 = vmatprep.subr.mxu0 0.0
    %212 = vmatpush2.msra.mxu0 0.0
    %213 = vmatprep.subr.mxu0 0.0
    %214 = vmatpush2.msra.mxu0 0.0
    %215 = vmatprep.subr.mxu0 0.0
    %216 = vmatpush2.msra.mxu0 %v155
    %217 = vmatprep.subr.mxu0 0.0
    %218 = vmatpush2.msra.mxu0 %v102
    %219 = vmatprep.subr.mxu0 0.0
    %220 = vmatpush2.msra.mxu0 %v101
    %221 = vmatprep.mubr.f32.mxu0 %v106
    %222 = vmatmul.mubr.f32.gmra.mxu0 %v53
    %v223 = vpop.f32.mrf.mxu0
    %v224 = vadd.f32 0.0, %v223
    %v225 = vpop.f32.mrf.mxu0
    %226 = vmatprep.mubr.f32.mxu0 %v109
    %227 = vmatmul.mubr.f32.gmra.mxu0 %v55
    %v228 = vpop.f32.mrf.mxu0
    %v229 = vadd.f32 0.0, %v228
    %v230 = vpop.f32.mrf.mxu0
    %231 = vmatprep.mubr.f32.mxu0 %v112
    %232 = vmatmul.mubr.f32.gmra.mxu0 %v57
    %v233 = vpop.f32.mrf.mxu0
    %v234 = vadd.f32 0.0, %v233
    %v235 = vpop.f32.mrf.mxu0
    %236 = vmatprep.mubr.f32.mxu0 %v115
    %237 = vmatmul.mubr.f32.gmra.mxu0 %v59
    %v238 = vpop.f32.mrf.mxu0
    %v239 = vadd.f32 0.0, %v238
    %v240 = vpop.f32.mrf.mxu0
    %241 = vmatprep.mubr.f32.mxu0 %v118
    %242 = vmatmul.mubr.f32.gmra.mxu0 %v61
    %v243 = vpop.f32.mrf.mxu0
    %v244 = vadd.f32 0.0, %v243
    %v245 = vpop.f32.mrf.mxu0
    %246 = vmatprep.mubr.f32.mxu0 %v121
    %247 = vmatmul.mubr.f32.gmra.mxu0 %v63
    %v248 = vpop.f32.mrf.mxu0
    %v249 = vadd.f32 0.0, %v248
    %v250 = vpop.f32.mrf.mxu0
    %251 = vmatprep.mubr.f32.mxu0 %v124
    %252 = vmatmul.mubr.f32.gmra.mxu0 %v65
    %v253 = vpop.f32.mrf.mxu0
    %v254 = vadd.f32 0.0, %v253
    %v255 = vpop.f32.mrf.mxu0
    %256 = vmatprep.mubr.f32.mxu0 %v127
    %257 = vmatmul.mubr.f32.gmra.mxu0 %v67
    %v258 = vpop.f32.mrf.mxu0
    %v259 = vadd.f32 0.0, %v258
    %v260 = vpop.f32.mrf.mxu0
    %261 = vmatprep.mubr.f32.mxu0 %v130
    %262 = vmatmul.mubr.f32.gmra.mxu0 %v69
    %v263 = vpop.f32.mrf.mxu0
    %v264 = vadd.f32 0.0, %v263
    %v265 = vpop.f32.mrf.mxu0
    %266 = vmatprep.mubr.f32.mxu0 %v133
    %267 = vmatmul.mubr.f32.gmra.mxu0 %v71
    %v268 = vpop.f32.mrf.mxu0
    %v269 = vadd.f32 0.0, %v268
    %v270 = vpop.f32.mrf.mxu0
    %271 = vmatprep.mubr.f32.mxu0 %v136
    %272 = vmatmul.mubr.f32.gmra.mxu0 %v73
    %v273 = vpop.f32.mrf.mxu0
    %v274 = vadd.f32 0.0, %v273
    %v275 = vpop.f32.mrf.mxu0
    %276 = vmatprep.mubr.f32.mxu0 %v139
    %277 = vmatmul.mubr.f32.gmra.mxu0 %v75
    %v278 = vpop.f32.mrf.mxu0
    %v279 = vadd.f32 0.0, %v278
    %v280 = vpop.f32.mrf.mxu0
    %281 = vmatprep.mubr.f32.mxu0 %v142
    %282 = vmatmul.mubr.f32.gmra.mxu0 %v77
    %v283 = vpop.f32.mrf.mxu0
    %v284 = vadd.f32 0.0, %v283
    %v285 = vpop.f32.mrf.mxu0
    %286 = vmatprep.mubr.f32.mxu0 %v145
    %287 = vmatmul.mubr.f32.gmra.mxu0 %v79
    %v288 = vpop.f32.mrf.mxu0
    %v289 = vadd.f32 0.0, %v288
    %v290 = vpop.f32.mrf.mxu0
    %291 = vmatprep.mubr.f32.mxu0 %v148
    %292 = vmatmul.mubr.f32.gmra.mxu0 %v81
    %v293 = vpop.f32.mrf.mxu0
    %v294 = vadd.f32 0.0, %v293
    %v295 = vpop.f32.mrf.mxu0
    %296 = vmatprep.mubr.f32.mxu0 %v151
    %297 = vmatmul.mubr.f32.gmra.mxu0 %v83
    %v298 = vpop.f32.mrf.mxu0
    %v299 = vadd.f32 0.0, %v298
    %v300 = vpop.f32.mrf.mxu0
    %301 = vdwg.mxu0
    %v302 = vld [vmem:[%s2] sm:$0x1]
    %v303 = vld [vmem:[%s3] sm:$0x1]
    %vm304 = vcmask 523264
    %v305 = vsel %vm304, %v224, 0.0
    %v306 = vsel %vm304, %v229, 0.0
    %v307 = vadd.f32 %v305, %v306
    %v308 = vsel %vm304, %v234, 0.0
    %v309 = vadd.f32 %v307, %v308
    %v310 = vsel %vm304, %v239, 0.0
    %v311 = vadd.f32 %v309, %v310
    %v312 = vsel %vm304, %v244, 0.0
    %v313 = vadd.f32 %v311, %v312
    %v314 = vsel %vm304, %v249, 0.0
    %v315 = vadd.f32 %v313, %v314
    %v316 = vsel %vm304, %v254, 0.0
    %v317 = vadd.f32 %v315, %v316
    %v318 = vsel %vm304, %v259, 0.0
    %v319 = vadd.f32 %v317, %v318
    %v320 = vsel %vm304, %v264, 0.0
    %v321 = vadd.f32 %v319, %v320
    %v322 = vsel %vm304, %v269, 0.0
    %v323 = vadd.f32 %v321, %v322
    %v324 = vsel %vm304, %v274, 0.0
    %v325 = vadd.f32 %v323, %v324
    %v326 = vsel %vm304, %v279, 0.0
    %v327 = vadd.f32 %v325, %v326
    %v328 = vsel %vm304, %v284, 0.0
    %v329 = vadd.f32 %v327, %v328
    %v330 = vsel %vm304, %v289, 0.0
    %v331 = vadd.f32 %v329, %v330
    %v332 = vsel %vm304, %v294, 0.0
    %v333 = vadd.f32 %v331, %v332
    %v334 = vsel %vm304, %v299, 0.0
    %v335 = vadd.f32 %v333, %v334
    %v336 = vrot.slane %v335, 4
    %v337 = vadd.f32 %v335, %v336
    %v338 = vrot.slane %v337, 2
    %v339 = vadd.f32 %v337, %v338
    %v340 = vrot.slane %v339, 1
    %v341 = vadd.f32 %v339, %v340
    %v342 = vmul.f32 %v341, 0.0078125
    %v343 = vsub.f32 %v224, %v342
    %v344 = vsub.f32 %v229, %v342
    %v345 = vsub.f32 %v234, %v342
    %v346 = vsub.f32 %v239, %v342
    %v347 = vsub.f32 %v244, %v342
    %v348 = vsub.f32 %v249, %v342
    %v349 = vsub.f32 %v254, %v342
    %v350 = vsub.f32 %v259, %v342
    %v351 = vsub.f32 %v264, %v342
    %v352 = vsub.f32 %v269, %v342
    %v353 = vsub.f32 %v274, %v342
    %v354 = vsub.f32 %v279, %v342
    %v355 = vsub.f32 %v284, %v342
    %v356 = vsub.f32 %v289, %v342
    %v357 = vsub.f32 %v294, %v342
    %v358 = vsub.f32 %v299, %v342
    %v359 = vmul.f32 %v343, %v343
    %v360 = vmul.f32 %v344, %v344
    %v361 = vmul.f32 %v345, %v345
    %v362 = vmul.f32 %v346, %v346
    %v363 = vmul.f32 %v347, %v347
    %v364 = vmul.f32 %v348, %v348
    %v365 = vmul.f32 %v349, %v349
    %v366 = vmul.f32 %v350, %v350
    %v367 = vmul.f32 %v351, %v351
    %v368 = vmul.f32 %v352, %v352
    %v369 = vmul.f32 %v353, %v353
    %v370 = vmul.f32 %v354, %v354
    %v371 = vmul.f32 %v355, %v355
    %v372 = vmul.f32 %v356, %v356
    %v373 = vmul.f32 %v357, %v357
    %v374 = vmul.f32 %v358, %v358
    %v375 = vsel %vm304, %v359, 0.0
    %v376 = vsel %vm304, %v360, 0.0
    %v377 = vadd.f32 %v375, %v376
    %v378 = vsel %vm304, %v361, 0.0
    %v379 = vadd.f32 %v377, %v378
    %v380 = vsel %vm304, %v362, 0.0
    %v381 = vadd.f32 %v379, %v380
    %v382 = vsel %vm304, %v363, 0.0
    %v383 = vadd.f32 %v381, %v382
    %v384 = vsel %vm304, %v364, 0.0
    %v385 = vadd.f32 %v383, %v384
    %v386 = vsel %vm304, %v365, 0.0
    %v387 = vadd.f32 %v385, %v386
    %v388 = vsel %vm304, %v366, 0.0
    %v389 = vadd.f32 %v387, %v388
    %v390 = vsel %vm304, %v367, 0.0
    %v391 = vadd.f32 %v389, %v390
    %v392 = vsel %vm304, %v368, 0.0
    %v393 = vadd.f32 %v391, %v392
    %v394 = vsel %vm304, %v369, 0.0
    %v395 = vadd.f32 %v393, %v394
    %v396 = vsel %vm304, %v370, 0.0
    %v397 = vadd.f32 %v395, %v396
    %v398 = vsel %vm304, %v371, 0.0
    %v399 = vadd.f32 %v397, %v398
    %v400 = vsel %vm304, %v372, 0.0
    %v401 = vadd.f32 %v399, %v400
    %v402 = vsel %vm304, %v373, 0.0
    %v403 = vadd.f32 %v401, %v402
    %v404 = vsel %vm304, %v374, 0.0
    %v405 = vadd.f32 %v403, %v404
    %v406 = vrot.slane %v405, 4
    %v407 = vadd.f32 %v405, %v406
    %v408 = vrot.slane %v407, 2
    %v409 = vadd.f32 %v407, %v408
    %v410 = vrot.slane %v409, 1
    %v411 = vadd.f32 %v409, %v410
    %v412 = vmul.f32 %v411, 0.0078125
    %v413 = vadd.f32 %v412, 1e-05
    %v414 = vrsqrt.pop %v413
    %v415 = vmul.f32 %v343, %v414
    %v416 = vmul.f32 %v344, %v414
    %v417 = vmul.f32 %v345, %v414
    %v418 = vmul.f32 %v346, %v414
    %v419 = vmul.f32 %v347, %v414
    %v420 = vmul.f32 %v348, %v414
    %v421 = vmul.f32 %v349, %v414
    %v422 = vmul.f32 %v350, %v414
    %v423 = vmul.f32 %v351, %v414
    %v424 = vmul.f32 %v352, %v414
    %v425 = vmul.f32 %v353, %v414
    %v426 = vmul.f32 %v354, %v414
    %v427 = vmul.f32 %v355, %v414
    %v428 = vmul.f32 %v356, %v414
    %v429 = vmul.f32 %v357, %v414
    %v430 = vmul.f32 %v358, %v414
    %v432 = vlaneseq
    %v433 = vshrl.u32 %v432, 7
    %v434 = vsub.s32 0, %v433
    %v435 = vrot.slane %v302, %v434
    %v437 = vmul.f32 %v415, %v435
    %v438 = vmul.f32 %v416, %v435
    %v439 = vmul.f32 %v417, %v435
    %v440 = vmul.f32 %v418, %v435
    %v441 = vmul.f32 %v419, %v435
    %v442 = vmul.f32 %v420, %v435
    %v443 = vmul.f32 %v421, %v435
    %v444 = vmul.f32 %v422, %v435
    %v445 = vmul.f32 %v423, %v435
    %v446 = vmul.f32 %v424, %v435
    %v447 = vmul.f32 %v425, %v435
    %v448 = vmul.f32 %v426, %v435
    %v449 = vmul.f32 %v427, %v435
    %v450 = vmul.f32 %v428, %v435
    %v451 = vmul.f32 %v429, %v435
    %v452 = vmul.f32 %v430, %v435
    %v454 = vlaneseq
    %v455 = vshrl.u32 %v454, 7
    %v456 = vsub.s32 0, %v455
    %v457 = vrot.slane %v303, %v456
    %v459 = vadd.f32 %v437, %v457
    %v460 = vadd.f32 %v438, %v457
    %v461 = vadd.f32 %v439, %v457
    %v462 = vadd.f32 %v440, %v457
    %v463 = vadd.f32 %v441, %v457
    %v464 = vadd.f32 %v442, %v457
    %v465 = vadd.f32 %v443, %v457
    %v466 = vadd.f32 %v444, %v457
    %v467 = vadd.f32 %v445, %v457
    %v468 = vadd.f32 %v446, %v457
    %v469 = vadd.f32 %v447, %v457
    %v470 = vadd.f32 %v448, %v457
    %v471 = vadd.f32 %v449, %v457
    %v472 = vadd.f32 %v450, %v457
    %v473 = vadd.f32 %v451, %v457
    %v474 = vadd.f32 %v452, %v457
    %v475 = vmax.f32 %v459, 0.0
    %v476 = vmax.f32 %v460, 0.0
    %v477 = vmax.f32 %v461, 0.0
    %v478 = vmax.f32 %v462, 0.0
    %v479 = vmax.f32 %v463, 0.0
    %v480 = vmax.f32 %v464, 0.0
    %v481 = vmax.f32 %v465, 0.0
    %v482 = vmax.f32 %v466, 0.0
    %v483 = vmax.f32 %v467, 0.0
    %v484 = vmax.f32 %v468, 0.0
    %v485 = vmax.f32 %v469, 0.0
    %v486 = vmax.f32 %v470, 0.0
    %v487 = vmax.f32 %v471, 0.0
    %v488 = vmax.f32 %v472, 0.0
    %v489 = vmax.f32 %v473, 0.0
    %v490 = vmax.f32 %v474, 0.0
    %491 = vst.msk [vmem:[#allocation2] sm:$0xff] %vm304, 0.0
    %vm492 = vcmask 516096
    %493 = vst.msk [vmem:[#allocation2 + $0x8] sm:$0x1] %vm492, 0.0
    %494 = vst.msk [vmem:[#allocation2 + $0x90] sm:$0xff] %vm304, 0.0
    %495 = vst.msk [vmem:[#allocation2 + $0x98] sm:$0x1] %vm492, 0.0
    %s496 = scalar_lea.vmem [#allocation2], 16
    %497 = vst.msk [vmem:[%s496] sm:$0x1] %vm492, 0.0
    %498 = vst.msk [vmem:[%s496 + $0x10] sm:$0x1] %vm492, 0.0
    %499 = vst.msk [vmem:[%s496 + $0x20] sm:$0x1] %vm492, 0.0
    %500 = vst.msk [vmem:[%s496 + $0x30] sm:$0x1] %vm492, 0.0
    %501 = vst.msk [vmem:[%s496 + $0x40] sm:$0x1] %vm492, 0.0
    %502 = vst.msk [vmem:[%s496 + $0x50] sm:$0x1] %vm492, 0.0
    %503 = vst.msk [vmem:[%s496 + $0x60] sm:$0x1] %vm492, 0.0
    %504 = vst.msk [vmem:[%s496 + $0x70] sm:$0x1] %vm492, 0.0
    %505 = vst.msk [vmem:[%s496 + $0x90] sm:$0x1] %vm492, 0.0
    %506 = vst.msk [vmem:[%s496 + $0xa0] sm:$0x1] %vm492, 0.0
    %507 = vst.msk [vmem:[%s496 + $0xb0] sm:$0x1] %vm492, 0.0
    %508 = vst.msk [vmem:[%s496 + $0xc0] sm:$0x1] %vm492, 0.0
    %509 = vst.msk [vmem:[%s496 + $0xd0] sm:$0x1] %vm492, 0.0
    %510 = vst.msk [vmem:[%s496 + $0xe0] sm:$0x1] %vm492, 0.0
    %511 = vst.msk [vmem:[%s496 + $0xf0] sm:$0x1] %vm492, 0.0
    %512 = vst.msk [vmem:[%s496 + $0x100] sm:$0x1] %vm492, 0.0
    %513 = vst.msk [vmem:[%s496 + $0x1] sm:$0xff] %vm304, %v475
    %514 = vst.msk [vmem:[%s496 + $0x11] sm:$0xff] %vm304, %v476
    %515 = vst.msk [vmem:[%s496 + $0x21] sm:$0xff] %vm304, %v477
    %516 = vst.msk [vmem:[%s496 + $0x31] sm:$0xff] %vm304, %v478
    %517 = vst.msk [vmem:[%s496 + $0x41] sm:$0xff] %vm304, %v479
    %518 = vst.msk [vmem:[%s496 + $0x51] sm:$0xff] %vm304, %v480
    %519 = vst.msk [vmem:[%s496 + $0x61] sm:$0xff] %vm304, %v481
    %520 = vst.msk [vmem:[%s496 + $0x71] sm:$0xff] %vm304, %v482
    %521 = vst.msk [vmem:[%s496 + $0x91] sm:$0xff] %vm304, %v483
    %522 = vst.msk [vmem:[%s496 + $0xa1] sm:$0xff] %vm304, %v484
    %523 = vst.msk [vmem:[%s496 + $0xb1] sm:$0xff] %vm304, %v485
    %524 = vst.msk [vmem:[%s496 + $0xc1] sm:$0xff] %vm304, %v486
    %525 = vst.msk [vmem:[%s496 + $0xd1] sm:$0xff] %vm304, %v487
    %526 = vst.msk [vmem:[%s496 + $0xe1] sm:$0xff] %vm304, %v488
    %527 = vst.msk [vmem:[%s496 + $0xf1] sm:$0xff] %vm304, %v489
    %528 = vst.msk [vmem:[%s496 + $0x101] sm:$0xff] %vm304, %v490
    %v529 = vld [vmem:[#allocation2] ss:$2 sm:$0xf]
    %s530 = scalar_lea.vmem [#allocation2], 32
    %v531 = vld [vmem:[%s530] ss:$2 sm:$0xf]
    %s532 = scalar_lea.vmem [#allocation2], 64
    %v533 = vld [vmem:[%s532] ss:$2 sm:$0xf]
    %s534 = scalar_lea.vmem [#allocation2], 96
    %v535 = vld [vmem:[%s534] ss:$2 sm:$0xf]
    %s536 = scalar_lea.vmem [#allocation2], 144
    %v537 = vld [vmem:[%s536] ss:$2 sm:$0xf]
    %s538 = scalar_lea.vmem [#allocation2], 176
    %v539 = vld [vmem:[%s538] ss:$2 sm:$0xf]
    %s540 = scalar_lea.vmem [#allocation2], 208
    %v541 = vld [vmem:[%s540] ss:$2 sm:$0xf]
    %s542 = scalar_lea.vmem [#allocation2], 240
    %v543 = vld [vmem:[%s542] ss:$2 sm:$0xf]
    %s544 = scalar_lea.vmem [#allocation2], 1
    %v545 = vld [vmem:[%s544] ss:$2 sm:$0xf]
    %s546 = scalar_lea.vmem [#allocation2], 33
    %v547 = vld [vmem:[%s546] ss:$2 sm:$0xf]
    %s548 = scalar_lea.vmem [#allocation2], 65
    %v549 = vld [vmem:[%s548] ss:$2 sm:$0xf]
    %s550 = scalar_lea.vmem [#allocation2], 97
    %v551 = vld [vmem:[%s550] ss:$2 sm:$0xf]
    %s552 = scalar_lea.vmem [#allocation2], 145
    %v553 = vld [vmem:[%s552] ss:$2 sm:$0xf]
    %s554 = scalar_lea.vmem [#allocation2], 177
    %v555 = vld [vmem:[%s554] ss:$2 sm:$0xf]
    %s556 = scalar_lea.vmem [#allocation2], 209
    %v557 = vld [vmem:[%s556] ss:$2 sm:$0xf]
    %s558 = scalar_lea.vmem [#allocation2], 241
    %v559 = vld [vmem:[%s558] ss:$2 sm:$0xf]
    %v560 = vmax.f32 %v529, %v545
    %v561 = vmax.f32 %v531, %v547
    %v562 = vmax.f32 %v533, %v549
    %v563 = vmax.f32 %v535, %v551
    %v564 = vmax.f32 %v537, %v553
    %v565 = vmax.f32 %v539, %v555
    %v566 = vmax.f32 %v541, %v557
    %v567 = vmax.f32 %v543, %v559
    %s568 = scalar_lea.vmem [#allocation2], 2
    %v569 = vld [vmem:[%s568] ss:$2 sm:$0xf]
    %s570 = scalar_lea.vmem [#allocation2], 34
    %v571 = vld [vmem:[%s570] ss:$2 sm:$0xf]
    %s572 = scalar_lea.vmem [#allocation2], 66
    %v573 = vld [vmem:[%s572] ss:$2 sm:$0xf]
    %s574 = scalar_lea.vmem [#allocation2], 98
    %v575 = vld [vmem:[%s574] ss:$2 sm:$0xf]
    %s576 = scalar_lea.vmem [#allocation2], 146
    %v577 = vld [vmem:[%s576] ss:$2 sm:$0xf]
    %s578 = scalar_lea.vmem [#allocation2], 178
    %v579 = vld [vmem:[%s578] ss:$2 sm:$0xf]
    %s580 = scalar_lea.vmem [#allocation2], 210
    %v581 = vld [vmem:[%s580] ss:$2 sm:$0xf]
    %s582 = scalar_lea.vmem [#allocation2], 242
    %v583 = vld [vmem:[%s582] ss:$2 sm:$0xf]
    %v584 = vmax.f32 %v560, %v569
    %v585 = vmax.f32 %v561, %v571
    %v586 = vmax.f32 %v562, %v573
    %v587 = vmax.f32 %v563, %v575
    %v588 = vmax.f32 %v564, %v577
    %v589 = vmax.f32 %v565, %v579
    %v590 = vmax.f32 %v566, %v581
    %v591 = vmax.f32 %v567, %v583
    %v592 = vld [vmem:[%s496] ss:$2 sm:$0xf]
    %s593 = scalar_lea.vmem %s496, 32 [#allocation2]
    %v594 = vld [vmem:[%s593] ss:$2 sm:$0xf]
    %s595 = scalar_lea.vmem %s496, 64 [#allocation2]
    %v596 = vld [vmem:[%s595] ss:$2 sm:$0xf]
    %s597 = scalar_lea.vmem %s496, 96 [#allocation2]
    %v598 = vld [vmem:[%s597] ss:$2 sm:$0xf]
    %s599 = scalar_lea.vmem %s496, 144 [#allocation2]
    %v600 = vld [vmem:[%s599] ss:$2 sm:$0xf]
    %s601 = scalar_lea.vmem %s496, 176 [#allocation2]
    %v602 = vld [vmem:[%s601] ss:$2 sm:$0xf]
    %s603 = scalar_lea.vmem %s496, 208 [#allocation2]
    %v604 = vld [vmem:[%s603] ss:$2 sm:$0xf]
    %s605 = scalar_lea.vmem %s496, 240 [#allocation2]
    %v606 = vld [vmem:[%s605] ss:$2 sm:$0xf]
    %v607 = vmax.f32 %v584, %v592
    %v608 = vmax.f32 %v585, %v594
    %v609 = vmax.f32 %v586, %v596
    %v610 = vmax.f32 %v587, %v598
    %v611 = vmax.f32 %v588, %v600
    %v612 = vmax.f32 %v589, %v602
    %v613 = vmax.f32 %v590, %v604
    %v614 = vmax.f32 %v591, %v606
    %s615 = scalar_lea.vmem %s496, 1 [#allocation2]
    %v616 = vld [vmem:[%s615] ss:$2 sm:$0xf]
    %s617 = scalar_lea.vmem %s496, 33 [#allocation2]
    %v618 = vld [vmem:[%s617] ss:$2 sm:$0xf]
    %s619 = scalar_lea.vmem %s496, 65 [#allocation2]
    %v620 = vld [vmem:[%s619] ss:$2 sm:$0xf]
    %s621 = scalar_lea.vmem %s496, 97 [#allocation2]
    %v622 = vld [vmem:[%s621] ss:$2 sm:$0xf]
    %s623 = scalar_lea.vmem %s496, 145 [#allocation2]
    %v624 = vld [vmem:[%s623] ss:$2 sm:$0xf]
    %s625 = scalar_lea.vmem %s496, 177 [#allocation2]
    %v626 = vld [vmem:[%s625] ss:$2 sm:$0xf]
    %s627 = scalar_lea.vmem %s496, 209 [#allocation2]
    %v628 = vld [vmem:[%s627] ss:$2 sm:$0xf]
    %s629 = scalar_lea.vmem %s496, 241 [#allocation2]
    %v630 = vld [vmem:[%s629] ss:$2 sm:$0xf]
    %v631 = vmax.f32 %v607, %v616
    %v632 = vmax.f32 %v608, %v618
    %v633 = vmax.f32 %v609, %v620
    %v634 = vmax.f32 %v610, %v622
    %v635 = vmax.f32 %v611, %v624
    %v636 = vmax.f32 %v612, %v626
    %v637 = vmax.f32 %v613, %v628
    %v638 = vmax.f32 %v614, %v630
    %s639 = scalar_lea.vmem %s496, 2 [#allocation2]
    %v640 = vld [vmem:[%s639] ss:$2 sm:$0xf]
    %s641 = scalar_lea.vmem %s496, 34 [#allocation2]
    %v642 = vld [vmem:[%s641] ss:$2 sm:$0xf]
    %s643 = scalar_lea.vmem %s496, 66 [#allocation2]
    %v644 = vld [vmem:[%s643] ss:$2 sm:$0xf]
    %s645 = scalar_lea.vmem %s496, 98 [#allocation2]
    %v646 = vld [vmem:[%s645] ss:$2 sm:$0xf]
    %s647 = scalar_lea.vmem %s496, 146 [#allocation2]
    %v648 = vld [vmem:[%s647] ss:$2 sm:$0xf]
    %s649 = scalar_lea.vmem %s496, 178 [#allocation2]
    %v650 = vld [vmem:[%s649] ss:$2 sm:$0xf]
    %s651 = scalar_lea.vmem %s496, 210 [#allocation2]
    %v652 = vld [vmem:[%s651] ss:$2 sm:$0xf]
    %s653 = scalar_lea.vmem %s496, 242 [#allocation2]
    %v654 = vld [vmem:[%s653] ss:$2 sm:$0xf]
    %v655 = vmax.f32 %v631, %v640
    %v656 = vmax.f32 %v632, %v642
    %v657 = vmax.f32 %v633, %v644
    %v658 = vmax.f32 %v634, %v646
    %v659 = vmax.f32 %v635, %v648
    %v660 = vmax.f32 %v636, %v650
    %v661 = vmax.f32 %v637, %v652
    %v662 = vmax.f32 %v638, %v654
    %s663 = scalar_lea.vmem [#allocation2], 32
    %v664 = vld [vmem:[%s663] ss:$2 sm:$0xf]
    %s665 = scalar_lea.vmem %s663, 32 [#allocation2]
    %v666 = vld [vmem:[%s665] ss:$2 sm:$0xf]
    %s667 = scalar_lea.vmem %s663, 64 [#allocation2]
    %v668 = vld [vmem:[%s667] ss:$2 sm:$0xf]
    %s669 = scalar_lea.vmem %s663, 96 [#allocation2]
    %v670 = vld [vmem:[%s669] ss:$2 sm:$0xf]
    %s671 = scalar_lea.vmem %s663, 144 [#allocation2]
    %v672 = vld [vmem:[%s671] ss:$2 sm:$0xf]
    %s673 = scalar_lea.vmem %s663, 176 [#allocation2]
    %v674 = vld [vmem:[%s673] ss:$2 sm:$0xf]
    %s675 = scalar_lea.vmem %s663, 208 [#allocation2]
    %v676 = vld [vmem:[%s675] ss:$2 sm:$0xf]
    %s677 = scalar_lea.vmem %s663, 240 [#allocation2]
    %v678 = vld [vmem:[%s677] ss:$2 sm:$0xf]
    %v679 = vmax.f32 %v655, %v664
    %v680 = vmax.f32 %v656, %v666
    %v681 = vmax.f32 %v657, %v668
    %v682 = vmax.f32 %v658, %v670
    %v683 = vmax.f32 %v659, %v672
    %v684 = vmax.f32 %v660, %v674
    %v685 = vmax.f32 %v661, %v676
    %v686 = vmax.f32 %v662, %v678
    %s687 = scalar_lea.vmem %s663, 1 [#allocation2]
    %v688 = vld [vmem:[%s687] ss:$2 sm:$0xf]
    %s689 = scalar_lea.vmem %s663, 33 [#allocation2]
    %v690 = vld [vmem:[%s689] ss:$2 sm:$0xf]
    %s691 = scalar_lea.vmem %s663, 65 [#allocation2]
    %v692 = vld [vmem:[%s691] ss:$2 sm:$0xf]
    %s693 = scalar_lea.vmem %s663, 97 [#allocation2]
    %v694 = vld [vmem:[%s693] ss:$2 sm:$0xf]
    %s695 = scalar_lea.vmem %s663, 145 [#allocation2]
    %v696 = vld [vmem:[%s695] ss:$2 sm:$0xf]
    %s697 = scalar_lea.vmem %s663, 177 [#allocation2]
    %v698 = vld [vmem:[%s697] ss:$2 sm:$0xf]
    %s699 = scalar_lea.vmem %s663, 209 [#allocation2]
    %v700 = vld [vmem:[%s699] ss:$2 sm:$0xf]
    %s701 = scalar_lea.vmem %s663, 241 [#allocation2]
    %v702 = vld [vmem:[%s701] ss:$2 sm:$0xf]
    %v703 = vmax.f32 %v679, %v688
    %v704 = vmax.f32 %v680, %v690
    %v705 = vmax.f32 %v681, %v692
    %v706 = vmax.f32 %v682, %v694
    %v707 = vmax.f32 %v683, %v696
    %v708 = vmax.f32 %v684, %v698
    %v709 = vmax.f32 %v685, %v700
    %v710 = vmax.f32 %v686, %v702
    %s711 = scalar_lea.vmem %s663, 2 [#allocation2]
    %v712 = vld [vmem:[%s711] ss:$2 sm:$0xf]
    %s713 = scalar_lea.vmem %s663, 34 [#allocation2]
    %v714 = vld [vmem:[%s713] ss:$2 sm:$0xf]
    %s715 = scalar_lea.vmem %s663, 66 [#allocation2]
    %v716 = vld [vmem:[%s715] ss:$2 sm:$0xf]
    %s717 = scalar_lea.vmem %s663, 98 [#allocation2]
    %v718 = vld [vmem:[%s717] ss:$2 sm:$0xf]
    %s719 = scalar_lea.vmem %s663, 146 [#allocation2]
    %v720 = vld [vmem:[%s719] ss:$2 sm:$0xf]
    %s721 = scalar_lea.vmem %s663, 178 [#allocation2]
    %v722 = vld [vmem:[%s721] ss:$2 sm:$0xf]
    %s723 = scalar_lea.vmem %s663, 210 [#allocation2]
    %v724 = vld [vmem:[%s723] ss:$2 sm:$0xf]
    %s725 = scalar_lea.vmem %s663, 242 [#allocation2]
    %v726 = vld [vmem:[%s725] ss:$2 sm:$0xf]
    %v727 = vmax.f32 %v703, %v712
    %v728 = vmax.f32 %v704, %v714
    %v729 = vmax.f32 %v705, %v716
    %v730 = vmax.f32 %v706, %v718
    %v731 = vmax.f32 %v707, %v720
    %v732 = vmax.f32 %v708, %v722
    %v733 = vmax.f32 %v709, %v724
    %v734 = vmax.f32 %v710, %v726
    %v735 = vcombine.low %v727, %v729
    %v737 = vunpack.c.l.s4 1983009808
    %v738 = vunpack.c.0.s8 %v737
    %v739 = vlaneseq
    %v740 = vshrl.u32 %v739, 7
    %v741 = vsub.s32 %v738, %v740
    %v742 = vrot.slane %v735, %v741
    %v743 = vcombine.low %v728, %v730
    %v745 = vunpack.c.l.s4 1983009808
    %v746 = vunpack.c.0.s8 %v745
    %v747 = vlaneseq
    %v748 = vshrl.u32 %v747, 7
    %v749 = vsub.s32 %v746, %v748
    %v750 = vrot.slane %v743, %v749
    %v751 = vcombine.low %v731, %v733
    %v753 = vunpack.c.l.s4 1983009808
    %v754 = vunpack.c.0.s8 %v753
    %v755 = vlaneseq
    %v756 = vshrl.u32 %v755, 7
    %v757 = vsub.s32 %v754, %v756
    %v758 = vrot.slane %v751, %v757
    %v759 = vcombine.low %v732, %v734
    %v761 = vunpack.c.l.s4 1983009808
    %v762 = vunpack.c.0.s8 %v761
    %v763 = vlaneseq
    %v764 = vshrl.u32 %v763, 7
    %v765 = vsub.s32 %v762, %v764
    %v766 = vrot.slane %v759, %v765
    %v767 = vcombine.low %v742, %v750
    %v768 = vcombine.high %v742, %v750
    %v770 = vunpack.c.l.s4 1934713408
    %v771 = vunpack.c.0.s8 %v770
    %v772 = vlaneseq
    %v773 = vshrl.u32 %v772, 7
    %v774 = vsub.s32 %v771, %v773
    %v775 = vrot.slane %v767, %v774
    %v777 = vunpack.c.l.s4 1934713408
    %v778 = vunpack.c.0.s8 %v777
    %v779 = vlaneseq
    %v780 = vshrl.u32 %v779, 7
    %v781 = vsub.s32 %v778, %v780
    %v782 = vrot.slane %v768, %v781
    %v783 = vcombine.low %v758, %v766
    %v784 = vcombine.high %v758, %v766
    %v786 = vunpack.c.l.s4 1934713408
    %v787 = vunpack.c.0.s8 %v786
    %v788 = vlaneseq
    %v789 = vshrl.u32 %v788, 7
    %v790 = vsub.s32 %v787, %v789
    %v791 = vrot.slane %v783, %v790
    %v793 = vunpack.c.l.s4 1934713408
    %v794 = vunpack.c.0.s8 %v793
    %v795 = vlaneseq
    %v796 = vshrl.u32 %v795, 7
    %v797 = vsub.s32 %v794, %v796
    %v798 = vrot.slane %v784, %v797
    %v799 = vcombine.low %v775, %v791
    %v800 = vcombine.high %v775, %v791
    %v801 = vcombine.low %v782, %v798
    %v802 = vcombine.high %v782, %v798
    %804 = vrot.lane.b32.xlu0 %v800, 64
    %v805 = vpop.permute.xlu0 %804
    %808 = vrot.lane.b32.xlu0 %v802, 64
    %v809 = vpop.permute.xlu0 %808
    %v811 = vsel %vm304, %v799, %v805
    %v812 = vsel %vm304, %v801, %v809
    %813 = vst [vmem:[%s16] sm:$0xff] %v811
    %814 = vst [vmem:[%s16 + $0x8] sm:$0xff] %v812
    %vm815 = vcmask 520192
    %816 = vst.msk [vmem:[#allocation3] sm:$0x1f] %vm815, 0.0
    %817 = vst.msk [vmem:[#allocation3 + $0x28] sm:$0x1f] %vm815, 0.0
    %s818 = scalar_lea.vmem [#allocation3], 8
    %819 = vst.msk [vmem:[%s818] sm:$0x1] %vm492, 0.0
    %820 = vst.msk [vmem:[%s818 + $0x8] sm:$0x1] %vm492, 0.0
    %821 = vst.msk [vmem:[%s818 + $0x10] sm:$0x1] %vm492, 0.0
    %822 = vst.msk [vmem:[%s818 + $0x18] sm:$0x1] %vm492, 0.0
    %823 = vst.msk [vmem:[%s818 + $0x28] sm:$0x1] %vm492, 0.0
    %824 = vst.msk [vmem:[%s818 + $0x30] sm:$0x1] %vm492, 0.0
    %825 = vst.msk [vmem:[%s818 + $0x38] sm:$0x1] %vm492, 0.0
    %826 = vst.msk [vmem:[%s818 + $0x40] sm:$0x1] %vm492, 0.0
    %vm827 = vcmask 519168
    %828 = vst.msk [vmem:[%s818 + $0x1] sm:$0xf] %vm827, %v727
    %829 = vst.msk [vmem:[%s818 + $0x9] sm:$0xf] %vm827, %v728
    %830 = vst.msk [vmem:[%s818 + $0x11] sm:$0xf] %vm827, %v729
    %831 = vst.msk [vmem:[%s818 + $0x19] sm:$0xf] %vm827, %v730
    %832 = vst.msk [vmem:[%s818 + $0x29] sm:$0xf] %vm827, %v731
    %833 = vst.msk [vmem:[%s818 + $0x31] sm:$0xf] %vm827, %v732
    %834 = vst.msk [vmem:[%s818 + $0x39] sm:$0xf] %vm827, %v733
    %835 = vst.msk [vmem:[%s818 + $0x41] sm:$0xf] %vm827, %v734
    %v836 = vld [vmem:[#allocation3] ss:$2 sm:$0x3]
    %s837 = scalar_lea.vmem [#allocation3], 16
    %v838 = vld [vmem:[%s837] ss:$2 sm:$0x3]
    %s839 = scalar_lea.vmem [#allocation3], 40
    %v840 = vld [vmem:[%s839] ss:$2 sm:$0x3]
    %s841 = scalar_lea.vmem [#allocation3], 56
    %v842 = vld [vmem:[%s841] ss:$2 sm:$0x3]
    %v843 = vld [vmem:[%s4] sm:$0xff]
    %v844 = vld [vmem:[%s4 + $0x8] sm:$0xff]
    %v845 = vld [vmem:[%s4 + $0x10] sm:$0xff]
    %v846 = vld [vmem:[%s4 + $0x18] sm:$0xff]
    %v847 = vld [vmem:[%s4 + $0x20] sm:$0xff]
    %v848 = vld [vmem:[%s4 + $0x28] sm:$0xff]
    %v849 = vld [vmem:[%s4 + $0x30] sm:$0xff]
    %v850 = vld [vmem:[%s4 + $0x38] sm:$0xff]
    %s851 = scalar_lea.vmem [#allocation3], 1
    %v852 = vld [vmem:[%s851] ss:$2 sm:$0x3]
    %s853 = scalar_lea.vmem [#allocation3], 17
    %v854 = vld [vmem:[%s853] ss:$2 sm:$0x3]
    %s855 = scalar_lea.vmem [#allocation3], 41
    %v856 = vld [vmem:[%s855] ss:$2 sm:$0x3]
    %s857 = scalar_lea.vmem [#allocation3], 57
    %v858 = vld [vmem:[%s857] ss:$2 sm:$0x3]
    %v859 = vld [vmem:[%s4 + $0x40] sm:$0xff]
    %v860 = vld [vmem:[%s4 + $0x48] sm:$0xff]
    %v861 = vld [vmem:[%s4 + $0x50] sm:$0xff]
    %v862 = vld [vmem:[%s4 + $0x58] sm:$0xff]
    %v863 = vld [vmem:[%s4 + $0x60] sm:$0xff]
    %v864 = vld [vmem:[%s4 + $0x68] sm:$0xff]
    %v865 = vld [vmem:[%s4 + $0x70] sm:$0xff]
    %v866 = vld [vmem:[%s4 + $0x78] sm:$0xff]
    %v871 = vcombine.low %v852, %v854
    %v872 = vcombine.low %v856, %v858
    %v874 = vunpack.c.l.s4 1983009808
    %v875 = vunpack.c.0.s8 %v874
    %v876 = vlaneseq
    %v877 = vshrl.u32 %v876, 7
    %v878 = vsub.s32 %v875, %v877
    %v879 = vrot.slane %v871, %v878
    %v881 = vunpack.c.l.s4 1983009808
    %v882 = vunpack.c.0.s8 %v881
    %v883 = vlaneseq
    %v884 = vshrl.u32 %v883, 7
    %v885 = vsub.s32 %v882, %v884
    %v886 = vrot.slane %v872, %v885
    %v887 = vcombine.low %v879, %v886
    %v888 = vsel %vm304, %v887, 0
    %890 = vmatprep.subr.mxu0 0.0
    %891 = vmatpush1.msra.mxu0 0.0
    %892 = vmatprep.subr.mxu0 0.0
    %893 = vmatpush1.msra.mxu0 0.0
    %894 = vmatprep.subr.mxu0 0.0
    %895 = vmatpush1.msra.mxu0 0.0
    %896 = vmatprep.subr.mxu0 0.0
    %897 = vmatpush1.msra.mxu0 0.0
    %898 = vmatprep.subr.mxu0 0.0
    %899 = vmatpush1.msra.mxu0 0.0
    %900 = vmatprep.subr.mxu0 0.0
    %901 = vmatpush1.msra.mxu0 0.0
    %902 = vmatprep.subr.mxu0 0.0
    %903 = vmatpush1.msra.mxu0 0.0
    %904 = vmatprep.subr.mxu0 0.0
    %905 = vmatpush1.msra.mxu0 0.0
    %906 = vmatprep.subr.mxu0 0.0
    %907 = vmatpush1.msra.mxu0 %v866
    %908 = vmatprep.subr.mxu0 0.0
    %909 = vmatpush1.msra.mxu0 %v865
    %910 = vmatprep.subr.mxu0 0.0
    %911 = vmatpush1.msra.mxu0 %v864
    %912 = vmatprep.subr.mxu0 0.0
    %913 = vmatpush1.msra.mxu0 %v863
    %914 = vmatprep.subr.mxu0 0.0
    %915 = vmatpush1.msra.mxu0 %v862
    %916 = vmatprep.subr.mxu0 0.0
    %917 = vmatpush1.msra.mxu0 %v861
    %918 = vmatprep.subr.mxu0 0.0
    %919 = vmatpush1.msra.mxu0 %v860
    %920 = vmatprep.subr.mxu0 0.0
    %921 = vmatpush1.msra.mxu0 %v859
    %922 = vmatprep.subr.mxu0 0.0
    %923 = vmatpush2.msra.mxu0 0.0
    %924 = vmatprep.subr.mxu0 0.0
    %925 = vmatpush2.msra.mxu0 0.0
    %926 = vmatprep.subr.mxu0 0.0
    %927 = vmatpush2.msra.mxu0 0.0
    %928 = vmatprep.subr.mxu0 0.0
    %929 = vmatpush2.msra.mxu0 0.0
    %930 = vmatprep.subr.mxu0 0.0
    %931 = vmatpush2.msra.mxu0 0.0
    %932 = vmatprep.subr.mxu0 0.0
    %933 = vmatpush2.msra.mxu0 0.0
    %934 = vmatprep.subr.mxu0 0.0
    %935 = vmatpush2.msra.mxu0 0.0
    %936 = vmatprep.subr.mxu0 0.0
    %937 = vmatpush2.msra.mxu0 0.0
    %938 = vmatprep.subr.mxu0 0.0
    %939 = vmatpush2.msra.mxu0 0.0
    %940 = vmatprep.subr.mxu0 0.0
    %941 = vmatpush2.msra.mxu0 0.0
    %942 = vmatprep.subr.mxu0 0.0
    %943 = vmatpush2.msra.mxu0 0.0
    %944 = vmatprep.subr.mxu0 0.0
    %945 = vmatpush2.msra.mxu0 0.0
    %946 = vmatprep.subr.mxu0 0.0
    %947 = vmatpush2.msra.mxu0 0.0
    %948 = vmatprep.subr.mxu0 0.0
    %949 = vmatpush2.msra.mxu0 0.0
    %950 = vmatprep.subr.mxu0 0.0
    %951 = vmatpush2.msra.mxu0 0.0
    %952 = vmatprep.subr.mxu0 0.0
    %953 = vmatpush2.msra.mxu0 0.0
    %954 = vmatprep.mubr.f32.mxu0 0.0
    %955 = vmatmul.mubr.f32.gmra.mxu0 %v888
    %v956 = vpop.f32.mrf.mxu0
    %v957 = vadd.f32 0.0, %v956
    %v958 = vpop.f32.mrf.mxu0
    %959 = vdwg.mxu0
    %v964 = vcombine.low %v836, %v838
    %v965 = vcombine.low %v840, %v842
    %v967 = vunpack.c.l.s4 1983009808
    %v968 = vunpack.c.0.s8 %v967
    %v969 = vlaneseq
    %v970 = vshrl.u32 %v969, 7
    %v971 = vsub.s32 %v968, %v970
    %v972 = vrot.slane %v964, %v971
    %v974 = vunpack.c.l.s4 1983009808
    %v975 = vunpack.c.0.s8 %v974
    %v976 = vlaneseq
    %v977 = vshrl.u32 %v976, 7
    %v978 = vsub.s32 %v975, %v977
    %v979 = vrot.slane %v965, %v978
    %v980 = vcombine.low %v972, %v979
    %v981 = vsel %vm304, %v980, 0
    %983 = vmatprep.subr.mxu0 0.0
    %984 = vmatpush1.msra.mxu0 0.0
    %985 = vmatprep.subr.mxu0 0.0
    %986 = vmatpush1.msra.mxu0 0.0
    %987 = vmatprep.subr.mxu0 0.0
    %988 = vmatpush1.msra.mxu0 0.0
    %989 = vmatprep.subr.mxu0 0.0
    %990 = vmatpush1.msra.mxu0 0.0
    %991 = vmatprep.subr.mxu0 0.0
    %992 = vmatpush1.msra.mxu0 0.0
    %993 = vmatprep.subr.mxu0 0.0
    %994 = vmatpush1.msra.mxu0 0.0
    %995 = vmatprep.subr.mxu0 0.0
    %996 = vmatpush1.msra.mxu0 0.0
    %997 = vmatprep.subr.mxu0 0.0
    %998 = vmatpush1.msra.mxu0 0.0
    %999 = vmatprep.subr.mxu0 0.0
    %1000 = vmatpush1.msra.mxu0 %v850
    %1001 = vmatprep.subr.mxu0 0.0
    %1002 = vmatpush1.msra.mxu0 %v849
    %1003 = vmatprep.subr.mxu0 0.0
    %1004 = vmatpush1.msra.mxu0 %v848
    %1005 = vmatprep.subr.mxu0 0.0
    %1006 = vmatpush1.msra.mxu0 %v847
    %1007 = vmatprep.subr.mxu0 0.0
    %1008 = vmatpush1.msra.mxu0 %v846
    %1009 = vmatprep.subr.mxu0 0.0
    %1010 = vmatpush1.msra.mxu0 %v845
    %1011 = vmatprep.subr.mxu0 0.0
    %1012 = vmatpush1.msra.mxu0 %v844
    %1013 = vmatprep.subr.mxu0 0.0
    %1014 = vmatpush1.msra.mxu0 %v843
    %1015 = vmatprep.subr.mxu0 0.0
    %1016 = vmatpush2.msra.mxu0 0.0
    %1017 = vmatprep.subr.mxu0 0.0
    %1018 = vmatpush2.msra.mxu0 0.0
    %1019 = vmatprep.subr.mxu0 0.0
    %1020 = vmatpush2.msra.mxu0 0.0
    %1021 = vmatprep.subr.mxu0 0.0
    %1022 = vmatpush2.msra.mxu0 0.0
    %1023 = vmatprep.subr.mxu0 0.0
    %1024 = vmatpush2.msra.mxu0 0.0
    %1025 = vmatprep.subr.mxu0 0.0
    %1026 = vmatpush2.msra.mxu0 0.0
    %1027 = vmatprep.subr.mxu0 0.0
    %1028 = vmatpush2.msra.mxu0 0.0
    %1029 = vmatprep.subr.mxu0 0.0
    %1030 = vmatpush2.msra.mxu0 0.0
    %1031 = vmatprep.subr.mxu0 0.0
    %1032 = vmatpush2.msra.mxu0 0.0
    %1033 = vmatprep.subr.mxu0 0.0
    %1034 = vmatpush2.msra.mxu0 0.0
    %1035 = vmatprep.subr.mxu0 0.0
    %1036 = vmatpush2.msra.mxu0 0.0
    %1037 = vmatprep.subr.mxu0 0.0
    %1038 = vmatpush2.msra.mxu0 0.0
    %1039 = vmatprep.subr.mxu0 0.0
    %1040 = vmatpush2.msra.mxu0 0.0
    %1041 = vmatprep.subr.mxu0 0.0
    %1042 = vmatpush2.msra.mxu0 0.0
    %1043 = vmatprep.subr.mxu0 0.0
    %1044 = vmatpush2.msra.mxu0 0.0
    %1045 = vmatprep.subr.mxu0 0.0
    %1046 = vmatpush2.msra.mxu0 0.0
    %1047 = vmatprep.mubr.f32.mxu0 0.0
    %1048 = vmatmul.mubr.f32.gmra.mxu0 %v981
    %v1049 = vpop.f32.mrf.mxu0
    %v1050 = vadd.f32 %v957, %v1049
    %v1051 = vpop.f32.mrf.mxu0
    %1052 = vdwg.mxu0
    %s1053 = scalar_lea.vmem [#allocation3], 2
    %v1054 = vld [vmem:[%s1053] ss:$2 sm:$0x3]
    %s1055 = scalar_lea.vmem [#allocation3], 18
    %v1056 = vld [vmem:[%s1055] ss:$2 sm:$0x3]
    %s1057 = scalar_lea.vmem [#allocation3], 42
    %v1058 = vld [vmem:[%s1057] ss:$2 sm:$0x3]
    %s1059 = scalar_lea.vmem [#allocation3], 58
    %v1060 = vld [vmem:[%s1059] ss:$2 sm:$0x3]
    %v1061 = vld [vmem:[%s4 + $0x80] sm:$0xff]
    %v1062 = vld [vmem:[%s4 + $0x88] sm:$0xff]
    %v1063 = vld [vmem:[%s4 + $0x90] sm:$0xff]
    %v1064 = vld [vmem:[%s4 + $0x98] sm:$0xff]
    %v1065 = vld [vmem:[%s4 + $0xa0] sm:$0xff]
    %v1066 = vld [vmem:[%s4 + $0xa8] sm:$0xff]
    %v1067 = vld [vmem:[%s4 + $0xb0] sm:$0xff]
    %v1068 = vld [vmem:[%s4 + $0xb8] sm:$0xff]
    %v1073 = vcombine.low %v1054, %v1056
    %v1074 = vcombine.low %v1058, %v1060
    %v1076 = vunpack.c.l.s4 1983009808
    %v1077 = vunpack.c.0.s8 %v1076
    %v1078 = vlaneseq
    %v1079 = vshrl.u32 %v1078, 7
    %v1080 = vsub.s32 %v1077, %v1079
    %v1081 = vrot.slane %v1073, %v1080
    %v1083 = vunpack.c.l.s4 1983009808
    %v1084 = vunpack.c.0.s8 %v1083
    %v1085 = vlaneseq
    %v1086 = vshrl.u32 %v1085, 7
    %v1087 = vsub.s32 %v1084, %v1086
    %v1088 = vrot.slane %v1074, %v1087
    %v1089 = vcombine.low %v1081, %v1088
    %v1090 = vsel %vm304, %v1089, 0
    %1092 = vmatprep.subr.mxu0 0.0
    %1093 = vmatpush1.msra.mxu0 0.0
    %1094 = vmatprep.subr.mxu0 0.0
    %1095 = vmatpush1.msra.mxu0 0.0
    %1096 = vmatprep.subr.mxu0 0.0
    %1097 = vmatpush1.msra.mxu0 0.0
    %1098 = vmatprep.subr.mxu0 0.0
    %1099 = vmatpush1.msra.mxu0 0.0
    %1100 = vmatprep.subr.mxu0 0.0
    %1101 = vmatpush1.msra.mxu0 0.0
    %1102 = vmatprep.subr.mxu0 0.0
    %1103 = vmatpush1.msra.mxu0 0.0
    %1104 = vmatprep.subr.mxu0 0.0
    %1105 = vmatpush1.msra.mxu0 0.0
    %1106 = vmatprep.subr.mxu0 0.0
    %1107 = vmatpush1.msra.mxu0 0.0
    %1108 = vmatprep.subr.mxu0 0.0
    %1109 = vmatpush1.msra.mxu0 %v1068
    %1110 = vmatprep.subr.mxu0 0.0
    %1111 = vmatpush1.msra.mxu0 %v1067
    %1112 = vmatprep.subr.mxu0 0.0
    %1113 = vmatpush1.msra.mxu0 %v1066
    %1114 = vmatprep.subr.mxu0 0.0
    %1115 = vmatpush1.msra.mxu0 %v1065
    %1116 = vmatprep.subr.mxu0 0.0
    %1117 = vmatpush1.msra.mxu0 %v1064
    %1118 = vmatprep.subr.mxu0 0.0
    %1119 = vmatpush1.msra.mxu0 %v1063
    %1120 = vmatprep.subr.mxu0 0.0
    %1121 = vmatpush1.msra.mxu0 %v1062
    %1122 = vmatprep.subr.mxu0 0.0
    %1123 = vmatpush1.msra.mxu0 %v1061
    %1124 = vmatprep.subr.mxu0 0.0
    %1125 = vmatpush2.msra.mxu0 0.0
    %1126 = vmatprep.subr.mxu0 0.0
    %1127 = vmatpush2.msra.mxu0 0.0
    %1128 = vmatprep.subr.mxu0 0.0
    %1129 = vmatpush2.msra.mxu0 0.0
    %1130 = vmatprep.subr.mxu0 0.0
    %1131 = vmatpush2.msra.mxu0 0.0
    %1132 = vmatprep.subr.mxu0 0.0
    %1133 = vmatpush2.msra.mxu0 0.0
    %1134 = vmatprep.subr.mxu0 0.0
    %1135 = vmatpush2.msra.mxu0 0.0
    %1136 = vmatprep.subr.mxu0 0.0
    %1137 = vmatpush2.msra.mxu0 0.0
    %1138 = vmatprep.subr.mxu0 0.0
    %1139 = vmatpush2.msra.mxu0 0.0
    %1140 = vmatprep.subr.mxu0 0.0
    %1141 = vmatpush2.msra.mxu0 0.0
    %1142 = vmatprep.subr.mxu0 0.0
    %1143 = vmatpush2.msra.mxu0 0.0
    %1144 = vmatprep.subr.mxu0 0.0
    %1145 = vmatpush2.msra.mxu0 0.0
    %1146 = vmatprep.subr.mxu0 0.0
    %1147 = vmatpush2.msra.mxu0 0.0
    %1148 = vmatprep.subr.mxu0 0.0
    %1149 = vmatpush2.msra.mxu0 0.0
    %1150 = vmatprep.subr.mxu0 0.0
    %1151 = vmatpush2.msra.mxu0 0.0
    %1152 = vmatprep.subr.mxu0 0.0
    %1153 = vmatpush2.msra.mxu0 0.0
    %1154 = vmatprep.subr.mxu0 0.0
    %1155 = vmatpush2.msra.mxu0 0.0
    %1156 = vmatprep.mubr.f32.mxu0 0.0
    %1157 = vmatmul.mubr.f32.gmra.mxu0 %v1090
    %v1158 = vpop.f32.mrf.mxu0
    %v1159 = vadd.f32 0.0, %v1158
    %v1160 = vpop.f32.mrf.mxu0
    %1161 = vdwg.mxu0
    %v1162 = vadd.f32 %v1050, %v1159
    %v1163 = vld [vmem:[%s818] ss:$2 sm:$0x3]
    %s1164 = scalar_lea.vmem %s818, 16 [#allocation3]
    %v1165 = vld [vmem:[%s1164] ss:$2 sm:$0x3]
    %s1166 = scalar_lea.vmem %s818, 40 [#allocation3]
    %v1167 = vld [vmem:[%s1166] ss:$2 sm:$0x3]
    %s1168 = scalar_lea.vmem %s818, 56 [#allocation3]
    %v1169 = vld [vmem:[%s1168] ss:$2 sm:$0x3]
    %v1170 = vld [vmem:[%s4 + $0xc0] sm:$0xff]
    %v1171 = vld [vmem:[%s4 + $0xc8] sm:$0xff]
    %v1172 = vld [vmem:[%s4 + $0xd0] sm:$0xff]
    %v1173 = vld [vmem:[%s4 + $0xd8] sm:$0xff]
    %v1174 = vld [vmem:[%s4 + $0xe0] sm:$0xff]
    %v1175 = vld [vmem:[%s4 + $0xe8] sm:$0xff]
    %v1176 = vld [vmem:[%s4 + $0xf0] sm:$0xff]
    %v1177 = vld [vmem:[%s4 + $0xf8] sm:$0xff]
    %v1182 = vcombine.low %v1163, %v1165
    %v1183 = vcombine.low %v1167, %v1169
    %v1185 = vunpack.c.l.s4 1983009808
    %v1186 = vunpack.c.0.s8 %v1185
    %v1187 = vlaneseq
    %v1188 = vshrl.u32 %v1187, 7
    %v1189 = vsub.s32 %v1186, %v1188
    %v1190 = vrot.slane %v1182, %v1189
    %v1192 = vunpack.c.l.s4 1983009808
    %v1193 = vunpack.c.0.s8 %v1192
    %v1194 = vlaneseq
    %v1195 = vshrl.u32 %v1194, 7
    %v1196 = vsub.s32 %v1193, %v1195
    %v1197 = vrot.slane %v1183, %v1196
    %v1198 = vcombine.low %v1190, %v1197
    %v1199 = vsel %vm304, %v1198, 0
    %1201 = vmatprep.subr.mxu0 0.0
    %1202 = vmatpush1.msra.mxu0 0.0
    %1203 = vmatprep.subr.mxu0 0.0
    %1204 = vmatpush1.msra.mxu0 0.0
    %1205 = vmatprep.subr.mxu0 0.0
    %1206 = vmatpush1.msra.mxu0 0.0
    %1207 = vmatprep.subr.mxu0 0.0
    %1208 = vmatpush1.msra.mxu0 0.0
    %1209 = vmatprep.subr.mxu0 0.0
    %1210 = vmatpush1.msra.mxu0 0.0
    %1211 = vmatprep.subr.mxu0 0.0
    %1212 = vmatpush1.msra.mxu0 0.0
    %1213 = vmatprep.subr.mxu0 0.0
    %1214 = vmatpush1.msra.mxu0 0.0
    %1215 = vmatprep.subr.mxu0 0.0
    %1216 = vmatpush1.msra.mxu0 0.0
    %1217 = vmatprep.subr.mxu0 0.0
    %1218 = vmatpush1.msra.mxu0 %v1177
    %1219 = vmatprep.subr.mxu0 0.0
    %1220 = vmatpush1.msra.mxu0 %v1176
    %1221 = vmatprep.subr.mxu0 0.0
    %1222 = vmatpush1.msra.mxu0 %v1175
    %1223 = vmatprep.subr.mxu0 0.0
    %1224 = vmatpush1.msra.mxu0 %v1174
    %1225 = vmatprep.subr.mxu0 0.0
    %1226 = vmatpush1.msra.mxu0 %v1173
    %1227 = vmatprep.subr.mxu0 0.0
    %1228 = vmatpush1.msra.mxu0 %v1172
    %1229 = vmatprep.subr.mxu0 0.0
    %1230 = vmatpush1.msra.mxu0 %v1171
    %1231 = vmatprep.subr.mxu0 0.0
    %1232 = vmatpush1.msra.mxu0 %v1170
    %1233 = vmatprep.subr.mxu0 0.0
    %1234 = vmatpush2.msra.mxu0 0.0
    %1235 = vmatprep.subr.mxu0 0.0
    %1236 = vmatpush2.msra.mxu0 0.0
    %1237 = vmatprep.subr.mxu0 0.0
    %1238 = vmatpush2.msra.mxu0 0.0
    %1239 = vmatprep.subr.mxu0 0.0
    %1240 = vmatpush2.msra.mxu0 0.0
    %1241 = vmatprep.subr.mxu0 0.0
    %1242 = vmatpush2.msra.mxu0 0.0
    %1243 = vmatprep.subr.mxu0 0.0
    %1244 = vmatpush2.msra.mxu0 0.0
    %1245 = vmatprep.subr.mxu0 0.0
    %1246 = vmatpush2.msra.mxu0 0.0
    %1247 = vmatprep.subr.mxu0 0.0
    %1248 = vmatpush2.msra.mxu0 0.0
    %1249 = vmatprep.subr.mxu0 0.0
    %1250 = vmatpush2.msra.mxu0 0.0
    %1251 = vmatprep.subr.mxu0 0.0
    %1252 = vmatpush2.msra.mxu0 0.0
    %1253 = vmatprep.subr.mxu0 0.0
    %1254 = vmatpush2.msra.mxu0 0.0
    %1255 = vmatprep.subr.mxu0 0.0
    %1256 = vmatpush2.msra.mxu0 0.0
    %1257 = vmatprep.subr.mxu0 0.0
    %1258 = vmatpush2.msra.mxu0 0.0
    %1259 = vmatprep.subr.mxu0 0.0
    %1260 = vmatpush2.msra.mxu0 0.0
    %1261 = vmatprep.subr.mxu0 0.0
    %1262 = vmatpush2.msra.mxu0 0.0
    %1263 = vmatprep.subr.mxu0 0.0
    %1264 = vmatpush2.msra.mxu0 0.0
    %1265 = vmatprep.mubr.f32.mxu0 0.0
    %1266 = vmatmul.mubr.f32.gmra.mxu0 %v1199
    %v1267 = vpop.f32.mrf.mxu0
    %v1268 = vadd.f32 0.0, %v1267
    %v1269 = vpop.f32.mrf.mxu0
    %1270 = vdwg.mxu0
    %v1271 = vadd.f32 %v1162, %v1268
    %s1272 = scalar_lea.vmem %s818, 1 [#allocation3]
    %v1273 = vld [vmem:[%s1272] ss:$2 sm:$0x3]
    %s1274 = scalar_lea.vmem %s818, 17 [#allocation3]
    %v1275 = vld [vmem:[%s1274] ss:$2 sm:$0x3]
    %s1276 = scalar_lea.vmem %s818, 41 [#allocation3]
    %v1277 = vld [vmem:[%s1276] ss:$2 sm:$0x3]
    %s1278 = scalar_lea.vmem %s818, 57 [#allocation3]
    %v1279 = vld [vmem:[%s1278] ss:$2 sm:$0x3]
    %v1280 = vld [vmem:[%s4 + $0x100] sm:$0xff]
    %v1281 = vld [vmem:[%s4 + $0x108] sm:$0xff]
    %v1282 = vld [vmem:[%s4 + $0x110] sm:$0xff]
    %v1283 = vld [vmem:[%s4 + $0x118] sm:$0xff]
    %v1284 = vld [vmem:[%s4 + $0x120] sm:$0xff]
    %v1285 = vld [vmem:[%s4 + $0x128] sm:$0xff]
    %v1286 = vld [vmem:[%s4 + $0x130] sm:$0xff]
    %v1287 = vld [vmem:[%s4 + $0x138] sm:$0xff]
    %v1292 = vcombine.low %v1273, %v1275
    %v1293 = vcombine.low %v1277, %v1279
    %v1295 = vunpack.c.l.s4 1983009808
    %v1296 = vunpack.c.0.s8 %v1295
    %v1297 = vlaneseq
    %v1298 = vshrl.u32 %v1297, 7
    %v1299 = vsub.s32 %v1296, %v1298
    %v1300 = vrot.slane %v1292, %v1299
    %v1302 = vunpack.c.l.s4 1983009808
    %v1303 = vunpack.c.0.s8 %v1302
    %v1304 = vlaneseq
    %v1305 = vshrl.u32 %v1304, 7
    %v1306 = vsub.s32 %v1303, %v1305
    %v1307 = vrot.slane %v1293, %v1306
    %v1308 = vcombine.low %v1300, %v1307
    %v1309 = vsel %vm304, %v1308, 0
    %1311 = vmatprep.subr.mxu0 0.0
    %1312 = vmatpush1.msra.mxu0 0.0
    %1313 = vmatprep.subr.mxu0 0.0
    %1314 = vmatpush1.msra.mxu0 0.0
    %1315 = vmatprep.subr.mxu0 0.0
    %1316 = vmatpush1.msra.mxu0 0.0
    %1317 = vmatprep.subr.mxu0 0.0
    %1318 = vmatpush1.msra.mxu0 0.0
    %1319 = vmatprep.subr.mxu0 0.0
    %1320 = vmatpush1.msra.mxu0 0.0
    %1321 = vmatprep.subr.mxu0 0.0
    %1322 = vmatpush1.msra.mxu0 0.0
    %1323 = vmatprep.subr.mxu0 0.0
    %1324 = vmatpush1.msra.mxu0 0.0
    %1325 = vmatprep.subr.mxu0 0.0
    %1326 = vmatpush1.msra.mxu0 0.0
    %1327 = vmatprep.subr.mxu0 0.0
    %1328 = vmatpush1.msra.mxu0 %v1287
    %1329 = vmatprep.subr.mxu0 0.0
    %1330 = vmatpush1.msra.mxu0 %v1286
    %1331 = vmatprep.subr.mxu0 0.0
    %1332 = vmatpush1.msra.mxu0 %v1285
    %1333 = vmatprep.subr.mxu0 0.0
    %1334 = vmatpush1.msra.mxu0 %v1284
    %1335 = vmatprep.subr.mxu0 0.0
    %1336 = vmatpush1.msra.mxu0 %v1283
    %1337 = vmatprep.subr.mxu0 0.0
    %1338 = vmatpush1.msra.mxu0 %v1282
    %1339 = vmatprep.subr.mxu0 0.0
    %1340 = vmatpush1.msra.mxu0 %v1281
    %1341 = vmatprep.subr.mxu0 0.0
    %1342 = vmatpush1.msra.mxu0 %v1280
    %1343 = vmatprep.subr.mxu0 0.0
    %1344 = vmatpush2.msra.mxu0 0.0
    %1345 = vmatprep.subr.mxu0 0.0
    %1346 = vmatpush2.msra.mxu0 0.0
    %1347 = vmatprep.subr.mxu0 0.0
    %1348 = vmatpush2.msra.mxu0 0.0
    %1349 = vmatprep.subr.mxu0 0.0
    %1350 = vmatpush2.msra.mxu0 0.0
    %1351 = vmatprep.subr.mxu0 0.0
    %1352 = vmatpush2.msra.mxu0 0.0
    %1353 = vmatprep.subr.mxu0 0.0
    %1354 = vmatpush2.msra.mxu0 0.0
    %1355 = vmatprep.subr.mxu0 0.0
    %1356 = vmatpush2.msra.mxu0 0.0
    %1357 = vmatprep.subr.mxu0 0.0
    %1358 = vmatpush2.msra.mxu0 0.0
    %1359 = vmatprep.subr.mxu0 0.0
    %1360 = vmatpush2.msra.mxu0 0.0
    %1361 = vmatprep.subr.mxu0 0.0
    %1362 = vmatpush2.msra.mxu0 0.0
    %1363 = vmatprep.subr.mxu0 0.0
    %1364 = vmatpush2.msra.mxu0 0.0
    %1365 = vmatprep.subr.mxu0 0.0
    %1366 = vmatpush2.msra.mxu0 0.0
    %1367 = vmatprep.subr.mxu0 0.0
    %1368 = vmatpush2.msra.mxu0 0.0
    %1369 = vmatprep.subr.mxu0 0.0
    %1370 = vmatpush2.msra.mxu0 0.0
    %1371 = vmatprep.subr.mxu0 0.0
    %1372 = vmatpush2.msra.mxu0 0.0
    %1373 = vmatprep.subr.mxu0 0.0
    %1374 = vmatpush2.msra.mxu0 0.0
    %1375 = vmatprep.mubr.f32.mxu0 0.0
    %1376 = vmatmul.mubr.f32.gmra.mxu0 %v1309
    %v1377 = vpop.f32.mrf.mxu0
    %v1378 = vadd.f32 0.0, %v1377
    %v1379 = vpop.f32.mrf.mxu0
    %1380 = vdwg.mxu0
    %v1381 = vadd.f32 %v1271, %v1378
    %s1382 = scalar_lea.vmem %s818, 2 [#allocation3]
    %v1383 = vld [vmem:[%s1382] ss:$2 sm:$0x3]
    %s1384 = scalar_lea.vmem %s818, 18 [#allocation3]
    %v1385 = vld [vmem:[%s1384] ss:$2 sm:$0x3]
    %s1386 = scalar_lea.vmem %s818, 42 [#allocation3]
    %v1387 = vld [vmem:[%s1386] ss:$2 sm:$0x3]
    %s1388 = scalar_lea.vmem %s818, 58 [#allocation3]
    %v1389 = vld [vmem:[%s1388] ss:$2 sm:$0x3]
    %v1390 = vld [vmem:[%s4 + $0x140] sm:$0xff]
    %v1391 = vld [vmem:[%s4 + $0x148] sm:$0xff]
    %v1392 = vld [vmem:[%s4 + $0x150] sm:$0xff]
    %v1393 = vld [vmem:[%s4 + $0x158] sm:$0xff]
    %v1394 = vld [vmem:[%s4 + $0x160] sm:$0xff]
    %v1395 = vld [vmem:[%s4 + $0x168] sm:$0xff]
    %v1396 = vld [vmem:[%s4 + $0x170] sm:$0xff]
    %v1397 = vld [vmem:[%s4 + $0x178] sm:$0xff]
    %v1402 = vcombine.low %v1383, %v1385
    %v1403 = vcombine.low %v1387, %v1389
    %v1405 = vunpack.c.l.s4 1983009808
    %v1406 = vunpack.c.0.s8 %v1405
    %v1407 = vlaneseq
    %v1408 = vshrl.u32 %v1407, 7
    %v1409 = vsub.s32 %v1406, %v1408
    %v1410 = vrot.slane %v1402, %v1409
    %v1412 = vunpack.c.l.s4 1983009808
    %v1413 = vunpack.c.0.s8 %v1412
    %v1414 = vlaneseq
    %v1415 = vshrl.u32 %v1414, 7
    %v1416 = vsub.s32 %v1413, %v1415
    %v1417 = vrot.slane %v1403, %v1416
    %v1418 = vcombine.low %v1410, %v1417
    %v1419 = vsel %vm304, %v1418, 0
    %1421 = vmatprep.subr.mxu0 0.0
    %1422 = vmatpush1.msra.mxu0 0.0
    %1423 = vmatprep.subr.mxu0 0.0
    %1424 = vmatpush1.msra.mxu0 0.0
    %1425 = vmatprep.subr.mxu0 0.0
    %1426 = vmatpush1.msra.mxu0 0.0
    %1427 = vmatprep.subr.mxu0 0.0
    %1428 = vmatpush1.msra.mxu0 0.0
    %1429 = vmatprep.subr.mxu0 0.0
    %1430 = vmatpush1.msra.mxu0 0.0
    %1431 = vmatprep.subr.mxu0 0.0
    %1432 = vmatpush1.msra.mxu0 0.0
    %1433 = vmatprep.subr.mxu0 0.0
    %1434 = vmatpush1.msra.mxu0 0.0
    %1435 = vmatprep.subr.mxu0 0.0
    %1436 = vmatpush1.msra.mxu0 0.0
    %1437 = vmatprep.subr.mxu0 0.0
    %1438 = vmatpush1.msra.mxu0 %v1397
    %1439 = vmatprep.subr.mxu0 0.0
    %1440 = vmatpush1.msra.mxu0 %v1396
    %1441 = vmatprep.subr.mxu0 0.0
    %1442 = vmatpush1.msra.mxu0 %v1395
    %1443 = vmatprep.subr.mxu0 0.0
    %1444 = vmatpush1.msra.mxu0 %v1394
    %1445 = vmatprep.subr.mxu0 0.0
    %1446 = vmatpush1.msra.mxu0 %v1393
    %1447 = vmatprep.subr.mxu0 0.0
    %1448 = vmatpush1.msra.mxu0 %v1392
    %1449 = vmatprep.subr.mxu0 0.0
    %1450 = vmatpush1.msra.mxu0 %v1391
    %1451 = vmatprep.subr.mxu0 0.0
    %1452 = vmatpush1.msra.mxu0 %v1390
    %1453 = vmatprep.subr.mxu0 0.0
    %1454 = vmatpush2.msra.mxu0 0.0
    %1455 = vmatprep.subr.mxu0 0.0
    %1456 = vmatpush2.msra.mxu0 0.0
    %1457 = vmatprep.subr.mxu0 0.0
    %1458 = vmatpush2.msra.mxu0 0.0
    %1459 = vmatprep.subr.mxu0 0.0
    %1460 = vmatpush2.msra.mxu0 0.0
    %1461 = vmatprep.subr.mxu0 0.0
    %1462 = vmatpush2.msra.mxu0 0.0
    %1463 = vmatprep.subr.mxu0 0.0
    %1464 = vmatpush2.msra.mxu0 0.0
    %1465 = vmatprep.subr.mxu0 0.0
    %1466 = vmatpush2.msra.mxu0 0.0
    %1467 = vmatprep.subr.mxu0 0.0
    %1468 = vmatpush2.msra.mxu0 0.0
    %1469 = vmatprep.subr.mxu0 0.0
    %1470 = vmatpush2.msra.mxu0 0.0
    %1471 = vmatprep.subr.mxu0 0.0
    %1472 = vmatpush2.msra.mxu0 0.0
    %1473 = vmatprep.subr.mxu0 0.0
    %1474 = vmatpush2.msra.mxu0 0.0
    %1475 = vmatprep.subr.mxu0 0.0
    %1476 = vmatpush2.msra.mxu0 0.0
    %1477 = vmatprep.subr.mxu0 0.0
    %1478 = vmatpush2.msra.mxu0 0.0
    %1479 = vmatprep.subr.mxu0 0.0
    %1480 = vmatpush2.msra.mxu0 0.0
    %1481 = vmatprep.subr.mxu0 0.0
    %1482 = vmatpush2.msra.mxu0 0.0
    %1483 = vmatprep.subr.mxu0 0.0
    %1484 = vmatpush2.msra.mxu0 0.0
    %1485 = vmatprep.mubr.f32.mxu0 0.0
    %1486 = vmatmul.mubr.f32.gmra.mxu0 %v1419
    %v1487 = vpop.f32.mrf.mxu0
    %v1488 = vadd.f32 0.0, %v1487
    %v1489 = vpop.f32.mrf.mxu0
    %1490 = vdwg.mxu0
    %v1491 = vadd.f32 %v1381, %v1488
    %s1492 = scalar_lea.vmem [#allocation3], 16
    %v1493 = vld [vmem:[%s1492] ss:$2 sm:$0x3]
    %s1494 = scalar_lea.vmem %s1492, 16 [#allocation3]
    %v1495 = vld [vmem:[%s1494] ss:$2 sm:$0x3]
    %s1496 = scalar_lea.vmem %s1492, 40 [#allocation3]
    %v1497 = vld [vmem:[%s1496] ss:$2 sm:$0x3]
    %s1498 = scalar_lea.vmem %s1492, 56 [#allocation3]
    %v1499 = vld [vmem:[%s1498] ss:$2 sm:$0x3]
    %v1500 = vld [vmem:[%s4 + $0x180] sm:$0xff]
    %v1501 = vld [vmem:[%s4 + $0x188] sm:$0xff]
    %v1502 = vld [vmem:[%s4 + $0x190] sm:$0xff]
    %v1503 = vld [vmem:[%s4 + $0x198] sm:$0xff]
    %v1504 = vld [vmem:[%s4 + $0x1a0] sm:$0xff]
    %v1505 = vld [vmem:[%s4 + $0x1a8] sm:$0xff]
    %v1506 = vld [vmem:[%s4 + $0x1b0] sm:$0xff]
    %v1507 = vld [vmem:[%s4 + $0x1b8] sm:$0xff]
    %v1512 = vcombine.low %v1493, %v1495
    %v1513 = vcombine.low %v1497, %v1499
    %v1515 = vunpack.c.l.s4 1983009808
    %v1516 = vunpack.c.0.s8 %v1515
    %v1517 = vlaneseq
    %v1518 = vshrl.u32 %v1517, 7
    %v1519 = vsub.s32 %v1516, %v1518
    %v1520 = vrot.slane %v1512, %v1519
    %v1522 = vunpack.c.l.s4 1983009808
    %v1523 = vunpack.c.0.s8 %v1522
    %v1524 = vlaneseq
    %v1525 = vshrl.u32 %v1524, 7
    %v1526 = vsub.s32 %v1523, %v1525
    %v1527 = vrot.slane %v1513, %v1526
    %v1528 = vcombine.low %v1520, %v1527
    %v1529 = vsel %vm304, %v1528, 0
    %1531 = vmatprep.subr.mxu0 0.0
    %1532 = vmatpush1.msra.mxu0 0.0
    %1533 = vmatprep.subr.mxu0 0.0
    %1534 = vmatpush1.msra.mxu0 0.0
    %1535 = vmatprep.subr.mxu0 0.0
    %1536 = vmatpush1.msra.mxu0 0.0
    %1537 = vmatprep.subr.mxu0 0.0
    %1538 = vmatpush1.msra.mxu0 0.0
    %1539 = vmatprep.subr.mxu0 0.0
    %1540 = vmatpush1.msra.mxu0 0.0
    %1541 = vmatprep.subr.mxu0 0.0
    %1542 = vmatpush1.msra.mxu0 0.0
    %1543 = vmatprep.subr.mxu0 0.0
    %1544 = vmatpush1.msra.mxu0 0.0
    %1545 = vmatprep.subr.mxu0 0.0
    %1546 = vmatpush1.msra.mxu0 0.0
    %1547 = vmatprep.subr.mxu0 0.0
    %1548 = vmatpush1.msra.mxu0 %v1507
    %1549 = vmatprep.subr.mxu0 0.0
    %1550 = vmatpush1.msra.mxu0 %v1506
    %1551 = vmatprep.subr.mxu0 0.0
    %1552 = vmatpush1.msra.mxu0 %v1505
    %1553 = vmatprep.subr.mxu0 0.0
    %1554 = vmatpush1.msra.mxu0 %v1504
    %1555 = vmatprep.subr.mxu0 0.0
    %1556 = vmatpush1.msra.mxu0 %v1503
    %1557 = vmatprep.subr.mxu0 0.0
    %1558 = vmatpush1.msra.mxu0 %v1502
    %1559 = vmatprep.subr.mxu0 0.0
    %1560 = vmatpush1.msra.mxu0 %v1501
    %1561 = vmatprep.subr.mxu0 0.0
    %1562 = vmatpush1.msra.mxu0 %v1500
    %1563 = vmatprep.subr.mxu0 0.0
    %1564 = vmatpush2.msra.mxu0 0.0
    %1565 = vmatprep.subr.mxu0 0.0
    %1566 = vmatpush2.msra.mxu0 0.0
    %1567 = vmatprep.subr.mxu0 0.0
    %1568 = vmatpush2.msra.mxu0 0.0
    %1569 = vmatprep.subr.mxu0 0.0
    %1570 = vmatpush2.msra.mxu0 0.0
    %1571 = vmatprep.subr.mxu0 0.0
    %1572 = vmatpush2.msra.mxu0 0.0
    %1573 = vmatprep.subr.mxu0 0.0
    %1574 = vmatpush2.msra.mxu0 0.0
    %1575 = vmatprep.subr.mxu0 0.0
    %1576 = vmatpush2.msra.mxu0 0.0
    %1577 = vmatprep.subr.mxu0 0.0
    %1578 = vmatpush2.msra.mxu0 0.0
    %1579 = vmatprep.subr.mxu0 0.0
    %1580 = vmatpush2.msra.mxu0 0.0
    %1581 = vmatprep.subr.mxu0 0.0
    %1582 = vmatpush2.msra.mxu0 0.0
    %1583 = vmatprep.subr.mxu0 0.0
    %1584 = vmatpush2.msra.mxu0 0.0
    %1585 = vmatprep.subr.mxu0 0.0
    %1586 = vmatpush2.msra.mxu0 0.0
    %1587 = vmatprep.subr.mxu0 0.0
    %1588 = vmatpush2.msra.mxu0 0.0
    %1589 = vmatprep.subr.mxu0 0.0
    %1590 = vmatpush2.msra.mxu0 0.0
    %1591 = vmatprep.subr.mxu0 0.0
    %1592 = vmatpush2.msra.mxu0 0.0
    %1593 = vmatprep.subr.mxu0 0.0
    %1594 = vmatpush2.msra.mxu0 0.0
    %1595 = vmatprep.mubr.f32.mxu0 0.0
    %1596 = vmatmul.mubr.f32.gmra.mxu0 %v1529
    %v1597 = vpop.f32.mrf.mxu0
    %v1598 = vadd.f32 0.0, %v1597
    %v1599 = vpop.f32.mrf.mxu0
    %1600 = vdwg.mxu0
    %v1601 = vadd.f32 %v1491, %v1598
    %s1602 = scalar_lea.vmem %s1492, 1 [#allocation3]
    %v1603 = vld [vmem:[%s1602] ss:$2 sm:$0x3]
    %s1604 = scalar_lea.vmem %s1492, 17 [#allocation3]
    %v1605 = vld [vmem:[%s1604] ss:$2 sm:$0x3]
    %s1606 = scalar_lea.vmem %s1492, 41 [#allocation3]
    %v1607 = vld [vmem:[%s1606] ss:$2 sm:$0x3]
    %s1608 = scalar_lea.vmem %s1492, 57 [#allocation3]
    %v1609 = vld [vmem:[%s1608] ss:$2 sm:$0x3]
    %v1610 = vld [vmem:[%s4 + $0x1c0] sm:$0xff]
    %v1611 = vld [vmem:[%s4 + $0x1c8] sm:$0xff]
    %v1612 = vld [vmem:[%s4 + $0x1d0] sm:$0xff]
    %v1613 = vld [vmem:[%s4 + $0x1d8] sm:$0xff]
    %v1614 = vld [vmem:[%s4 + $0x1e0] sm:$0xff]
    %v1615 = vld [vmem:[%s4 + $0x1e8] sm:$0xff]
    %v1616 = vld [vmem:[%s4 + $0x1f0] sm:$0xff]
    %v1617 = vld [vmem:[%s4 + $0x1f8] sm:$0xff]
    %v1622 = vcombine.low %v1603, %v1605
    %v1623 = vcombine.low %v1607, %v1609
    %v1625 = vunpack.c.l.s4 1983009808
    %v1626 = vunpack.c.0.s8 %v1625
    %v1627 = vlaneseq
    %v1628 = vshrl.u32 %v1627, 7
    %v1629 = vsub.s32 %v1626, %v1628
    %v1630 = vrot.slane %v1622, %v1629
    %v1632 = vunpack.c.l.s4 1983009808
    %v1633 = vunpack.c.0.s8 %v1632
    %v1634 = vlaneseq
    %v1635 = vshrl.u32 %v1634, 7
    %v1636 = vsub.s32 %v1633, %v1635
    %v1637 = vrot.slane %v1623, %v1636
    %v1638 = vcombine.low %v1630, %v1637
    %v1639 = vsel %vm304, %v1638, 0
    %1641 = vmatprep.subr.mxu0 0.0
    %1642 = vmatpush1.msra.mxu0 0.0
    %1643 = vmatprep.subr.mxu0 0.0
    %1644 = vmatpush1.msra.mxu0 0.0
    %1645 = vmatprep.subr.mxu0 0.0
    %1646 = vmatpush1.msra.mxu0 0.0
    %1647 = vmatprep.subr.mxu0 0.0
    %1648 = vmatpush1.msra.mxu0 0.0
    %1649 = vmatprep.subr.mxu0 0.0
    %1650 = vmatpush1.msra.mxu0 0.0
    %1651 = vmatprep.subr.mxu0 0.0
    %1652 = vmatpush1.msra.mxu0 0.0
    %1653 = vmatprep.subr.mxu0 0.0
    %1654 = vmatpush1.msra.mxu0 0.0
    %1655 = vmatprep.subr.mxu0 0.0
    %1656 = vmatpush1.msra.mxu0 0.0
    %1657 = vmatprep.subr.mxu0 0.0
    %1658 = vmatpush1.msra.mxu0 %v1617
    %1659 = vmatprep.subr.mxu0 0.0
    %1660 = vmatpush1.msra.mxu0 %v1616
    %1661 = vmatprep.subr.mxu0 0.0
    %1662 = vmatpush1.msra.mxu0 %v1615
    %1663 = vmatprep.subr.mxu0 0.0
    %1664 = vmatpush1.msra.mxu0 %v1614
    %1665 = vmatprep.subr.mxu0 0.0
    %1666 = vmatpush1.msra.mxu0 %v1613
    %1667 = vmatprep.subr.mxu0 0.0
    %1668 = vmatpush1.msra.mxu0 %v1612
    %1669 = vmatprep.subr.mxu0 0.0
    %1670 = vmatpush1.msra.mxu0 %v1611
    %1671 = vmatprep.subr.mxu0 0.0
    %1672 = vmatpush1.msra.mxu0 %v1610
    %1673 = vmatprep.subr.mxu0 0.0
    %1674 = vmatpush2.msra.mxu0 0.0
    %1675 = vmatprep.subr.mxu0 0.0
    %1676 = vmatpush2.msra.mxu0 0.0
    %1677 = vmatprep.subr.mxu0 0.0
    %1678 = vmatpush2.msra.mxu0 0.0
    %1679 = vmatprep.subr.mxu0 0.0
    %1680 = vmatpush2.msra.mxu0 0.0
    %1681 = vmatprep.subr.mxu0 0.0
    %1682 = vmatpush2.msra.mxu0 0.0
    %1683 = vmatprep.subr.mxu0 0.0
    %1684 = vmatpush2.msra.mxu0 0.0
    %1685 = vmatprep.subr.mxu0 0.0
    %1686 = vmatpush2.msra.mxu0 0.0
    %1687 = vmatprep.subr.mxu0 0.0
    %1688 = vmatpush2.msra.mxu0 0.0
    %1689 = vmatprep.subr.mxu0 0.0
    %1690 = vmatpush2.msra.mxu0 0.0
    %1691 = vmatprep.subr.mxu0 0.0
    %1692 = vmatpush2.msra.mxu0 0.0
    %1693 = vmatprep.subr.mxu0 0.0
    %1694 = vmatpush2.msra.mxu0 0.0
    %1695 = vmatprep.subr.mxu0 0.0
    %1696 = vmatpush2.msra.mxu0 0.0
    %1697 = vmatprep.subr.mxu0 0.0
    %1698 = vmatpush2.msra.mxu0 0.0
    %1699 = vmatprep.subr.mxu0 0.0
    %1700 = vmatpush2.msra.mxu0 0.0
    %1701 = vmatprep.subr.mxu0 0.0
    %1702 = vmatpush2.msra.mxu0 0.0
    %1703 = vmatprep.subr.mxu0 0.0
    %1704 = vmatpush2.msra.mxu0 0.0
    %1705 = vmatprep.mubr.f32.mxu0 0.0
    %1706 = vmatmul.mubr.f32.gmra.mxu0 %v1639
    %v1707 = vpop.f32.mrf.mxu0
    %v1708 = vadd.f32 0.0, %v1707
    %v1709 = vpop.f32.mrf.mxu0
    %1710 = vdwg.mxu0
    %v1711 = vadd.f32 %v1601, %v1708
    %s1712 = scalar_lea.vmem %s1492, 2 [#allocation3]
    %v1713 = vld [vmem:[%s1712] ss:$2 sm:$0x3]
    %s1714 = scalar_lea.vmem %s1492, 18 [#allocation3]
    %v1715 = vld [vmem:[%s1714] ss:$2 sm:$0x3]
    %s1716 = scalar_lea.vmem %s1492, 42 [#allocation3]
    %v1717 = vld [vmem:[%s1716] ss:$2 sm:$0x3]
    %s1718 = scalar_lea.vmem %s1492, 58 [#allocation3]
    %v1719 = vld [vmem:[%s1718] ss:$2 sm:$0x3]
    %v1720 = vld [vmem:[%s4 + $0x200] sm:$0xff]
    %v1721 = vld [vmem:[%s4 + $0x208] sm:$0xff]
    %v1722 = vld [vmem:[%s4 + $0x210] sm:$0xff]
    %v1723 = vld [vmem:[%s4 + $0x218] sm:$0xff]
    %v1724 = vld [vmem:[%s4 + $0x220] sm:$0xff]
    %v1725 = vld [vmem:[%s4 + $0x228] sm:$0xff]
    %v1726 = vld [vmem:[%s4 + $0x230] sm:$0xff]
    %v1727 = vld [vmem:[%s4 + $0x238] sm:$0xff]
    %v1732 = vcombine.low %v1713, %v1715
    %v1733 = vcombine.low %v1717, %v1719
    %v1735 = vunpack.c.l.s4 1983009808
    %v1736 = vunpack.c.0.s8 %v1735
    %v1737 = vlaneseq
    %v1738 = vshrl.u32 %v1737, 7
    %v1739 = vsub.s32 %v1736, %v1738
    %v1740 = vrot.slane %v1732, %v1739
    %v1742 = vunpack.c.l.s4 1983009808
    %v1743 = vunpack.c.0.s8 %v1742
    %v1744 = vlaneseq
    %v1745 = vshrl.u32 %v1744, 7
    %v1746 = vsub.s32 %v1743, %v1745
    %v1747 = vrot.slane %v1733, %v1746
    %v1748 = vcombine.low %v1740, %v1747
    %v1749 = vsel %vm304, %v1748, 0
    %1751 = vmatprep.subr.mxu0 0.0
    %1752 = vmatpush1.msra.mxu0 0.0
    %1753 = vmatprep.subr.mxu0 0.0
    %1754 = vmatpush1.msra.mxu0 0.0
    %1755 = vmatprep.subr.mxu0 0.0
    %1756 = vmatpush1.msra.mxu0 0.0
    %1757 = vmatprep.subr.mxu0 0.0
    %1758 = vmatpush1.msra.mxu0 0.0
    %1759 = vmatprep.subr.mxu0 0.0
    %1760 = vmatpush1.msra.mxu0 0.0
    %1761 = vmatprep.subr.mxu0 0.0
    %1762 = vmatpush1.msra.mxu0 0.0
    %1763 = vmatprep.subr.mxu0 0.0
    %1764 = vmatpush1.msra.mxu0 0.0
    %1765 = vmatprep.subr.mxu0 0.0
    %1766 = vmatpush1.msra.mxu0 0.0
    %1767 = vmatprep.subr.mxu0 0.0
    %1768 = vmatpush1.msra.mxu0 %v1727
    %1769 = vmatprep.subr.mxu0 0.0
    %1770 = vmatpush1.msra.mxu0 %v1726
    %1771 = vmatprep.subr.mxu0 0.0
    %1772 = vmatpush1.msra.mxu0 %v1725
    %1773 = vmatprep.subr.mxu0 0.0
    %1774 = vmatpush1.msra.mxu0 %v1724
    %1775 = vmatprep.subr.mxu0 0.0
    %1776 = vmatpush1.msra.mxu0 %v1723
    %1777 = vmatprep.subr.mxu0 0.0
    %1778 = vmatpush1.msra.mxu0 %v1722
    %1779 = vmatprep.subr.mxu0 0.0
    %1780 = vmatpush1.msra.mxu0 %v1721
    %1781 = vmatprep.subr.mxu0 0.0
    %1782 = vmatpush1.msra.mxu0 %v1720
    %1783 = vmatprep.subr.mxu0 0.0
    %1784 = vmatpush2.msra.mxu0 0.0
    %1785 = vmatprep.subr.mxu0 0.0
    %1786 = vmatpush2.msra.mxu0 0.0
    %1787 = vmatprep.subr.mxu0 0.0
    %1788 = vmatpush2.msra.mxu0 0.0
    %1789 = vmatprep.subr.mxu0 0.0
    %1790 = vmatpush2.msra.mxu0 0.0
    %1791 = vmatprep.subr.mxu0 0.0
    %1792 = vmatpush2.msra.mxu0 0.0
    %1793 = vmatprep.subr.mxu0 0.0
    %1794 = vmatpush2.msra.mxu0 0.0
    %1795 = vmatprep.subr.mxu0 0.0
    %1796 = vmatpush2.msra.mxu0 0.0
    %1797 = vmatprep.subr.mxu0 0.0
    %1798 = vmatpush2.msra.mxu0 0.0
    %1799 = vmatprep.subr.mxu0 0.0
    %1800 = vmatpush2.msra.mxu0 0.0
    %1801 = vmatprep.subr.mxu0 0.0
    %1802 = vmatpush2.msra.mxu0 0.0
    %1803 = vmatprep.subr.mxu0 0.0
    %1804 = vmatpush2.msra.mxu0 0.0
    %1805 = vmatprep.subr.mxu0 0.0
    %1806 = vmatpush2.msra.mxu0 0.0
    %1807 = vmatprep.subr.mxu0 0.0
    %1808 = vmatpush2.msra.mxu0 0.0
    %1809 = vmatprep.subr.mxu0 0.0
    %1810 = vmatpush2.msra.mxu0 0.0
    %1811 = vmatprep.subr.mxu0 0.0
    %1812 = vmatpush2.msra.mxu0 0.0
    %1813 = vmatprep.subr.mxu0 0.0
    %1814 = vmatpush2.msra.mxu0 0.0
    %1815 = vmatprep.mubr.f32.mxu0 0.0
    %1816 = vmatmul.mubr.f32.gmra.mxu0 %v1749
    %v1817 = vpop.f32.mrf.mxu0
    %v1818 = vadd.f32 0.0, %v1817
    %v1819 = vpop.f32.mrf.mxu0
    %1820 = vdwg.mxu0
    %v1821 = vadd.f32 %v1711, %v1818
    %v1822 = vld [vmem:[%s5] sm:$0x1]
    %v1823 = vld [vmem:[%s6] sm:$0x1]
    %vm1824 = vcmask 130048
    %v1825 = vsel %vm1824, %v1821, 0.0
    %v1826 = vrot.slane %v1825, 4
    %v1827 = vadd.f32 %v1825, %v1826
    %v1828 = vrot.slane %v1827, 2
    %v1829 = vadd.f32 %v1827, %v1828
    %v1830 = vrot.slane %v1829, 1
    %v1831 = vadd.f32 %v1829, %v1830
    %v1832 = vmul.f32 %v1831, 0.125
    %v1833 = vsub.f32 %v1821, %v1832
    %v1834 = vmul.f32 %v1833, %v1833
    %v1835 = vsel %vm1824, %v1834, 0.0
    %v1836 = vrot.slane %v1835, 4
    %v1837 = vadd.f32 %v1835, %v1836
    %v1838 = vrot.slane %v1837, 2
    %v1839 = vadd.f32 %v1837, %v1838
    %v1840 = vrot.slane %v1839, 1
    %v1841 = vadd.f32 %v1839, %v1840
    %v1842 = vmul.f32 %v1841, 0.125
    %v1843 = vadd.f32 %v1842, 1e-05
    %v1844 = vrsqrt.pop %v1843
    %v1845 = vmul.f32 %v1833, %v1844
    %v1847 = vlaneseq
    %v1848 = vshrl.u32 %v1847, 7
    %v1849 = vsub.s32 0, %v1848
    %v1850 = vrot.slane %v1822, %v1849
    %v1852 = vmul.f32 %v1845, %v1850
    %v1854 = vlaneseq
    %v1855 = vshrl.u32 %v1854, 7
    %v1856 = vsub.s32 0, %v1855
    %v1857 = vrot.slane %v1823, %v1856
    %v1859 = vadd.f32 %v1852, %v1857
    %v1860 = vmax.f32 %v1859, 0.0
    %v1861 = vld [vmem:[%s7] sm:$0xff]
    %v1862 = vld [vmem:[%s7 + $0x8] sm:$0xff]
    %v1863 = vld [vmem:[%s7 + $0x10] sm:$0xff]
    %v1864 = vld [vmem:[%s7 + $0x18] sm:$0xff]
    %v1865 = vld [vmem:[%s7 + $0x20] sm:$0xff]
    %v1866 = vld [vmem:[%s7 + $0x28] sm:$0xff]
    %v1867 = vld [vmem:[%s7 + $0x30] sm:$0xff]
    %v1868 = vld [vmem:[%s7 + $0x38] sm:$0xff]
    %1869 = vmatprep.subr.mxu0 0.0
    %1870 = vmatpush1.msra.mxu0 0.0
    %1871 = vmatprep.subr.mxu0 0.0
    %1872 = vmatpush1.msra.mxu0 0.0
    %1873 = vmatprep.subr.mxu0 0.0
    %1874 = vmatpush1.msra.mxu0 0.0
    %1875 = vmatprep.subr.mxu0 0.0
    %1876 = vmatpush1.msra.mxu0 0.0
    %1877 = vmatprep.subr.mxu0 0.0
    %1878 = vmatpush1.msra.mxu0 0.0
    %1879 = vmatprep.subr.mxu0 0.0
    %1880 = vmatpush1.msra.mxu0 0.0
    %1881 = vmatprep.subr.mxu0 0.0
    %1882 = vmatpush1.msra.mxu0 0.0
    %1883 = vmatprep.subr.mxu0 0.0
    %1884 = vmatpush1.msra.mxu0 0.0
    %1885 = vmatprep.subr.mxu0 0.0
    %1886 = vmatpush1.msra.mxu0 %v1868
    %1887 = vmatprep.subr.mxu0 0.0
    %1888 = vmatpush1.msra.mxu0 %v1867
    %1889 = vmatprep.subr.mxu0 0.0
    %1890 = vmatpush1.msra.mxu0 %v1866
    %1891 = vmatprep.subr.mxu0 0.0
    %1892 = vmatpush1.msra.mxu0 %v1865
    %1893 = vmatprep.subr.mxu0 0.0
    %1894 = vmatpush1.msra.mxu0 %v1864
    %1895 = vmatprep.subr.mxu0 0.0
    %1896 = vmatpush1.msra.mxu0 %v1863
    %1897 = vmatprep.subr.mxu0 0.0
    %1898 = vmatpush1.msra.mxu0 %v1862
    %1899 = vmatprep.subr.mxu0 0.0
    %1900 = vmatpush1.msra.mxu0 %v1861
    %1901 = vmatprep.subr.mxu0 0.0
    %1902 = vmatpush2.msra.mxu0 0.0
    %1903 = vmatprep.subr.mxu0 0.0
    %1904 = vmatpush2.msra.mxu0 0.0
    %1905 = vmatprep.subr.mxu0 0.0
    %1906 = vmatpush2.msra.mxu0 0.0
    %1907 = vmatprep.subr.mxu0 0.0
    %1908 = vmatpush2.msra.mxu0 0.0
    %1909 = vmatprep.subr.mxu0 0.0
    %1910 = vmatpush2.msra.mxu0 0.0
    %1911 = vmatprep.subr.mxu0 0.0
    %1912 = vmatpush2.msra.mxu0 0.0
    %1913 = vmatprep.subr.mxu0 0.0
    %1914 = vmatpush2.msra.mxu0 0.0
    %1915 = vmatprep.subr.mxu0 0.0
    %1916 = vmatpush2.msra.mxu0 0.0
    %1917 = vmatprep.subr.mxu0 0.0
    %1918 = vmatpush2.msra.mxu0 0.0
    %1919 = vmatprep.subr.mxu0 0.0
    %1920 = vmatpush2.msra.mxu0 0.0
    %1921 = vmatprep.subr.mxu0 0.0
    %1922 = vmatpush2.msra.mxu0 0.0
    %1923 = vmatprep.subr.mxu0 0.0
    %1924 = vmatpush2.msra.mxu0 0.0
    %1925 = vmatprep.subr.mxu0 0.0
    %1926 = vmatpush2.msra.mxu0 0.0
    %1927 = vmatprep.subr.mxu0 0.0
    %1928 = vmatpush2.msra.mxu0 0.0
    %1929 = vmatprep.subr.mxu0 0.0
    %1930 = vmatpush2.msra.mxu0 0.0
    %1931 = vmatprep.subr.mxu0 0.0
    %1932 = vmatpush2.msra.mxu0 0.0
    %1933 = vmatprep.mubr.f32.mxu0 0.0
    %1934 = vmatmul.mubr.f32.gmra.mxu0 %v1309
    %v1935 = vpop.f32.mrf.mxu0
    %v1936 = vadd.f32 0.0, %v1935
    %v1937 = vpop.f32.mrf.mxu0
    %1938 = vdwg.mxu0
    %v1939 = vld [vmem:[%s8] sm:$0x1]
    %v1940 = vld [vmem:[%s9] sm:$0x1]
    %v1941 = vsel %vm1824, %v1936, 0.0
    %v1942 = vrot.slane %v1941, 4
    %v1943 = vadd.f32 %v1941, %v1942
    %v1944 = vrot.slane %v1943, 2
    %v1945 = vadd.f32 %v1943, %v1944
    %v1946 = vrot.slane %v1945, 1
    %v1947 = vadd.f32 %v1945, %v1946
    %v1948 = vmul.f32 %v1947, 0.125
    %v1949 = vsub.f32 %v1936, %v1948
    %v1950 = vmul.f32 %v1949, %v1949
    %v1951 = vsel %vm1824, %v1950, 0.0
    %v1952 = vrot.slane %v1951, 4
    %v1953 = vadd.f32 %v1951, %v1952
    %v1954 = vrot.slane %v1953, 2
    %v1955 = vadd.f32 %v1953, %v1954
    %v1956 = vrot.slane %v1955, 1
    %v1957 = vadd.f32 %v1955, %v1956
    %v1958 = vmul.f32 %v1957, 0.125
    %v1959 = vadd.f32 %v1958, 1e-05
    %v1960 = vrsqrt.pop %v1959
    %v1961 = vmul.f32 %v1949, %v1960
    %v1963 = vlaneseq
    %v1964 = vshrl.u32 %v1963, 7
    %v1965 = vsub.s32 0, %v1964
    %v1966 = vrot.slane %v1939, %v1965
    %v1968 = vmul.f32 %v1961, %v1966
    %v1970 = vlaneseq
    %v1971 = vshrl.u32 %v1970, 7
    %v1972 = vsub.s32 0, %v1971
    %v1973 = vrot.slane %v1940, %v1972
    %v1975 = vadd.f32 %v1968, %v1973
    %vm1976 = vcmask 125952
    %1977 = vst.msk [vmem:[#allocation4] sm:$0xf] %vm1976, 0.0
    %1978 = vst.msk [vmem:[#allocation4 + $0x10] sm:$0xf] %vm1976, 0.0
    %s1979 = scalar_lea.vmem [#allocation4], 12
    %1980 = vst.msk [vmem:[%s1979] sm:$0xf] %vm1976, 0.0
    %1981 = vst.msk [vmem:[%s1979 + $0x10] sm:$0xf] %vm1976, 0.0
    %s1982 = scalar_lea.vmem [#allocation4], 4
    %vm1983 = vcmask 122880
    %1984 = vst.msk [vmem:[%s1982] sm:$0x1] %vm1983, 0.0
    %1985 = vst.msk [vmem:[%s1982 + $0x4] sm:$0x1] %vm1983, 0.0
    %1986 = vst.msk [vmem:[%s1982 + $0x10] sm:$0x1] %vm1983, 0.0
    %1987 = vst.msk [vmem:[%s1982 + $0x14] sm:$0x1] %vm1983, 0.0
    %1988 = vst.msk [vmem:[%s1982 + $0x3] sm:$0x1] %vm1983, 0.0
    %1989 = vst.msk [vmem:[%s1982 + $0x7] sm:$0x1] %vm1983, 0.0
    %1990 = vst.msk [vmem:[%s1982 + $0x13] sm:$0x1] %vm1983, 0.0
    %1991 = vst.msk [vmem:[%s1982 + $0x17] sm:$0x1] %vm1983, 0.0
    %v1993 = vcombine.high %v1860, %v1860
    %v1995 = vunpack.c.l.s4 1983009808
    %v1996 = vunpack.c.0.s8 %v1995
    %v1997 = vlaneseq
    %v1998 = vshrl.u32 %v1997, 7
    %v1999 = vsub.s32 %v1996, %v1998
    %v2000 = vrot.slane %v1860, %v1999
    %v2002 = vunpack.c.l.s4 1983009808
    %v2003 = vunpack.c.0.s8 %v2002
    %v2004 = vlaneseq
    %v2005 = vshrl.u32 %v2004, 7
    %v2006 = vsub.s32 %v2003, %v2005
    %v2007 = vrot.slane %v1993, %v2006
    %v2008 = vcombine.high %v2000, %v2000
    %v2009 = vcombine.high %v2007, %v2007
    %vm2014 = vcmask 123904
    %2015 = vst.msk [vmem:[%s1982 + $0x1] sm:$0x3] %vm2014, %v2000
    %2016 = vst.msk [vmem:[%s1982 + $0x5] sm:$0x3] %vm2014, %v2008
    %2017 = vst.msk [vmem:[%s1982 + $0x11] sm:$0x3] %vm2014, %v2007
    %2018 = vst.msk [vmem:[%s1982 + $0x15] sm:$0x3] %vm2014, %v2009
    %v2019 = vld [vmem:[#allocation4] sm:$0x3]
    %v2020 = vld [vmem:[#allocation4 + $0x4] sm:$0x3]
    %v2021 = vld [vmem:[#allocation4 + $0x10] sm:$0x3]
    %v2022 = vld [vmem:[#allocation4 + $0x14] sm:$0x3]
    %v2023 = vld [vmem:[%s10] sm:$0xff]
    %v2024 = vld [vmem:[%s10 + $0x8] sm:$0xff]
    %v2025 = vld [vmem:[#allocation4 + $0x1] sm:$0x3]
    %v2026 = vld [vmem:[#allocation4 + $0x5] sm:$0x3]
    %v2027 = vld [vmem:[#allocation4 + $0x11] sm:$0x3]
    %v2028 = vld [vmem:[#allocation4 + $0x15] sm:$0x3]
    %v2029 = vld [vmem:[%s10 + $0x10] sm:$0xff]
    %v2030 = vld [vmem:[%s10 + $0x18] sm:$0xff]
    %v2035 = vcombine.low %v2025, %v2026
    %v2036 = vcombine.low %v2027, %v2028
    %v2038 = vunpack.c.l.s4 1983009808
    %v2039 = vunpack.c.0.s8 %v2038
    %v2040 = vlaneseq
    %v2041 = vshrl.u32 %v2040, 7
    %v2042 = vsub.s32 %v2039, %v2041
    %v2043 = vrot.slane %v2035, %v2042
    %v2045 = vunpack.c.l.s4 1983009808
    %v2046 = vunpack.c.0.s8 %v2045
    %v2047 = vlaneseq
    %v2048 = vshrl.u32 %v2047, 7
    %v2049 = vsub.s32 %v2046, %v2048
    %v2050 = vrot.slane %v2036, %v2049
    %v2051 = vcombine.low %v2043, %v2050
    %v2052 = vsel %vm1824, %v2051, 0
    %2054 = vmatprep.subr.mxu0 0.0
    %2055 = vmatpush1.msra.mxu0 0.0
    %2056 = vmatprep.subr.mxu0 0.0
    %2057 = vmatpush1.msra.mxu0 0.0
    %2058 = vmatprep.subr.mxu0 0.0
    %2059 = vmatpush1.msra.mxu0 0.0
    %2060 = vmatprep.subr.mxu0 0.0
    %2061 = vmatpush1.msra.mxu0 0.0
    %2062 = vmatprep.subr.mxu0 0.0
    %2063 = vmatpush1.msra.mxu0 0.0
    %2064 = vmatprep.subr.mxu0 0.0
    %2065 = vmatpush1.msra.mxu0 0.0
    %2066 = vmatprep.subr.mxu0 0.0
    %2067 = vmatpush1.msra.mxu0 0.0
    %2068 = vmatprep.subr.mxu0 0.0
    %2069 = vmatpush1.msra.mxu0 0.0
    %2070 = vmatprep.subr.mxu0 0.0
    %2071 = vmatpush1.msra.mxu0 0.0
    %2072 = vmatprep.subr.mxu0 0.0
    %2073 = vmatpush1.msra.mxu0 0.0
    %2074 = vmatprep.subr.mxu0 0.0
    %2075 = vmatpush1.msra.mxu0 0.0
    %2076 = vmatprep.subr.mxu0 0.0
    %2077 = vmatpush1.msra.mxu0 0.0
    %2078 = vmatprep.subr.mxu0 0.0
    %2079 = vmatpush1.msra.mxu0 0.0
    %2080 = vmatprep.subr.mxu0 0.0
    %2081 = vmatpush1.msra.mxu0 0.0
    %2082 = vmatprep.subr.mxu0 0.0
    %2083 = vmatpush1.msra.mxu0 %v2030
    %2084 = vmatprep.subr.mxu0 0.0
    %2085 = vmatpush1.msra.mxu0 %v2029
    %2086 = vmatprep.subr.mxu0 0.0
    %2087 = vmatpush2.msra.mxu0 0.0
    %2088 = vmatprep.subr.mxu0 0.0
    %2089 = vmatpush2.msra.mxu0 0.0
    %2090 = vmatprep.subr.mxu0 0.0
    %2091 = vmatpush2.msra.mxu0 0.0
    %2092 = vmatprep.subr.mxu0 0.0
    %2093 = vmatpush2.msra.mxu0 0.0
    %2094 = vmatprep.subr.mxu0 0.0
    %2095 = vmatpush2.msra.mxu0 0.0
    %2096 = vmatprep.subr.mxu0 0.0
    %2097 = vmatpush2.msra.mxu0 0.0
    %2098 = vmatprep.subr.mxu0 0.0
    %2099 = vmatpush2.msra.mxu0 0.0
    %2100 = vmatprep.subr.mxu0 0.0
    %2101 = vmatpush2.msra.mxu0 0.0
    %2102 = vmatprep.subr.mxu0 0.0
    %2103 = vmatpush2.msra.mxu0 0.0
    %2104 = vmatprep.subr.mxu0 0.0
    %2105 = vmatpush2.msra.mxu0 0.0
    %2106 = vmatprep.subr.mxu0 0.0
    %2107 = vmatpush2.msra.mxu0 0.0
    %2108 = vmatprep.subr.mxu0 0.0
    %2109 = vmatpush2.msra.mxu0 0.0
    %2110 = vmatprep.subr.mxu0 0.0
    %2111 = vmatpush2.msra.mxu0 0.0
    %2112 = vmatprep.subr.mxu0 0.0
    %2113 = vmatpush2.msra.mxu0 0.0
    %2114 = vmatprep.subr.mxu0 0.0
    %2115 = vmatpush2.msra.mxu0 0.0
    %2116 = vmatprep.subr.mxu0 0.0
    %2117 = vmatpush2.msra.mxu0 0.0
    %2118 = vmatprep.mubr.f32.mxu0 0.0
    %2119 = vmatmul.mubr.f32.gmra.mxu0 %v2052
    %v2120 = vpop.f32.mrf.mxu0
    %v2121 = vadd.f32 0.0, %v2120
    %v2122 = vpop.f32.mrf.mxu0
    %2123 = vdwg.mxu0
    %v2128 = vcombine.low %v2019, %v2020
    %v2129 = vcombine.low %v2021, %v2022
    %v2131 = vunpack.c.l.s4 1983009808
    %v2132 = vunpack.c.0.s8 %v2131
    %v2133 = vlaneseq
    %v2134 = vshrl.u32 %v2133, 7
    %v2135 = vsub.s32 %v2132, %v2134
    %v2136 = vrot.slane %v2128, %v2135
    %v2138 = vunpack.c.l.s4 1983009808
    %v2139 = vunpack.c.0.s8 %v2138
    %v2140 = vlaneseq
    %v2141 = vshrl.u32 %v2140, 7
    %v2142 = vsub.s32 %v2139, %v2141
    %v2143 = vrot.slane %v2129, %v2142
    %v2144 = vcombine.low %v2136, %v2143
    %v2145 = vsel %vm1824, %v2144, 0
    %2147 = vmatprep.subr.mxu0 0.0
    %2148 = vmatpush1.msra.mxu0 0.0
    %2149 = vmatprep.subr.mxu0 0.0
    %2150 = vmatpush1.msra.mxu0 0.0
    %2151 = vmatprep.subr.mxu0 0.0
    %2152 = vmatpush1.msra.mxu0 0.0
    %2153 = vmatprep.subr.mxu0 0.0
    %2154 = vmatpush1.msra.mxu0 0.0
    %2155 = vmatprep.subr.mxu0 0.0
    %2156 = vmatpush1.msra.mxu0 0.0
    %2157 = vmatprep.subr.mxu0 0.0
    %2158 = vmatpush1.msra.mxu0 0.0
    %2159 = vmatprep.subr.mxu0 0.0
    %2160 = vmatpush1.msra.mxu0 0.0
    %2161 = vmatprep.subr.mxu0 0.0
    %2162 = vmatpush1.msra.mxu0 0.0
    %2163 = vmatprep.subr.mxu0 0.0
    %2164 = vmatpush1.msra.mxu0 0.0
    %2165 = vmatprep.subr.mxu0 0.0
    %2166 = vmatpush1.msra.mxu0 0.0
    %2167 = vmatprep.subr.mxu0 0.0
    %2168 = vmatpush1.msra.mxu0 0.0
    %2169 = vmatprep.subr.mxu0 0.0
    %2170 = vmatpush1.msra.mxu0 0.0
    %2171 = vmatprep.subr.mxu0 0.0
    %2172 = vmatpush1.msra.mxu0 0.0
    %2173 = vmatprep.subr.mxu0 0.0
    %2174 = vmatpush1.msra.mxu0 0.0
    %2175 = vmatprep.subr.mxu0 0.0
    %2176 = vmatpush1.msra.mxu0 %v2024
    %2177 = vmatprep.subr.mxu0 0.0
    %2178 = vmatpush1.msra.mxu0 %v2023
    %2179 = vmatprep.subr.mxu0 0.0
    %2180 = vmatpush2.msra.mxu0 0.0
    %2181 = vmatprep.subr.mxu0 0.0
    %2182 = vmatpush2.msra.mxu0 0.0
    %2183 = vmatprep.subr.mxu0 0.0
    %2184 = vmatpush2.msra.mxu0 0.0
    %2185 = vmatprep.subr.mxu0 0.0
    %2186 = vmatpush2.msra.mxu0 0.0
    %2187 = vmatprep.subr.mxu0 0.0
    %2188 = vmatpush2.msra.mxu0 0.0
    %2189 = vmatprep.subr.mxu0 0.0
    %2190 = vmatpush2.msra.mxu0 0.0
    %2191 = vmatprep.subr.mxu0 0.0
    %2192 = vmatpush2.msra.mxu0 0.0
    %2193 = vmatprep.subr.mxu0 0.0
    %2194 = vmatpush2.msra.mxu0 0.0
    %2195 = vmatprep.subr.mxu0 0.0
    %2196 = vmatpush2.msra.mxu0 0.0
    %2197 = vmatprep.subr.mxu0 0.0
    %2198 = vmatpush2.msra.mxu0 0.0
    %2199 = vmatprep.subr.mxu0 0.0
    %2200 = vmatpush2.msra.mxu0 0.0
    %2201 = vmatprep.subr.mxu0 0.0
    %2202 = vmatpush2.msra.mxu0 0.0
    %2203 = vmatprep.subr.mxu0 0.0
    %2204 = vmatpush2.msra.mxu0 0.0
    %2205 = vmatprep.subr.mxu0 0.0
    %2206 = vmatpush2.msra.mxu0 0.0
    %2207 = vmatprep.subr.mxu0 0.0
    %2208 = vmatpush2.msra.mxu0 0.0
    %2209 = vmatprep.subr.mxu0 0.0
    %2210 = vmatpush2.msra.mxu0 0.0
    %2211 = vmatprep.mubr.f32.mxu0 0.0
    %2212 = vmatmul.mubr.f32.gmra.mxu0 %v2145
    %v2213 = vpop.f32.mrf.mxu0
    %v2214 = vadd.f32 %v2121, %v2213
    %v2215 = vpop.f32.mrf.mxu0
    %2216 = vdwg.mxu0
    %v2217 = vld [vmem:[#allocation4 + $0x2] sm:$0x3]
    %v2218 = vld [vmem:[#allocation4 + $0x6] sm:$0x3]
    %v2219 = vld [vmem:[#allocation4 + $0x12] sm:$0x3]
    %v2220 = vld [vmem:[#allocation4 + $0x16] sm:$0x3]
    %v2221 = vld [vmem:[%s10 + $0x20] sm:$0xff]
    %v2222 = vld [vmem:[%s10 + $0x28] sm:$0xff]
    %v2227 = vcombine.low %v2217, %v2218
    %v2228 = vcombine.low %v2219, %v2220
    %v2230 = vunpack.c.l.s4 1983009808
    %v2231 = vunpack.c.0.s8 %v2230
    %v2232 = vlaneseq
    %v2233 = vshrl.u32 %v2232, 7
    %v2234 = vsub.s32 %v2231, %v2233
    %v2235 = vrot.slane %v2227, %v2234
    %v2237 = vunpack.c.l.s4 1983009808
    %v2238 = vunpack.c.0.s8 %v2237
    %v2239 = vlaneseq
    %v2240 = vshrl.u32 %v2239, 7
    %v2241 = vsub.s32 %v2238, %v2240
    %v2242 = vrot.slane %v2228, %v2241
    %v2243 = vcombine.low %v2235, %v2242
    %v2244 = vsel %vm1824, %v2243, 0
    %2246 = vmatprep.subr.mxu0 0.0
    %2247 = vmatpush1.msra.mxu0 0.0
    %2248 = vmatprep.subr.mxu0 0.0
    %2249 = vmatpush1.msra.mxu0 0.0
    %2250 = vmatprep.subr.mxu0 0.0
    %2251 = vmatpush1.msra.mxu0 0.0
    %2252 = vmatprep.subr.mxu0 0.0
    %2253 = vmatpush1.msra.mxu0 0.0
    %2254 = vmatprep.subr.mxu0 0.0
    %2255 = vmatpush1.msra.mxu0 0.0
    %2256 = vmatprep.subr.mxu0 0.0
    %2257 = vmatpush1.msra.mxu0 0.0
    %2258 = vmatprep.subr.mxu0 0.0
    %2259 = vmatpush1.msra.mxu0 0.0
    %2260 = vmatprep.subr.mxu0 0.0
    %2261 = vmatpush1.msra.mxu0 0.0
    %2262 = vmatprep.subr.mxu0 0.0
    %2263 = vmatpush1.msra.mxu0 0.0
    %2264 = vmatprep.subr.mxu0 0.0
    %2265 = vmatpush1.msra.mxu0 0.0
    %2266 = vmatprep.subr.mxu0 0.0
    %2267 = vmatpush1.msra.mxu0 0.0
    %2268 = vmatprep.subr.mxu0 0.0
    %2269 = vmatpush1.msra.mxu0 0.0
    %2270 = vmatprep.subr.mxu0 0.0
    %2271 = vmatpush1.msra.mxu0 0.0
    %2272 = vmatprep.subr.mxu0 0.0
    %2273 = vmatpush1.msra.mxu0 0.0
    %2274 = vmatprep.subr.mxu0 0.0
    %2275 = vmatpush1.msra.mxu0 %v2222
    %2276 = vmatprep.subr.mxu0 0.0
    %2277 = vmatpush1.msra.mxu0 %v2221
    %2278 = vmatprep.subr.mxu0 0.0
    %2279 = vmatpush2.msra.mxu0 0.0
    %2280 = vmatprep.subr.mxu0 0.0
    %2281 = vmatpush2.msra.mxu0 0.0
    %2282 = vmatprep.subr.mxu0 0.0
    %2283 = vmatpush2.msra.mxu0 0.0
    %2284 = vmatprep.subr.mxu0 0.0
    %2285 = vmatpush2.msra.mxu0 0.0
    %2286 = vmatprep.subr.mxu0 0.0
    %2287 = vmatpush2.msra.mxu0 0.0
    %2288 = vmatprep.subr.mxu0 0.0
    %2289 = vmatpush2.msra.mxu0 0.0
    %2290 = vmatprep.subr.mxu0 0.0
    %2291 = vmatpush2.msra.mxu0 0.0
    %2292 = vmatprep.subr.mxu0 0.0
    %2293 = vmatpush2.msra.mxu0 0.0
    %2294 = vmatprep.subr.mxu0 0.0
    %2295 = vmatpush2.msra.mxu0 0.0
    %2296 = vmatprep.subr.mxu0 0.0
    %2297 = vmatpush2.msra.mxu0 0.0
    %2298 = vmatprep.subr.mxu0 0.0
    %2299 = vmatpush2.msra.mxu0 0.0
    %2300 = vmatprep.subr.mxu0 0.0
    %2301 = vmatpush2.msra.mxu0 0.0
    %2302 = vmatprep.subr.mxu0 0.0
    %2303 = vmatpush2.msra.mxu0 0.0
    %2304 = vmatprep.subr.mxu0 0.0
    %2305 = vmatpush2.msra.mxu0 0.0
    %2306 = vmatprep.subr.mxu0 0.0
    %2307 = vmatpush2.msra.mxu0 0.0
    %2308 = vmatprep.subr.mxu0 0.0
    %2309 = vmatpush2.msra.mxu0 0.0
    %2310 = vmatprep.mubr.f32.mxu0 0.0
    %2311 = vmatmul.mubr.f32.gmra.mxu0 %v2244
    %v2312 = vpop.f32.mrf.mxu0
    %v2313 = vadd.f32 0.0, %v2312
    %v2314 = vpop.f32.mrf.mxu0
    %2315 = vdwg.mxu0
    %v2316 = vadd.f32 %v2214, %v2313
    %v2317 = vld [vmem:[%s1982] sm:$0x3]
    %v2318 = vld [vmem:[%s1982 + $0x4] sm:$0x3]
    %v2319 = vld [vmem:[%s1982 + $0x10] sm:$0x3]
    %v2320 = vld [vmem:[%s1982 + $0x14] sm:$0x3]
    %v2321 = vld [vmem:[%s10 + $0x30] sm:$0xff]
    %v2322 = vld [vmem:[%s10 + $0x38] sm:$0xff]
    %v2327 = vcombine.low %v2317, %v2318
    %v2328 = vcombine.low %v2319, %v2320
    %v2330 = vunpack.c.l.s4 1983009808
    %v2331 = vunpack.c.0.s8 %v2330
    %v2332 = vlaneseq
    %v2333 = vshrl.u32 %v2332, 7
    %v2334 = vsub.s32 %v2331, %v2333
    %v2335 = vrot.slane %v2327, %v2334
    %v2337 = vunpack.c.l.s4 1983009808
    %v2338 = vunpack.c.0.s8 %v2337
    %v2339 = vlaneseq
    %v2340 = vshrl.u32 %v2339, 7
    %v2341 = vsub.s32 %v2338, %v2340
    %v2342 = vrot.slane %v2328, %v2341
    %v2343 = vcombine.low %v2335, %v2342
    %v2344 = vsel %vm1824, %v2343, 0
    %2346 = vmatprep.subr.mxu0 0.0
    %2347 = vmatpush1.msra.mxu0 0.0
    %2348 = vmatprep.subr.mxu0 0.0
    %2349 = vmatpush1.msra.mxu0 0.0
    %2350 = vmatprep.subr.mxu0 0.0
    %2351 = vmatpush1.msra.mxu0 0.0
    %2352 = vmatprep.subr.mxu0 0.0
    %2353 = vmatpush1.msra.mxu0 0.0
    %2354 = vmatprep.subr.mxu0 0.0
    %2355 = vmatpush1.msra.mxu0 0.0
    %2356 = vmatprep.subr.mxu0 0.0
    %2357 = vmatpush1.msra.mxu0 0.0
    %2358 = vmatprep.subr.mxu0 0.0
    %2359 = vmatpush1.msra.mxu0 0.0
    %2360 = vmatprep.subr.mxu0 0.0
    %2361 = vmatpush1.msra.mxu0 0.0
    %2362 = vmatprep.subr.mxu0 0.0
    %2363 = vmatpush1.msra.mxu0 0.0
    %2364 = vmatprep.subr.mxu0 0.0
    %2365 = vmatpush1.msra.mxu0 0.0
    %2366 = vmatprep.subr.mxu0 0.0
    %2367 = vmatpush1.msra.mxu0 0.0
    %2368 = vmatprep.subr.mxu0 0.0
    %2369 = vmatpush1.msra.mxu0 0.0
    %2370 = vmatprep.subr.mxu0 0.0
    %2371 = vmatpush1.msra.mxu0 0.0
    %2372 = vmatprep.subr.mxu0 0.0
    %2373 = vmatpush1.msra.mxu0 0.0
    %2374 = vmatprep.subr.mxu0 0.0
    %2375 = vmatpush1.msra.mxu0 %v2322
    %2376 = vmatprep.subr.mxu0 0.0
    %2377 = vmatpush1.msra.mxu0 %v2321
    %2378 = vmatprep.subr.mxu0 0.0
    %2379 = vmatpush2.msra.mxu0 0.0
    %2380 = vmatprep.subr.mxu0 0.0
    %2381 = vmatpush2.msra.mxu0 0.0
    %2382 = vmatprep.subr.mxu0 0.0
    %2383 = vmatpush2.msra.mxu0 0.0
    %2384 = vmatprep.subr.mxu0 0.0
    %2385 = vmatpush2.msra.mxu0 0.0
    %2386 = vmatprep.subr.mxu0 0.0
    %2387 = vmatpush2.msra.mxu0 0.0
    %2388 = vmatprep.subr.mxu0 0.0
    %2389 = vmatpush2.msra.mxu0 0.0
    %2390 = vmatprep.subr.mxu0 0.0
    %2391 = vmatpush2.msra.mxu0 0.0
    %2392 = vmatprep.subr.mxu0 0.0
    %2393 = vmatpush2.msra.mxu0 0.0
    %2394 = vmatprep.subr.mxu0 0.0
    %2395 = vmatpush2.msra.mxu0 0.0
    %2396 = vmatprep.subr.mxu0 0.0
    %2397 = vmatpush2.msra.mxu0 0.0
    %2398 = vmatprep.subr.mxu0 0.0
    %2399 = vmatpush2.msra.mxu0 0.0
    %2400 = vmatprep.subr.mxu0 0.0
    %2401 = vmatpush2.msra.mxu0 0.0
    %2402 = vmatprep.subr.mxu0 0.0
    %2403 = vmatpush2.msra.mxu0 0.0
    %2404 = vmatprep.subr.mxu0 0.0
    %2405 = vmatpush2.msra.mxu0 0.0
    %2406 = vmatprep.subr.mxu0 0.0
    %2407 = vmatpush2.msra.mxu0 0.0
    %2408 = vmatprep.subr.mxu0 0.0
    %2409 = vmatpush2.msra.mxu0 0.0
    %2410 = vmatprep.mubr.f32.mxu0 0.0
    %2411 = vmatmul.mubr.f32.gmra.mxu0 %v2344
    %v2412 = vpop.f32.mrf.mxu0
    %v2413 = vadd.f32 0.0, %v2412
    %v2414 = vpop.f32.mrf.mxu0
    %2415 = vdwg.mxu0
    %v2416 = vadd.f32 %v2316, %v2413
    %v2417 = vld [vmem:[%s1982 + $0x1] sm:$0x3]
    %v2418 = vld [vmem:[%s1982 + $0x5] sm:$0x3]
    %v2419 = vld [vmem:[%s1982 + $0x11] sm:$0x3]
    %v2420 = vld [vmem:[%s1982 + $0x15] sm:$0x3]
    %v2421 = vld [vmem:[%s10 + $0x40] sm:$0xff]
    %v2422 = vld [vmem:[%s10 + $0x48] sm:$0xff]
    %v2427 = vcombine.low %v2417, %v2418
    %v2428 = vcombine.low %v2419, %v2420
    %v2430 = vunpack.c.l.s4 1983009808
    %v2431 = vunpack.c.0.s8 %v2430
    %v2432 = vlaneseq
    %v2433 = vshrl.u32 %v2432, 7
    %v2434 = vsub.s32 %v2431, %v2433
    %v2435 = vrot.slane %v2427, %v2434
    %v2437 = vunpack.c.l.s4 1983009808
    %v2438 = vunpack.c.0.s8 %v2437
    %v2439 = vlaneseq
    %v2440 = vshrl.u32 %v2439, 7
    %v2441 = vsub.s32 %v2438, %v2440
    %v2442 = vrot.slane %v2428, %v2441
    %v2443 = vcombine.low %v2435, %v2442
    %v2444 = vsel %vm1824, %v2443, 0
    %2446 = vmatprep.subr.mxu0 0.0
    %2447 = vmatpush1.msra.mxu0 0.0
    %2448 = vmatprep.subr.mxu0 0.0
    %2449 = vmatpush1.msra.mxu0 0.0
    %2450 = vmatprep.subr.mxu0 0.0
    %2451 = vmatpush1.msra.mxu0 0.0
    %2452 = vmatprep.subr.mxu0 0.0
    %2453 = vmatpush1.msra.mxu0 0.0
    %2454 = vmatprep.subr.mxu0 0.0
    %2455 = vmatpush1.msra.mxu0 0.0
    %2456 = vmatprep.subr.mxu0 0.0
    %2457 = vmatpush1.msra.mxu0 0.0
    %2458 = vmatprep.subr.mxu0 0.0
    %2459 = vmatpush1.msra.mxu0 0.0
    %2460 = vmatprep.subr.mxu0 0.0
    %2461 = vmatpush1.msra.mxu0 0.0
    %2462 = vmatprep.subr.mxu0 0.0
    %2463 = vmatpush1.msra.mxu0 0.0
    %2464 = vmatprep.subr.mxu0 0.0
    %2465 = vmatpush1.msra.mxu0 0.0
    %2466 = vmatprep.subr.mxu0 0.0
    %2467 = vmatpush1.msra.mxu0 0.0
    %2468 = vmatprep.subr.mxu0 0.0
    %2469 = vmatpush1.msra.mxu0 0.0
    %2470 = vmatprep.subr.mxu0 0.0
    %2471 = vmatpush1.msra.mxu0 0.0
    %2472 = vmatprep.subr.mxu0 0.0
    %2473 = vmatpush1.msra.mxu0 0.0
    %2474 = vmatprep.subr.mxu0 0.0
    %2475 = vmatpush1.msra.mxu0 %v2422
    %2476 = vmatprep.subr.mxu0 0.0
    %2477 = vmatpush1.msra.mxu0 %v2421
    %2478 = vmatprep.subr.mxu0 0.0
    %2479 = vmatpush2.msra.mxu0 0.0
    %2480 = vmatprep.subr.mxu0 0.0
    %2481 = vmatpush2.msra.mxu0 0.0
    %2482 = vmatprep.subr.mxu0 0.0
    %2483 = vmatpush2.msra.mxu0 0.0
    %2484 = vmatprep.subr.mxu0 0.0
    %2485 = vmatpush2.msra.mxu0 0.0
    %2486 = vmatprep.subr.mxu0 0.0
    %2487 = vmatpush2.msra.mxu0 0.0
    %2488 = vmatprep.subr.mxu0 0.0
    %2489 = vmatpush2.msra.mxu0 0.0
    %2490 = vmatprep.subr.mxu0 0.0
    %2491 = vmatpush2.msra.mxu0 0.0
    %2492 = vmatprep.subr.mxu0 0.0
    %2493 = vmatpush2.msra.mxu0 0.0
    %2494 = vmatprep.subr.mxu0 0.0
    %2495 = vmatpush2.msra.mxu0 0.0
    %2496 = vmatprep.subr.mxu0 0.0
    %2497 = vmatpush2.msra.mxu0 0.0
    %2498 = vmatprep.subr.mxu0 0.0
    %2499 = vmatpush2.msra.mxu0 0.0
    %2500 = vmatprep.subr.mxu0 0.0
    %2501 = vmatpush2.msra.mxu0 0.0
    %2502 = vmatprep.subr.mxu0 0.0
    %2503 = vmatpush2.msra.mxu0 0.0
    %2504 = vmatprep.subr.mxu0 0.0
    %2505 = vmatpush2.msra.mxu0 0.0
    %2506 = vmatprep.subr.mxu0 0.0
    %2507 = vmatpush2.msra.mxu0 0.0
    %2508 = vmatprep.subr.mxu0 0.0
    %2509 = vmatpush2.msra.mxu0 0.0
    %2510 = vmatprep.mubr.f32.mxu0 0.0
    %2511 = vmatmul.mubr.f32.gmra.mxu0 %v2444
    %v2512 = vpop.f32.mrf.mxu0
    %v2513 = vadd.f32 0.0, %v2512
    %v2514 = vpop.f32.mrf.mxu0
    %2515 = vdwg.mxu0
    %v2516 = vadd.f32 %v2416, %v2513
    %v2517 = vld [vmem:[%s1982 + $0x2] sm:$0x3]
    %v2518 = vld [vmem:[%s1982 + $0x6] sm:$0x3]
    %v2519 = vld [vmem:[%s1982 + $0x12] sm:$0x3]
    %v2520 = vld [vmem:[%s1982 + $0x16] sm:$0x3]
    %v2521 = vld [vmem:[%s10 + $0x50] sm:$0xff]
    %v2522 = vld [vmem:[%s10 + $0x58] sm:$0xff]
    %v2527 = vcombine.low %v2517, %v2518
    %v2528 = vcombine.low %v2519, %v2520
    %v2530 = vunpack.c.l.s4 1983009808
    %v2531 = vunpack.c.0.s8 %v2530
    %v2532 = vlaneseq
    %v2533 = vshrl.u32 %v2532, 7
    %v2534 = vsub.s32 %v2531, %v2533
    %v2535 = vrot.slane %v2527, %v2534
    %v2537 = vunpack.c.l.s4 1983009808
    %v2538 = vunpack.c.0.s8 %v2537
    %v2539 = vlaneseq
    %v2540 = vshrl.u32 %v2539, 7
    %v2541 = vsub.s32 %v2538, %v2540
    %v2542 = vrot.slane %v2528, %v2541
    %v2543 = vcombine.low %v2535, %v2542
    %v2544 = vsel %vm1824, %v2543, 0
    %2546 = vmatprep.subr.mxu0 0.0
    %2547 = vmatpush1.msra.mxu0 0.0
    %2548 = vmatprep.subr.mxu0 0.0
    %2549 = vmatpush1.msra.mxu0 0.0
    %2550 = vmatprep.subr.mxu0 0.0
    %2551 = vmatpush1.msra.mxu0 0.0
    %2552 = vmatprep.subr.mxu0 0.0
    %2553 = vmatpush1.msra.mxu0 0.0
    %2554 = vmatprep.subr.mxu0 0.0
    %2555 = vmatpush1.msra.mxu0 0.0
    %2556 = vmatprep.subr.mxu0 0.0
    %2557 = vmatpush1.msra.mxu0 0.0
    %2558 = vmatprep.subr.mxu0 0.0
    %2559 = vmatpush1.msra.mxu0 0.0
    %2560 = vmatprep.subr.mxu0 0.0
    %2561 = vmatpush1.msra.mxu0 0.0
    %2562 = vmatprep.subr.mxu0 0.0
    %2563 = vmatpush1.msra.mxu0 0.0
    %2564 = vmatprep.subr.mxu0 0.0
    %2565 = vmatpush1.msra.mxu0 0.0
    %2566 = vmatprep.subr.mxu0 0.0
    %2567 = vmatpush1.msra.mxu0 0.0
    %2568 = vmatprep.subr.mxu0 0.0
    %2569 = vmatpush1.msra.mxu0 0.0
    %2570 = vmatprep.subr.mxu0 0.0
    %2571 = vmatpush1.msra.mxu0 0.0
    %2572 = vmatprep.subr.mxu0 0.0
    %2573 = vmatpush1.msra.mxu0 0.0
    %2574 = vmatprep.subr.mxu0 0.0
    %2575 = vmatpush1.msra.mxu0 %v2522
    %2576 = vmatprep.subr.mxu0 0.0
    %2577 = vmatpush1.msra.mxu0 %v2521
    %2578 = vmatprep.subr.mxu0 0.0
    %2579 = vmatpush2.msra.mxu0 0.0
    %2580 = vmatprep.subr.mxu0 0.0
    %2581 = vmatpush2.msra.mxu0 0.0
    %2582 = vmatprep.subr.mxu0 0.0
    %2583 = vmatpush2.msra.mxu0 0.0
    %2584 = vmatprep.subr.mxu0 0.0
    %2585 = vmatpush2.msra.mxu0 0.0
    %2586 = vmatprep.subr.mxu0 0.0
    %2587 = vmatpush2.msra.mxu0 0.0
    %2588 = vmatprep.subr.mxu0 0.0
    %2589 = vmatpush2.msra.mxu0 0.0
    %2590 = vmatprep.subr.mxu0 0.0
    %2591 = vmatpush2.msra.mxu0 0.0
    %2592 = vmatprep.subr.mxu0 0.0
    %2593 = vmatpush2.msra.mxu0 0.0
    %2594 = vmatprep.subr.mxu0 0.0
    %2595 = vmatpush2.msra.mxu0 0.0
    %2596 = vmatprep.subr.mxu0 0.0
    %2597 = vmatpush2.msra.mxu0 0.0
    %2598 = vmatprep.subr.mxu0 0.0
    %2599 = vmatpush2.msra.mxu0 0.0
    %2600 = vmatprep.subr.mxu0 0.0
    %2601 = vmatpush2.msra.mxu0 0.0
    %2602 = vmatprep.subr.mxu0 0.0
    %2603 = vmatpush2.msra.mxu0 0.0
    %2604 = vmatprep.subr.mxu0 0.0
    %2605 = vmatpush2.msra.mxu0 0.0
    %2606 = vmatprep.subr.mxu0 0.0
    %2607 = vmatpush2.msra.mxu0 0.0
    %2608 = vmatprep.subr.mxu0 0.0
    %2609 = vmatpush2.msra.mxu0 0.0
    %2610 = vmatprep.mubr.f32.mxu0 0.0
    %2611 = vmatmul.mubr.f32.gmra.mxu0 %v2544
    %v2612 = vpop.f32.mrf.mxu0
    %v2613 = vadd.f32 0.0, %v2612
    %v2614 = vpop.f32.mrf.mxu0
    %2615 = vdwg.mxu0
    %v2616 = vadd.f32 %v2516, %v2613
    %s2617 = scalar_lea.vmem [#allocation4], 8
    %v2618 = vld [vmem:[%s2617] sm:$0x3]
    %v2619 = vld [vmem:[%s2617 + $0x4] sm:$0x3]
    %v2620 = vld [vmem:[%s2617 + $0x10] sm:$0x3]
    %v2621 = vld [vmem:[%s2617 + $0x14] sm:$0x3]
    %v2622 = vld [vmem:[%s10 + $0x60] sm:$0xff]
    %v2623 = vld [vmem:[%s10 + $0x68] sm:$0xff]
    %v2628 = vcombine.low %v2618, %v2619
    %v2629 = vcombine.low %v2620, %v2621
    %v2631 = vunpack.c.l.s4 1983009808
    %v2632 = vunpack.c.0.s8 %v2631
    %v2633 = vlaneseq
    %v2634 = vshrl.u32 %v2633, 7
    %v2635 = vsub.s32 %v2632, %v2634
    %v2636 = vrot.slane %v2628, %v2635
    %v2638 = vunpack.c.l.s4 1983009808
    %v2639 = vunpack.c.0.s8 %v2638
    %v2640 = vlaneseq
    %v2641 = vshrl.u32 %v2640, 7
    %v2642 = vsub.s32 %v2639, %v2641
    %v2643 = vrot.slane %v2629, %v2642
    %v2644 = vcombine.low %v2636, %v2643
    %v2645 = vsel %vm1824, %v2644, 0
    %2647 = vmatprep.subr.mxu0 0.0
    %2648 = vmatpush1.msra.mxu0 0.0
    %2649 = vmatprep.subr.mxu0 0.0
    %2650 = vmatpush1.msra.mxu0 0.0
    %2651 = vmatprep.subr.mxu0 0.0
    %2652 = vmatpush1.msra.mxu0 0.0
    %2653 = vmatprep.subr.mxu0 0.0
    %2654 = vmatpush1.msra.mxu0 0.0
    %2655 = vmatprep.subr.mxu0 0.0
    %2656 = vmatpush1.msra.mxu0 0.0
    %2657 = vmatprep.subr.mxu0 0.0
    %2658 = vmatpush1.msra.mxu0 0.0
    %2659 = vmatprep.subr.mxu0 0.0
    %2660 = vmatpush1.msra.mxu0 0.0
    %2661 = vmatprep.subr.mxu0 0.0
    %2662 = vmatpush1.msra.mxu0 0.0
    %2663 = vmatprep.subr.mxu0 0.0
    %2664 = vmatpush1.msra.mxu0 0.0
    %2665 = vmatprep.subr.mxu0 0.0
    %2666 = vmatpush1.msra.mxu0 0.0
    %2667 = vmatprep.subr.mxu0 0.0
    %2668 = vmatpush1.msra.mxu0 0.0
    %2669 = vmatprep.subr.mxu0 0.0
    %2670 = vmatpush1.msra.mxu0 0.0
    %2671 = vmatprep.subr.mxu0 0.0
    %2672 = vmatpush1.msra.mxu0 0.0
    %2673 = vmatprep.subr.mxu0 0.0
    %2674 = vmatpush1.msra.mxu0 0.0
    %2675 = vmatprep.subr.mxu0 0.0
    %2676 = vmatpush1.msra.mxu0 %v2623
    %2677 = vmatprep.subr.mxu0 0.0
    %2678 = vmatpush1.msra.mxu0 %v2622
    %2679 = vmatprep.subr.mxu0 0.0
    %2680 = vmatpush2.msra.mxu0 0.0
    %2681 = vmatprep.subr.mxu0 0.0
    %2682 = vmatpush2.msra.mxu0 0.0
    %2683 = vmatprep.subr.mxu0 0.0
    %2684 = vmatpush2.msra.mxu0 0.0
    %2685 = vmatprep.subr.mxu0 0.0
    %2686 = vmatpush2.msra.mxu0 0.0
    %2687 = vmatprep.subr.mxu0 0.0
    %2688 = vmatpush2.msra.mxu0 0.0
    %2689 = vmatprep.subr.mxu0 0.0
    %2690 = vmatpush2.msra.mxu0 0.0
    %2691 = vmatprep.subr.mxu0 0.0
    %2692 = vmatpush2.msra.mxu0 0.0
    %2693 = vmatprep.subr.mxu0 0.0
    %2694 = vmatpush2.msra.mxu0 0.0
    %2695 = vmatprep.subr.mxu0 0.0
    %2696 = vmatpush2.msra.mxu0 0.0
    %2697 = vmatprep.subr.mxu0 0.0
    %2698 = vmatpush2.msra.mxu0 0.0
    %2699 = vmatprep.subr.mxu0 0.0
    %2700 = vmatpush2.msra.mxu0 0.0
    %2701 = vmatprep.subr.mxu0 0.0
    %2702 = vmatpush2.msra.mxu0 0.0
    %2703 = vmatprep.subr.mxu0 0.0
    %2704 = vmatpush2.msra.mxu0 0.0
    %2705 = vmatprep.subr.mxu0 0.0
    %2706 = vmatpush2.msra.mxu0 0.0
    %2707 = vmatprep.subr.mxu0 0.0
    %2708 = vmatpush2.msra.mxu0 0.0
    %2709 = vmatprep.subr.mxu0 0.0
    %2710 = vmatpush2.msra.mxu0 0.0
    %2711 = vmatprep.mubr.f32.mxu0 0.0
    %2712 = vmatmul.mubr.f32.gmra.mxu0 %v2645
    %v2713 = vpop.f32.mrf.mxu0
    %v2714 = vadd.f32 0.0, %v2713
    %v2715 = vpop.f32.mrf.mxu0
    %2716 = vdwg.mxu0
    %v2717 = vadd.f32 %v2616, %v2714
    %v2718 = vld [vmem:[%s2617 + $0x1] sm:$0x3]
    %v2719 = vld [vmem:[%s2617 + $0x5] sm:$0x3]
    %v2720 = vld [vmem:[%s2617 + $0x11] sm:$0x3]
    %v2721 = vld [vmem:[%s2617 + $0x15] sm:$0x3]
    %v2722 = vld [vmem:[%s10 + $0x70] sm:$0xff]
    %v2723 = vld [vmem:[%s10 + $0x78] sm:$0xff]
    %v2728 = vcombine.low %v2718, %v2719
    %v2729 = vcombine.low %v2720, %v2721
    %v2731 = vunpack.c.l.s4 1983009808
    %v2732 = vunpack.c.0.s8 %v2731
    %v2733 = vlaneseq
    %v2734 = vshrl.u32 %v2733, 7
    %v2735 = vsub.s32 %v2732, %v2734
    %v2736 = vrot.slane %v2728, %v2735
    %v2738 = vunpack.c.l.s4 1983009808
    %v2739 = vunpack.c.0.s8 %v2738
    %v2740 = vlaneseq
    %v2741 = vshrl.u32 %v2740, 7
    %v2742 = vsub.s32 %v2739, %v2741
    %v2743 = vrot.slane %v2729, %v2742
    %v2744 = vcombine.low %v2736, %v2743
    %v2745 = vsel %vm1824, %v2744, 0
    %2747 = vmatprep.subr.mxu0 0.0
    %2748 = vmatpush1.msra.mxu0 0.0
    %2749 = vmatprep.subr.mxu0 0.0
    %2750 = vmatpush1.msra.mxu0 0.0
    %2751 = vmatprep.subr.mxu0 0.0
    %2752 = vmatpush1.msra.mxu0 0.0
    %2753 = vmatprep.subr.mxu0 0.0
    %2754 = vmatpush1.msra.mxu0 0.0
    %2755 = vmatprep.subr.mxu0 0.0
    %2756 = vmatpush1.msra.mxu0 0.0
    %2757 = vmatprep.subr.mxu0 0.0
    %2758 = vmatpush1.msra.mxu0 0.0
    %2759 = vmatprep.subr.mxu0 0.0
    %2760 = vmatpush1.msra.mxu0 0.0
    %2761 = vmatprep.subr.mxu0 0.0
    %2762 = vmatpush1.msra.mxu0 0.0
    %2763 = vmatprep.subr.mxu0 0.0
    %2764 = vmatpush1.msra.mxu0 0.0
    %2765 = vmatprep.subr.mxu0 0.0
    %2766 = vmatpush1.msra.mxu0 0.0
    %2767 = vmatprep.subr.mxu0 0.0
    %2768 = vmatpush1.msra.mxu0 0.0
    %2769 = vmatprep.subr.mxu0 0.0
    %2770 = vmatpush1.msra.mxu0 0.0
    %2771 = vmatprep.subr.mxu0 0.0
    %2772 = vmatpush1.msra.mxu0 0.0
    %2773 = vmatprep.subr.mxu0 0.0
    %2774 = vmatpush1.msra.mxu0 0.0
    %2775 = vmatprep.subr.mxu0 0.0
    %2776 = vmatpush1.msra.mxu0 %v2723
    %2777 = vmatprep.subr.mxu0 0.0
    %2778 = vmatpush1.msra.mxu0 %v2722
    %2779 = vmatprep.subr.mxu0 0.0
    %2780 = vmatpush2.msra.mxu0 0.0
    %2781 = vmatprep.subr.mxu0 0.0
    %2782 = vmatpush2.msra.mxu0 0.0
    %2783 = vmatprep.subr.mxu0 0.0
    %2784 = vmatpush2.msra.mxu0 0.0
    %2785 = vmatprep.subr.mxu0 0.0
    %2786 = vmatpush2.msra.mxu0 0.0
    %2787 = vmatprep.subr.mxu0 0.0
    %2788 = vmatpush2.msra.mxu0 0.0
    %2789 = vmatprep.subr.mxu0 0.0
    %2790 = vmatpush2.msra.mxu0 0.0
    %2791 = vmatprep.subr.mxu0 0.0
    %2792 = vmatpush2.msra.mxu0 0.0
    %2793 = vmatprep.subr.mxu0 0.0
    %2794 = vmatpush2.msra.mxu0 0.0
    %2795 = vmatprep.subr.mxu0 0.0
    %2796 = vmatpush2.msra.mxu0 0.0
    %2797 = vmatprep.subr.mxu0 0.0
    %2798 = vmatpush2.msra.mxu0 0.0
    %2799 = vmatprep.subr.mxu0 0.0
    %2800 = vmatpush2.msra.mxu0 0.0
    %2801 = vmatprep.subr.mxu0 0.0
    %2802 = vmatpush2.msra.mxu0 0.0
    %2803 = vmatprep.subr.mxu0 0.0
    %2804 = vmatpush2.msra.mxu0 0.0
    %2805 = vmatprep.subr.mxu0 0.0
    %2806 = vmatpush2.msra.mxu0 0.0
    %2807 = vmatprep.subr.mxu0 0.0
    %2808 = vmatpush2.msra.mxu0 0.0
    %2809 = vmatprep.subr.mxu0 0.0
    %2810 = vmatpush2.msra.mxu0 0.0
    %2811 = vmatprep.mubr.f32.mxu0 0.0
    %2812 = vmatmul.mubr.f32.gmra.mxu0 %v2745
    %v2813 = vpop.f32.mrf.mxu0
    %v2814 = vadd.f32 0.0, %v2813
    %v2815 = vpop.f32.mrf.mxu0
    %2816 = vdwg.mxu0
    %v2817 = vadd.f32 %v2717, %v2814
    %v2818 = vld [vmem:[%s2617 + $0x2] sm:$0x3]
    %v2819 = vld [vmem:[%s2617 + $0x6] sm:$0x3]
    %v2820 = vld [vmem:[%s2617 + $0x12] sm:$0x3]
    %v2821 = vld [vmem:[%s2617 + $0x16] sm:$0x3]
    %v2822 = vld [vmem:[%s10 + $0x80] sm:$0xff]
    %v2823 = vld [vmem:[%s10 + $0x88] sm:$0xff]
    %v2828 = vcombine.low %v2818, %v2819
    %v2829 = vcombine.low %v2820, %v2821
    %v2831 = vunpack.c.l.s4 1983009808
    %v2832 = vunpack.c.0.s8 %v2831
    %v2833 = vlaneseq
    %v2834 = vshrl.u32 %v2833, 7
    %v2835 = vsub.s32 %v2832, %v2834
    %v2836 = vrot.slane %v2828, %v2835
    %v2838 = vunpack.c.l.s4 1983009808
    %v2839 = vunpack.c.0.s8 %v2838
    %v2840 = vlaneseq
    %v2841 = vshrl.u32 %v2840, 7
    %v2842 = vsub.s32 %v2839, %v2841
    %v2843 = vrot.slane %v2829, %v2842
    %v2844 = vcombine.low %v2836, %v2843
    %v2845 = vsel %vm1824, %v2844, 0
    %2847 = vmatprep.subr.mxu0 0.0
    %2848 = vmatpush1.msra.mxu0 0.0
    %2849 = vmatprep.subr.mxu0 0.0
    %2850 = vmatpush1.msra.mxu0 0.0
    %2851 = vmatprep.subr.mxu0 0.0
    %2852 = vmatpush1.msra.mxu0 0.0
    %2853 = vmatprep.subr.mxu0 0.0
    %2854 = vmatpush1.msra.mxu0 0.0
    %2855 = vmatprep.subr.mxu0 0.0
    %2856 = vmatpush1.msra.mxu0 0.0
    %2857 = vmatprep.subr.mxu0 0.0
    %2858 = vmatpush1.msra.mxu0 0.0
    %2859 = vmatprep.subr.mxu0 0.0
    %2860 = vmatpush1.msra.mxu0 0.0
    %2861 = vmatprep.subr.mxu0 0.0
    %2862 = vmatpush1.msra.mxu0 0.0
    %2863 = vmatprep.subr.mxu0 0.0
    %2864 = vmatpush1.msra.mxu0 0.0
    %2865 = vmatprep.subr.mxu0 0.0
    %2866 = vmatpush1.msra.mxu0 0.0
    %2867 = vmatprep.subr.mxu0 0.0
    %2868 = vmatpush1.msra.mxu0 0.0
    %2869 = vmatprep.subr.mxu0 0.0
    %2870 = vmatpush1.msra.mxu0 0.0
    %2871 = vmatprep.subr.mxu0 0.0
    %2872 = vmatpush1.msra.mxu0 0.0
    %2873 = vmatprep.subr.mxu0 0.0
    %2874 = vmatpush1.msra.mxu0 0.0
    %2875 = vmatprep.subr.mxu0 0.0
    %2876 = vmatpush1.msra.mxu0 %v2823
    %2877 = vmatprep.subr.mxu0 0.0
    %2878 = vmatpush1.msra.mxu0 %v2822
    %2879 = vmatprep.subr.mxu0 0.0
    %2880 = vmatpush2.msra.mxu0 0.0
    %2881 = vmatprep.subr.mxu0 0.0
    %2882 = vmatpush2.msra.mxu0 0.0
    %2883 = vmatprep.subr.mxu0 0.0
    %2884 = vmatpush2.msra.mxu0 0.0
    %2885 = vmatprep.subr.mxu0 0.0
    %2886 = vmatpush2.msra.mxu0 0.0
    %2887 = vmatprep.subr.mxu0 0.0
    %2888 = vmatpush2.msra.mxu0 0.0
    %2889 = vmatprep.subr.mxu0 0.0
    %2890 = vmatpush2.msra.mxu0 0.0
    %2891 = vmatprep.subr.mxu0 0.0
    %2892 = vmatpush2.msra.mxu0 0.0
    %2893 = vmatprep.subr.mxu0 0.0
    %2894 = vmatpush2.msra.mxu0 0.0
    %2895 = vmatprep.subr.mxu0 0.0
    %2896 = vmatpush2.msra.mxu0 0.0
    %2897 = vmatprep.subr.mxu0 0.0
    %2898 = vmatpush2.msra.mxu0 0.0
    %2899 = vmatprep.subr.mxu0 0.0
    %2900 = vmatpush2.msra.mxu0 0.0
    %2901 = vmatprep.subr.mxu0 0.0
    %2902 = vmatpush2.msra.mxu0 0.0
    %2903 = vmatprep.subr.mxu0 0.0
    %2904 = vmatpush2.msra.mxu0 0.0
    %2905 = vmatprep.subr.mxu0 0.0
    %2906 = vmatpush2.msra.mxu0 0.0
    %2907 = vmatprep.subr.mxu0 0.0
    %2908 = vmatpush2.msra.mxu0 0.0
    %2909 = vmatprep.subr.mxu0 0.0
    %2910 = vmatpush2.msra.mxu0 0.0
    %2911 = vmatprep.mubr.f32.mxu0 0.0
    %2912 = vmatmul.mubr.f32.gmra.mxu0 %v2845
    %v2913 = vpop.f32.mrf.mxu0
    %v2914 = vadd.f32 0.0, %v2913
    %v2915 = vpop.f32.mrf.mxu0
    %2916 = vdwg.mxu0
    %v2917 = vadd.f32 %v2817, %v2914
    %v2918 = vld [vmem:[%s11] sm:$0x1]
    %v2919 = vld [vmem:[%s12] sm:$0x1]
    %v2920 = vsel %vm1824, %v2917, 0.0
    %v2921 = vrot.slane %v2920, 4
    %v2922 = vadd.f32 %v2920, %v2921
    %v2923 = vrot.slane %v2922, 2
    %v2924 = vadd.f32 %v2922, %v2923
    %v2925 = vrot.slane %v2924, 1
    %v2926 = vadd.f32 %v2924, %v2925
    %v2927 = vmul.f32 %v2926, 0.125
    %v2928 = vsub.f32 %v2917, %v2927
    %v2929 = vmul.f32 %v2928, %v2928
    %v2930 = vsel %vm1824, %v2929, 0.0
    %v2931 = vrot.slane %v2930, 4
    %v2932 = vadd.f32 %v2930, %v2931
    %v2933 = vrot.slane %v2932, 2
    %v2934 = vadd.f32 %v2932, %v2933
    %v2935 = vrot.slane %v2934, 1
    %v2936 = vadd.f32 %v2934, %v2935
    %v2937 = vmul.f32 %v2936, 0.125
    %v2938 = vadd.f32 %v2937, 1e-05
    %v2939 = vrsqrt.pop %v2938
    %v2940 = vmul.f32 %v2928, %v2939
    %v2942 = vlaneseq
    %v2943 = vshrl.u32 %v2942, 7
    %v2944 = vsub.s32 0, %v2943
    %v2945 = vrot.slane %v2918, %v2944
    %v2947 = vmul.f32 %v2940, %v2945
    %v2949 = vlaneseq
    %v2950 = vshrl.u32 %v2949, 7
    %v2951 = vsub.s32 0, %v2950
    %v2952 = vrot.slane %v2919, %v2951
    %v2954 = vadd.f32 %v2947, %v2952
    %v2955 = vadd.f32 %v2954, %v1975
    %v2956 = vmax.f32 %v2955, 0.0
    %v2958 = vcombine.high %v2956, %v2956
    %v2960 = vsel %vm1976, %v2956, 0.0
    %v2961 = vrot.slane %v2960, 4
    %v2962 = vadd.f32 %v2960, %v2961
    %v2963 = vrot.slane %v2962, 2
    %v2964 = vadd.f32 %v2962, %v2963
    %v2965 = vrot.slane %v2964, 1
    %v2966 = vadd.f32 %v2964, %v2965
    %v2967 = vsel %vm1976, %v2958, 0.0
    %v2968 = vrot.slane %v2967, 4
    %v2969 = vadd.f32 %v2967, %v2968
    %v2970 = vrot.slane %v2969, 2
    %v2971 = vadd.f32 %v2969, %v2970
    %v2972 = vrot.slane %v2971, 1
    %v2973 = vadd.f32 %v2971, %v2972
    %v2974 = vrcp.pop 4.0
    %v2975 = vmul.f32 %v2966, %v2974
    %v2976 = vmul.f32 %v2973, %v2974
    %v2977 = vld [vmem:[%s13] sm:$0xff]
    %v2978 = vld [vmem:[%s13 + $0x8] sm:$0xff]
    %v2979 = vld [vmem:[%s14] sm:$0x1]
    %v2981 = vlaneseq
    %v2982 = vshrl.u32 %v2981, 7
    %v2983 = vsub.s32 0, %v2982
    %v2984 = vrot.slane %v2979, %v2983
    %vm2988 = vcmask 1041409
    %v2989 = vsel %vm2988, %v2976, %v2975
    %v2990 = vsel %vm1824, %v2989, 0
    %2992 = vmatprep.subr.mxu0 0.0
    %2993 = vmatpush1.msra.mxu0 0.0
    %2994 = vmatprep.subr.mxu0 0.0
    %2995 = vmatpush1.msra.mxu0 0.0
    %2996 = vmatprep.subr.mxu0 0.0
    %2997 = vmatpush1.msra.mxu0 0.0
    %2998 = vmatprep.subr.mxu0 0.0
    %2999 = vmatpush1.msra.mxu0 0.0
    %3000 = vmatprep.subr.mxu0 0.0
    %3001 = vmatpush1.msra.mxu0 0.0
    %3002 = vmatprep.subr.mxu0 0.0
    %3003 = vmatpush1.msra.mxu0 0.0
    %3004 = vmatprep.subr.mxu0 0.0
    %3005 = vmatpush1.msra.mxu0 0.0
    %3006 = vmatprep.subr.mxu0 0.0
    %3007 = vmatpush1.msra.mxu0 0.0
    %3008 = vmatprep.subr.mxu0 0.0
    %3009 = vmatpush1.msra.mxu0 0.0
    %3010 = vmatprep.subr.mxu0 0.0
    %3011 = vmatpush1.msra.mxu0 0.0
    %3012 = vmatprep.subr.mxu0 0.0
    %3013 = vmatpush1.msra.mxu0 0.0
    %3014 = vmatprep.subr.mxu0 0.0
    %3015 = vmatpush1.msra.mxu0 0.0
    %3016 = vmatprep.subr.mxu0 0.0
    %3017 = vmatpush1.msra.mxu0 0.0
    %3018 = vmatprep.subr.mxu0 0.0
    %3019 = vmatpush1.msra.mxu0 0.0
    %3020 = vmatprep.subr.mxu0 0.0
    %3021 = vmatpush1.msra.mxu0 %v2978
    %3022 = vmatprep.subr.mxu0 0.0
    %3023 = vmatpush1.msra.mxu0 %v2977
    %3024 = vmatprep.subr.mxu0 0.0
    %3025 = vmatpush2.msra.mxu0 0.0
    %3026 = vmatprep.subr.mxu0 0.0
    %3027 = vmatpush2.msra.mxu0 0.0
    %3028 = vmatprep.subr.mxu0 0.0
    %3029 = vmatpush2.msra.mxu0 0.0
    %3030 = vmatprep.subr.mxu0 0.0
    %3031 = vmatpush2.msra.mxu0 0.0
    %3032 = vmatprep.subr.mxu0 0.0
    %3033 = vmatpush2.msra.mxu0 0.0
    %3034 = vmatprep.subr.mxu0 0.0
    %3035 = vmatpush2.msra.mxu0 0.0
    %3036 = vmatprep.subr.mxu0 0.0
    %3037 = vmatpush2.msra.mxu0 0.0
    %3038 = vmatprep.subr.mxu0 0.0
    %3039 = vmatpush2.msra.mxu0 0.0
    %3040 = vmatprep.subr.mxu0 0.0
    %3041 = vmatpush2.msra.mxu0 0.0
    %3042 = vmatprep.subr.mxu0 0.0
    %3043 = vmatpush2.msra.mxu0 0.0
    %3044 = vmatprep.subr.mxu0 0.0
    %3045 = vmatpush2.msra.mxu0 0.0
    %3046 = vmatprep.subr.mxu0 0.0
    %3047 = vmatpush2.msra.mxu0 0.0
    %3048 = vmatprep.subr.mxu0 0.0
    %3049 = vmatpush2.msra.mxu0 0.0
    %3050 = vmatprep.subr.mxu0 0.0
    %3051 = vmatpush2.msra.mxu0 0.0
    %3052 = vmatprep.subr.mxu0 0.0
    %3053 = vmatpush2.msra.mxu0 0.0
    %3054 = vmatprep.subr.mxu0 0.0
    %3055 = vmatpush2.msra.mxu0 0.0
    %3056 = vmatprep.mubr.f32.mxu0 0.0
    %3057 = vmatmul.mubr.f32.gmra.mxu0 %v2990
    %v3058 = vpop.f32.mrf.mxu0
    %v3059 = vadd.f32 %v2984, %v3058
    %v3060 = vpop.f32.mrf.mxu0
    %3061 = vdwg.mxu0
    %vm3062 = vcmask 74752
    %3063 = vst.msk [vmem:[#allocation5] sm:$0x3] %vm3062, %v3059
    // Predicated region
    $region62: #{resnet18_client_forward.1} parent=1 // pred_check
      _
    $region63: #{resnet18_client_forward.1} parent=1 // pred_check_branch
      %3065 = sbr.rel (0) target = $region65
    $region64: #{resnet18_client_forward.1} parent=1 // pred_region
      %s3067 = ssub.s32 32, 32
      %3068 = vsyncadd [#allocation6], %s3067
      %s3070 = sshll.u32 [#allocation5], 4
      %s3071 = int_to_ptr.vmem [resolvable:$true] %s3070
      %3073 = dma.vmem_to_hbm [thread:$0]  %s3071, 32, %s15, [#allocation6]
    $region65: #{resnet18_client_forward.1} parent=1 // pred_fallthru
      _
    // Predicated region
    $region66: #{resnet18_client_forward.1} parent=1 // pred_check
      _
    $region67: #{resnet18_client_forward.1} parent=1 // pred_check_branch
      %3075 = sbr.rel (0) target = $region69
    $region68: #{resnet18_client_forward.1} parent=1 // pred_region
      _
    $region69: #{resnet18_client_forward.1} parent=1 // pred_fallthru
      _
    // Predicated region
    $region70: #{resnet18_client_forward.1} parent=1 // pred_check
      _
    $region71: #{resnet18_client_forward.1} parent=1 // pred_check_branch
      %3077 = sbr.rel (0) target = $region73
    $region72: #{resnet18_client_forward.1} parent=1 // pred_region
      %3078 = dma.done [#allocation6], 32
    $region73: #{resnet18_client_forward.1} parent=1 // pred_fallthru
      _
    // Predicated region
    $region74: #{resnet18_client_forward.1} parent=1 // pred_check
      _
    $region75: #{resnet18_client_forward.1} parent=1 // pred_check_branch
      %3080 = sbr.rel (0) target = $region77
    $region76: #{resnet18_client_forward.1} parent=1 // pred_region
      _
    $region77: #{resnet18_client_forward.1} parent=1 // pred_fallthru
      _
    %3081 = vsyncpa [#allocation6], 1

</llo_original>
